<compile_context>
chip_gen: v6e
topology: v6e:2x2x1
jax: 0.10.0
libtpu: 0.0.40
codegen_flags: <defaults>
</compile_context>

<pallas_src>
import numpy as np
import jax
import jax.numpy as jnp
from jax import lax
from jax.experimental import pallas as pl
from jax.experimental.pallas import tpu as pltpu

K = 8
PRIMITIVES = (
    "none", "max_pool_3x3", "avg_pool_3x3", "skip_connect",
    "sep_conv_3x3", "sep_conv_5x5", "dil_conv_3x3", "dil_conv_5x5",
)
BN_EPS = 1e-5
BN_SCALE = float(1.0 / np.sqrt(1.0 + BN_EPS))
NEG_BIG = np.float32(-1e30)          # max-pool out-of-bounds penalty (never wins vs center)


def _offsets(k, dil):
    pad = dil * (k - 1) // 2
    return tuple((u * dil - pad, v * dil - pad) for u in range(k) for v in range(k))


OFF3_D1 = _offsets(3, 1)     # 3x3 dil 1 (sep3 stages, pools)
OFF5_D1 = _offsets(5, 1)     # 5x5 dil 1 (sep5 stages)
OFF3_D2 = _offsets(3, 2)     # 3x3 dil 2 (dil3)
OFF5_D2 = _offsets(5, 2)     # 5x5 dil 2 (dil5)

# Union of every stage-1 tap offset on x0 (41 offsets -> 40 rolls, shared by all branches).
UNION_OFFS = tuple(OFF5_D1) + tuple(o for o in OFF5_D2 if o not in OFF5_D1)

IDX3_D1 = {o: i for i, o in enumerate(OFF3_D1)}
IDX5_D1 = {o: i for i, o in enumerate(OFF5_D1)}
IDX3_D2 = {o: i for i, o in enumerate(OFF3_D2)}
IDX5_D2 = {o: i for i, o in enumerate(OFF5_D2)}

# Packed rows of the masked, lane-broadcast depthwise weights: (op, tap) -> row.
DW_OPS = (("sep3_dw1", OFF3_D1), ("sep3_dw2", OFF3_D1),
          ("sep5_dw1", OFF5_D1), ("sep5_dw2", OFF5_D1),
          ("dil3_dw",  OFF3_D2), ("dil5_dw",  OFF5_D2))
DW_ROW = {}
_r = 0
for _name, _offs in DW_OPS:
    for _off in _offs:
        DW_ROW[(_name, _off)] = _r
        _r += 1
N_DW_ROWS = _r               # 102 used (op, tap) pairs

PW_NAMES = ("sep3_pw1", "sep3_pw2", "sep5_pw1", "sep5_pw2", "dil3_pw", "dil5_pw")
PW_IDX = {n: i for i, n in enumerate(PW_NAMES)}

POOL_OFFS = OFF3_D1                                        # avg-pool taps (9)
PEN_OFFS = tuple(o for o in OFF3_D1 if o != (0, 0))        # max-pool non-center taps (8)
PEN_IDX = {o: i for i, o in enumerate(PEN_OFFS)}


# ----------------------------------------------------------------------------
# Parameter construction (deterministic, synthetic)
# ----------------------------------------------------------------------------
def init_params(cpg, key):
    shapes = {
        "sep3_dw1": (cpg, 3, 3), "sep3_pw1": (cpg, cpg),
        "sep3_dw2": (cpg, 3, 3), "sep3_pw2": (cpg, cpg),
        "sep5_dw1": (cpg, 5, 5), "sep5_pw1": (cpg, cpg),
        "sep5_dw2": (cpg, 5, 5), "sep5_pw2": (cpg, cpg),
        "dil3_dw": (cpg, 3, 3), "dil3_pw": (cpg, cpg),
        "dil5_dw": (cpg, 5, 5), "dil5_pw": (cpg, cpg),
    }
    keys = jax.random.split(key, len(shapes))
    return {name: 0.1 * jax.random.normal(k, shp, jnp.float32)
            for (name, shp), k in zip(shapes.items(), keys)}


def _spatial_tables(H, W):
    """Host-side (numpy) boundary masks and avg-pool divisor over the HW lane axis."""
    HW = H * W
    row = np.arange(HW) // W
    col = np.arange(HW) % W

    def mask(dy, dx):
        return (((row + dy) >= 0) & ((row + dy) < H) &
                ((col + dx) >= 0) & ((col + dx) < W)).astype(np.float32)

    rows_n = 3 - (row == 0).astype(np.int32) - (row == H - 1).astype(np.int32)
    cols_n = 3 - (col == 0).astype(np.int32) - (col == W - 1).astype(np.int32)
    inv_cnt = (1.0 / (rows_n * cols_n)).astype(np.float32)   # count_include_pad=False
    return mask, inv_cnt


def pack_params(params, cpg, H, W):
    """Pack weights into kernel-friendly VMEM tensors.

    dwb  : (N_DW_ROWS, cpg, HW)  masked + lane-broadcast depthwise weights
           (boundary zero-padding is folded into the weight -> no in-kernel masks,
            no per-tap (cpg,1)->(cpg,HW) broadcasts).
    pw_bn: (6, cpg, cpg)         pointwise weights with eval-mode BN folded in.
    """
    mask, _ = _spatial_tables(H, W)
    tiles = []
    for name, offs in DW_OPS:
        wflat = params[name].reshape(cpg, len(offs)).astype(jnp.float32)     # (cpg, kk)
        m = jnp.asarray(np.stack([mask(dy, dx) for (dy, dx) in offs]))       # (kk, HW)
        tiles.append(wflat.T[:, :, None] * m[:, None, :])                    # (kk, cpg, HW)
    dwb = jnp.concatenate(tiles, axis=0)                                     # (102, cpg, HW)
    pw_bn = jnp.stack([params[n] for n in PW_NAMES]).astype(jnp.float32) * BN_SCALE
    return dwb, pw_bn


# ----------------------------------------------------------------------------
# Pallas kernel
# ----------------------------------------------------------------------------
def make_mixedop_kernel(cpg, H, W, Nb):
    HW = H * W
    L = Nb * HW
    f32 = jnp.float32

    def shift_of(dy, dx):
        # roll such that r[:, p] == x[:, (p + dy*W + dx) mod L]; batch-fold wrap-around
        # only touches spatially out-of-bounds taps, which are masked/penalized.
        return (-(dy * W + dx)) % L

    def kernel(w_ref, dwb_ref, pw_ref, avg_ref, pen_ref, x_ref, o_ref):
        x0 = x_ref[0, :, :].astype(f32)                     # (cpg, L)

        def madd(acc, term):
            return term if acc is None else acc + term

        acc_s3 = acc_s5 = acc_d3 = acc_d5 = None            # stage-1 depthwise accumulators
        avg_acc = None
        max_acc = None

        # ---- single pass over the union of stage-1 tap offsets: each raw roll of x0
        #      is consumed by every branch that needs it.  All boundary handling is
        #      pre-folded into dwb / avg coefficients / max penalties, so the only
        #      per-tap work is roll + relu + FMA/max.
        for (dy, dx) in UNION_OFFS:
            center = (dy == 0 and dx == 0)
            r = x0 if center else pltpu.roll(x0, shift_of(dy, dx), 1)

            if (dy, dx) in IDX3_D1:                         # pooling taps (3x3, dil 1)
                t = IDX3_D1[(dy, dx)]
                avg_acc = madd(avg_acc, r * avg_ref[t])     # coef = w2*BN*mask/count
                m = r if center else r + pen_ref[PEN_IDX[(dy, dx)]]
                max_acc = m if max_acc is None else jnp.maximum(max_acc, m)

            rr = jnp.maximum(r, 0.0)                        # shared leading ReLU (per tap)
            if (dy, dx) in IDX3_D1:
                acc_s3 = madd(acc_s3, dwb_ref[DW_ROW[("sep3_dw1", (dy, dx))]] * rr)
            if (dy, dx) in IDX5_D1:
                acc_s5 = madd(acc_s5, dwb_ref[DW_ROW[("sep5_dw1", (dy, dx))]] * rr)
            if (dy, dx) in IDX3_D2:
                acc_d3 = madd(acc_d3, dwb_ref[DW_ROW[("dil3_dw", (dy, dx))]] * rr)
            if (dy, dx) in IDX5_D2:
                acc_d5 = madd(acc_d5, dwb_ref[DW_ROW[("dil5_dw", (dy, dx))]] * rr)

        # ---- 1x1 convs on the MXU (DEFAULT precision; BN + arch weights pre-folded).
        def pw(name, h):
            return jnp.dot(pw_ref[PW_IDX[name]], h, preferred_element_type=f32)

        h3 = jnp.maximum(pw("sep3_pw1", acc_s3), 0.0)
        h5 = jnp.maximum(pw("sep5_pw1", acc_s5), 0.0)

        # ---- second depthwise stage of the separable convs (private rolls on h3/h5).
        acc_s3b = None
        for (dy, dx) in OFF3_D1:
            tap = h3 if (dy == 0 and dx == 0) else pltpu.roll(h3, shift_of(dy, dx), 1)
            acc_s3b = madd(acc_s3b, dwb_ref[DW_ROW[("sep3_dw2", (dy, dx))]] * tap)
        acc_s5b = None
        for (dy, dx) in OFF5_D1:
            tap = h5 if (dy == 0 and dx == 0) else pltpu.roll(h5, shift_of(dy, dx), 1)
            acc_s5b = madd(acc_s5b, dwb_ref[DW_ROW[("sep5_dw2", (dy, dx))]] * tap)

        # ---- weighted sum of the 8 primitives.  'none' contributes exactly zero;
        #      avg-pool and conv-branch arch weights are pre-folded (avg_ref / pw_ref).
        out = w_ref[3] * x0 + w_ref[1] * max_acc + avg_acc
        out = out + pw("sep3_pw2", acc_s3b)
        out = out + pw("sep5_pw2", acc_s5b)
        out = out + pw("dil3_pw", acc_d3)
        out = out + pw("dil5_pw", acc_d5)

        o_ref[0, :, :] = out.astype(o_ref.dtype)

    return kernel


def _pick_nb(N, HW, lane_cap=512):
    """Batch elements folded per grid step: amortize per-step overhead, keep the lane
    axis <= lane_cap (vreg-pressure bound) and keep >= 2 parallel grid steps (v7x)."""
    best = 1
    for nb in range(1, N + 1):
        if nb * HW > lane_cap:
            break
        if N % nb:
            continue
        if N >= 2 and (N // nb) < 2:
            continue
        best = nb
    return best


def mixed_op_pallas(x, weights, params, lane_cap=512):
    N, C, H, W = x.shape
    assert C % K == 0, "C must be divisible by K=8"
    cpg = C // K
    HW = H * W
    Nb = _pick_nb(N, HW, lane_cap)
    G = N // Nb
    L = Nb * HW

    mask, inv_cnt = _spatial_tables(H, W)

    # --- parameter packing (per-model) + per-call folds of the architecture weights ---
    dwb_hw, pw_bn = pack_params(params, cpg, H, W)                 # (102,cpg,HW),(6,cpg,cpg)
    dwb = jnp.tile(dwb_hw, (1, 1, Nb)) if Nb > 1 else dwb_hw       # (102, cpg, L)

    aw = weights.astype(jnp.float32)
    # pool-branch BN folded into arch weights; only indices 1 (max) and 3 (skip) are
    # read as scalars inside the kernel.
    w_eff = aw * jnp.array([1.0, BN_SCALE, BN_SCALE, 1.0, 1.0, 1.0, 1.0, 1.0], jnp.float32)
    # conv-branch arch weights folded into the final pointwise conv of each branch.
    one = jnp.ones((), jnp.float32)
    arch_pw = jnp.stack([one, aw[4], one, aw[5], aw[6], aw[7]])
    pw_eff = pw_bn * arch_pw[:, None, None]                        # (6, cpg, cpg)

    # avg-pool per-tap coefficients: arch_w * BN * mask * (1/count), lane-tiled per batch
    # fold and pre-broadcast over channels -> zero divides/masks/broadcasts in-kernel.
    avg_hw = np.stack([mask(dy, dx) * inv_cnt for (dy, dx) in POOL_OFFS])      # (9, HW)
    avg_hw = np.tile(avg_hw, (1, Nb)).astype(np.float32)                        # (9, L)
    avg_coef = (aw[2] * BN_SCALE) * jnp.asarray(avg_hw)
    avg_coef = jnp.broadcast_to(avg_coef[:, None, :], (len(POOL_OFFS), cpg, L))

    # max-pool out-of-bounds additive penalty (center tap is always in-bounds).
    pen_hw = np.stack([np.where(mask(dy, dx) > 0, np.float32(0.0), NEG_BIG)
                       for (dy, dx) in PEN_OFFS]).astype(np.float32)            # (8, HW)
    pen_hw = np.tile(pen_hw, (1, Nb))
    pool_pen = jnp.broadcast_to(jnp.asarray(pen_hw)[:, None, :], (len(PEN_OFFS), cpg, L))

    # Lane-dense input: xtemp channels only, Nb batch elements folded into the lane axis.
    xt = x[:, :cpg].reshape(N, cpg, HW)
    xt = xt.reshape(G, Nb, cpg, HW).transpose(0, 2, 1, 3).reshape(G, cpg, L)

    kernel = make_mixedop_kernel(cpg, H, W, Nb)

    taps = 2 * 9 + 2 * 25 + 9 + 25
    flops = int(2 * N * cpg * HW * (taps + 6 * cpg + 20))
    bytes_accessed = int(4 * (2 * N * cpg * HW + dwb.size + pw_eff.size
                              + avg_coef.size + pool_pen.size + 8))

    xt1 = pl.pallas_call(
        kernel,
        out_shape=jax.ShapeDtypeStruct((G, cpg, L), x.dtype),
        grid=(G,),
        in_specs=[
            pl.BlockSpec(memory_space=pltpu.MemorySpace.SMEM),            # arch weights (8,)
            pl.BlockSpec((N_DW_ROWS, cpg, L), lambda g: (0, 0, 0)),       # masked dw weights
            pl.BlockSpec((6, cpg, cpg), lambda g: (0, 0, 0)),             # pointwise (MXU)
            pl.BlockSpec((len(POOL_OFFS), cpg, L), lambda g: (0, 0, 0)),  # avg-pool coefs
            pl.BlockSpec((len(PEN_OFFS), cpg, L), lambda g: (0, 0, 0)),   # max-pool penalties
            pl.BlockSpec((1, cpg, L), lambda g: (g, 0, 0)),               # xtemp block
        ],
        out_specs=pl.BlockSpec((1, cpg, L), lambda g: (g, 0, 0)),
        compiler_params=pltpu.CompilerParams(
            dimension_semantics=("parallel",)),                           # batch blocks independent
        cost_estimate=pl.CostEstimate(flops=flops, transcendentals=0,
                                      bytes_accessed=bytes_accessed),
    )(w_eff, dwb, pw_eff, avg_coef, pool_pen, xt)

    # Unfold batch, then xtemp2 passthrough + concat + channel_shuffle as plain XLA.
    xt1 = xt1.reshape(G, cpg, Nb, HW).transpose(0, 2, 1, 3).reshape(N, cpg, H, W)
    y = jnp.concatenate([xt1, x[:, cpg:]], axis=1)
    y = y.reshape(N, K, cpg, H, W).transpose(0, 2, 1, 3, 4).reshape(N, C, H, W)
    return y


# ----------------------------------------------------------------------------
# Pure-JAX reference (mirrors the PyTorch forward) for validation
# ----------------------------------------------------------------------------
def mixed_op_ref(x, weights, params):
    N, C, H, W = x.shape
    cpg = C // K
    hi = lax.Precision.HIGHEST

    xt, xt2 = x[:, :cpg], x[:, cpg:]
    relu = lambda h: jnp.maximum(h, 0.0)
    bn = lambda h: h * BN_SCALE
    pad3 = [(0, 0), (0, 0), (1, 1), (1, 1)]

    def dw(h, name, k, pad, dil):
        w = params[name].reshape(cpg, 1, k, k)
        return lax.conv_general_dilated(
            h, w, (1, 1), [(pad, pad), (pad, pad)], rhs_dilation=(dil, dil),
            dimension_numbers=("NCHW", "OIHW", "NCHW"),
            feature_group_count=cpg, precision=hi)

    def pw(h, name):
        w = params[name].reshape(cpg, cpg, 1, 1)
        return lax.conv_general_dilated(
            h, w, (1, 1), [(0, 0), (0, 0)],
            dimension_numbers=("NCHW", "OIHW", "NCHW"), precision=hi)

    def max_pool(h):
        return lax.reduce_window(h, -jnp.inf, lax.max, (1, 1, 3, 3), (1, 1, 1, 1), pad3)

    def avg_pool(h):
        s = lax.reduce_window(h, 0.0, lax.add, (1, 1, 3, 3), (1, 1, 1, 1), pad3)
        c = lax.reduce_window(jnp.ones_like(h), 0.0, lax.add, (1, 1, 3, 3), (1, 1, 1, 1), pad3)
        return s / c

    def sep(h, k, pad, tag):
        h = bn(pw(dw(relu(h), tag + "_dw1", k, pad, 1), tag + "_pw1"))
        h = bn(pw(dw(relu(h), tag + "_dw2", k, pad, 1), tag + "_pw2"))
        return h

    def dil(h, k, pad, d, tag):
        return bn(pw(dw(relu(h), tag + "_dw", k, pad, d), tag + "_pw"))

    outs = [
        jnp.zeros_like(xt),             # none
        bn(max_pool(xt)),               # max_pool_3x3 (+BN)
        bn(avg_pool(xt)),               # avg_pool_3x3 (+BN)
        xt,                             # skip_connect
        sep(xt, 3, 1, "sep3"),          # sep_conv_3x3
        sep(xt, 5, 2, "sep5"),          # sep_conv_5x5
        dil(xt, 3, 2, 2, "dil3"),       # dil_conv_3x3
        dil(xt, 5, 4, 2, "dil5"),       # dil_conv_5x5
    ]
    xt1 = sum(weights[i] * outs[i] for i in range(len(outs)))
    y = jnp.concatenate([xt1, xt2], axis=1)
    y = y.reshape(N, K, cpg, H, W).transpose(0, 2, 1, 3, 4).reshape(N, C, H, W)
    return y


# ----------------------------------------------------------------------------
if __name__ == "__main__":
    key = jax.random.PRNGKey(0)
    # cpg = 8 -> full-sublane tiles; N=4 with Nb=2 -> 2 parallel grid steps, lane width 512.
    N, C, H, W = 4, 64, 16, 16
    cpg = C // K
    k_x, k_w, k_p = jax.random.split(key, 3)

    x = jax.random.normal(k_x, (N, C, H, W), jnp.float32)
    weights = jax.nn.softmax(jax.random.normal(k_w, (len(PRIMITIVES),), jnp.float32))
    params = init_params(cpg, k_p)

    y = mixed_op_pallas(x, weights, params)
    jax.block_until_ready(y)

    y_ref = mixed_op_ref(x, weights, params)
    assert y.shape == (N, C, H, W)
    if not np.allclose(np.asarray(y), np.asarray(y_ref), atol=1e-3, rtol=1e-3):
        err = float(jnp.max(jnp.abs(y - y_ref)))
        raise AssertionError(f"Pallas result mismatch vs reference (max abs err {err})")
    print("KERNEL_OK")
</pallas_src>

<mosaic_0001>
module attributes {stable_mosaic.version = 11 : i64} {
  func.func @kernel(%arg0: i32, %arg1: memref<8xf32, #tpu.memory_space<smem>>, %arg2: memref<102x8x512xf32, #tpu.memory_space<vmem>>, %arg3: memref<6x8x8xf32, #tpu.memory_space<vmem>>, %arg4: memref<9x8x512xf32, #tpu.memory_space<vmem>>, %arg5: memref<8x8x512xf32, #tpu.memory_space<vmem>>, %arg6: memref<1x8x512xf32, #tpu.memory_space<vmem>>, %arg7: memref<1x8x512xf32, #tpu.memory_space<vmem>>) attributes {dimension_semantics = [#tpu.dimension_semantics<parallel>], iteration_bounds = array<i64: 2>, scalar_prefetch = 0 : i64, scratch_operands = 0 : i64, tpu.core_type = #tpu.core_type<tc>, window_params = [{transform_indices = @transform_0, window_bounds = array<i64: 8>}, {pipeline_mode = #tpu.pipeline_mode<synchronous>, transform_indices = @transform_1, window_bounds = array<i64: 102, 8, 512>}, {pipeline_mode = #tpu.pipeline_mode<synchronous>, transform_indices = @transform_2, window_bounds = array<i64: 6, 8, 8>}, {pipeline_mode = #tpu.pipeline_mode<synchronous>, transform_indices = @transform_3, window_bounds = array<i64: 9, 8, 512>}, {pipeline_mode = #tpu.pipeline_mode<synchronous>, transform_indices = @transform_4, window_bounds = array<i64: 8, 8, 512>}, {transform_indices = @transform_5, window_bounds = array<i64: 1, 8, 512>}, {transform_indices = @transform_6, window_bounds = array<i64: 1, 8, 512>}]} {
    %c0 = arith.constant 0 : index
    %c0_0 = arith.constant 0 : index
    %c0_1 = arith.constant 0 : index
    %0 = vector.load %arg6[%c0, %c0_0, %c0_1] : memref<1x8x512xf32, #tpu.memory_space<vmem>>, vector<1x8x512xf32>
    %1 = vector.shape_cast %0 : vector<1x8x512xf32> to vector<8x512xf32>
    %c34_i32 = arith.constant 34 : i32
    %2 = tpu.dynamic_rotate %1 by %c34_i32 dim 1 : vector<8x512xf32>, i32 -> vector<8x512xf32>
    %cst = arith.constant 0.000000e+00 : f32
    %3 = vector.broadcast %cst : f32 to vector<8x512xf32>
    %4 = arith.maximumf %2, %3 : vector<8x512xf32>
    %c18 = arith.constant 18 : index
    %c0_2 = arith.constant 0 : index
    %c0_3 = arith.constant 0 : index
    %5 = vector.load %arg2[%c18, %c0_2, %c0_3] : memref<102x8x512xf32, #tpu.memory_space<vmem>>, vector<1x8x512xf32>
    %6 = vector.shape_cast %5 : vector<1x8x512xf32> to vector<8x512xf32>
    %7 = arith.mulf %6, %4 : vector<8x512xf32>
    %c68 = arith.constant 68 : index
    %c0_4 = arith.constant 0 : index
    %c0_5 = arith.constant 0 : index
    %8 = vector.load %arg2[%c68, %c0_4, %c0_5] : memref<102x8x512xf32, #tpu.memory_space<vmem>>, vector<1x8x512xf32>
    %9 = vector.shape_cast %8 : vector<1x8x512xf32> to vector<8x512xf32>
    %10 = arith.mulf %9, %4 : vector<8x512xf32>
    %c83 = arith.constant 83 : index
    %c0_6 = arith.constant 0 : index
    %c0_7 = arith.constant 0 : index
    %11 = vector.load %arg2[%c83, %c0_6, %c0_7] : memref<102x8x512xf32, #tpu.memory_space<vmem>>, vector<1x8x512xf32>
    %12 = vector.shape_cast %11 : vector<1x8x512xf32> to vector<8x512xf32>
    %13 = arith.mulf %12, %4 : vector<8x512xf32>
    %c33_i32 = arith.constant 33 : i32
    %14 = tpu.dynamic_rotate %1 by %c33_i32 dim 1 : vector<8x512xf32>, i32 -> vector<8x512xf32>
    %cst_8 = arith.constant 0.000000e+00 : f32
    %15 = vector.broadcast %cst_8 : f32 to vector<8x512xf32>
    %16 = arith.maximumf %14, %15 : vector<8x512xf32>
    %c19 = arith.constant 19 : index
    %c0_9 = arith.constant 0 : index
    %c0_10 = arith.constant 0 : index
    %17 = vector.load %arg2[%c19, %c0_9, %c0_10] : memref<102x8x512xf32, #tpu.memory_space<vmem>>, vector<1x8x512xf32>
    %18 = vector.shape_cast %17 : vector<1x8x512xf32> to vector<8x512xf32>
    %19 = arith.mulf %18, %16 : vector<8x512xf32>
    %20 = arith.addf %7, %19 : vector<8x512xf32>
    %c32_i32 = arith.constant 32 : i32
    %21 = tpu.dynamic_rotate %1 by %c32_i32 dim 1 : vector<8x512xf32>, i32 -> vector<8x512xf32>
    %cst_11 = arith.constant 0.000000e+00 : f32
    %22 = vector.broadcast %cst_11 : f32 to vector<8x512xf32>
    %23 = arith.maximumf %21, %22 : vector<8x512xf32>
    %c20 = arith.constant 20 : index
    %c0_12 = arith.constant 0 : index
    %c0_13 = arith.constant 0 : index
    %24 = vector.load %arg2[%c20, %c0_12, %c0_13] : memref<102x8x512xf32, #tpu.memory_space<vmem>>, vector<1x8x512xf32>
    %25 = vector.shape_cast %24 : vector<1x8x512xf32> to vector<8x512xf32>
    %26 = arith.mulf %25, %23 : vector<8x512xf32>
    %27 = arith.addf %20, %26 : vector<8x512xf32>
    %c69 = arith.constant 69 : index
    %c0_14 = arith.constant 0 : index
    %c0_15 = arith.constant 0 : index
    %28 = vector.load %arg2[%c69, %c0_14, %c0_15] : memref<102x8x512xf32, #tpu.memory_space<vmem>>, vector<1x8x512xf32>
    %29 = vector.shape_cast %28 : vector<1x8x512xf32> to vector<8x512xf32>
    %30 = arith.mulf %29, %23 : vector<8x512xf32>
    %31 = arith.addf %10, %30 : vector<8x512xf32>
    %c84 = arith.constant 84 : index
    %c0_16 = arith.constant 0 : index
    %c0_17 = arith.constant 0 : index
    %32 = vector.load %arg2[%c84, %c0_16, %c0_17] : memref<102x8x512xf32, #tpu.memory_space<vmem>>, vector<1x8x512xf32>
    %33 = vector.shape_cast %32 : vector<1x8x512xf32> to vector<8x512xf32>
    %34 = arith.mulf %33, %23 : vector<8x512xf32>
    %35 = arith.addf %13, %34 : vector<8x512xf32>
    %c31_i32 = arith.constant 31 : i32
    %36 = tpu.dynamic_rotate %1 by %c31_i32 dim 1 : vector<8x512xf32>, i32 -> vector<8x512xf32>
    %cst_18 = arith.constant 0.000000e+00 : f32
    %37 = vector.broadcast %cst_18 : f32 to vector<8x512xf32>
    %38 = arith.maximumf %36, %37 : vector<8x512xf32>
    %c21 = arith.constant 21 : index
    %c0_19 = arith.constant 0 : index
    %c0_20 = arith.constant 0 : index
    %39 = vector.load %arg2[%c21, %c0_19, %c0_20] : memref<102x8x512xf32, #tpu.memory_space<vmem>>, vector<1x8x512xf32>
    %40 = vector.shape_cast %39 : vector<1x8x512xf32> to vector<8x512xf32>
    %41 = arith.mulf %40, %38 : vector<8x512xf32>
    %42 = arith.addf %27, %41 : vector<8x512xf32>
    %c30_i32 = arith.constant 30 : i32
    %43 = tpu.dynamic_rotate %1 by %c30_i32 dim 1 : vector<8x512xf32>, i32 -> vector<8x512xf32>
    %cst_21 = arith.constant 0.000000e+00 : f32
    %44 = vector.broadcast %cst_21 : f32 to vector<8x512xf32>
    %45 = arith.maximumf %43, %44 : vector<8x512xf32>
    %c22 = arith.constant 22 : index
    %c0_22 = arith.constant 0 : index
    %c0_23 = arith.constant 0 : index
    %46 = vector.load %arg2[%c22, %c0_22, %c0_23] : memref<102x8x512xf32, #tpu.memory_space<vmem>>, vector<1x8x512xf32>
    %47 = vector.shape_cast %46 : vector<1x8x512xf32> to vector<8x512xf32>
    %48 = arith.mulf %47, %45 : vector<8x512xf32>
    %49 = arith.addf %42, %48 : vector<8x512xf32>
    %c70 = arith.constant 70 : index
    %c0_24 = arith.constant 0 : index
    %c0_25 = arith.constant 0 : index
    %50 = vector.load %arg2[%c70, %c0_24, %c0_25] : memref<102x8x512xf32, #tpu.memory_space<vmem>>, vector<1x8x512xf32>
    %51 = vector.shape_cast %50 : vector<1x8x512xf32> to vector<8x512xf32>
    %52 = arith.mulf %51, %45 : vector<8x512xf32>
    %53 = arith.addf %31, %52 : vector<8x512xf32>
    %c85 = arith.constant 85 : index
    %c0_26 = arith.constant 0 : index
    %c0_27 = arith.constant 0 : index
    %54 = vector.load %arg2[%c85, %c0_26, %c0_27] : memref<102x8x512xf32, #tpu.memory_space<vmem>>, vector<1x8x512xf32>
    %55 = vector.shape_cast %54 : vector<1x8x512xf32> to vector<8x512xf32>
    %56 = arith.mulf %55, %45 : vector<8x512xf32>
    %57 = arith.addf %35, %56 : vector<8x512xf32>
    %c18_i32 = arith.constant 18 : i32
    %58 = tpu.dynamic_rotate %1 by %c18_i32 dim 1 : vector<8x512xf32>, i32 -> vector<8x512xf32>
    %cst_28 = arith.constant 0.000000e+00 : f32
    %59 = vector.broadcast %cst_28 : f32 to vector<8x512xf32>
    %60 = arith.maximumf %58, %59 : vector<8x512xf32>
    %c23 = arith.constant 23 : index
    %c0_29 = arith.constant 0 : index
    %c0_30 = arith.constant 0 : index
    %61 = vector.load %arg2[%c23, %c0_29, %c0_30] : memref<102x8x512xf32, #tpu.memory_space<vmem>>, vector<1x8x512xf32>
    %62 = vector.shape_cast %61 : vector<1x8x512xf32> to vector<8x512xf32>
    %63 = arith.mulf %62, %60 : vector<8x512xf32>
    %64 = arith.addf %49, %63 : vector<8x512xf32>
    %c17_i32 = arith.constant 17 : i32
    %65 = tpu.dynamic_rotate %1 by %c17_i32 dim 1 : vector<8x512xf32>, i32 -> vector<8x512xf32>
    %c0_31 = arith.constant 0 : index
    %c0_32 = arith.constant 0 : index
    %c0_33 = arith.constant 0 : index
    %66 = vector.load %arg4[%c0_31, %c0_32, %c0_33] : memref<9x8x512xf32, #tpu.memory_space<vmem>>, vector<1x8x512xf32>
    %67 = vector.shape_cast %66 : vector<1x8x512xf32> to vector<8x512xf32>
    %68 = arith.mulf %65, %67 : vector<8x512xf32>
    %c0_34 = arith.constant 0 : index
    %c0_35 = arith.constant 0 : index
    %c0_36 = arith.constant 0 : index
    %69 = vector.load %arg5[%c0_34, %c0_35, %c0_36] : memref<8x8x512xf32, #tpu.memory_space<vmem>>, vector<1x8x512xf32>
    %70 = vector.shape_cast %69 : vector<1x8x512xf32> to vector<8x512xf32>
    %71 = arith.addf %65, %70 : vector<8x512xf32>
    %cst_37 = arith.constant 0.000000e+00 : f32
    %72 = vector.broadcast %cst_37 : f32 to vector<8x512xf32>
    %73 = arith.maximumf %65, %72 : vector<8x512xf32>
    %c0_38 = arith.constant 0 : index
    %c0_39 = arith.constant 0 : index
    %c0_40 = arith.constant 0 : index
    %74 = vector.load %arg2[%c0_38, %c0_39, %c0_40] : memref<102x8x512xf32, #tpu.memory_space<vmem>>, vector<1x8x512xf32>
    %75 = vector.shape_cast %74 : vector<1x8x512xf32> to vector<8x512xf32>
    %76 = arith.mulf %75, %73 : vector<8x512xf32>
    %c24 = arith.constant 24 : index
    %c0_41 = arith.constant 0 : index
    %c0_42 = arith.constant 0 : index
    %77 = vector.load %arg2[%c24, %c0_41, %c0_42] : memref<102x8x512xf32, #tpu.memory_space<vmem>>, vector<1x8x512xf32>
    %78 = vector.shape_cast %77 : vector<1x8x512xf32> to vector<8x512xf32>
    %79 = arith.mulf %78, %73 : vector<8x512xf32>
    %80 = arith.addf %64, %79 : vector<8x512xf32>
    %c16_i32 = arith.constant 16 : i32
    %81 = tpu.dynamic_rotate %1 by %c16_i32 dim 1 : vector<8x512xf32>, i32 -> vector<8x512xf32>
    %c1 = arith.constant 1 : index
    %c0_43 = arith.constant 0 : index
    %c0_44 = arith.constant 0 : index
    %82 = vector.load %arg4[%c1, %c0_43, %c0_44] : memref<9x8x512xf32, #tpu.memory_space<vmem>>, vector<1x8x512xf32>
    %83 = vector.shape_cast %82 : vector<1x8x512xf32> to vector<8x512xf32>
    %84 = arith.mulf %81, %83 : vector<8x512xf32>
    %85 = arith.addf %68, %84 : vector<8x512xf32>
    %c1_45 = arith.constant 1 : index
    %c0_46 = arith.constant 0 : index
    %c0_47 = arith.constant 0 : index
    %86 = vector.load %arg5[%c1_45, %c0_46, %c0_47] : memref<8x8x512xf32, #tpu.memory_space<vmem>>, vector<1x8x512xf32>
    %87 = vector.shape_cast %86 : vector<1x8x512xf32> to vector<8x512xf32>
    %88 = arith.addf %81, %87 : vector<8x512xf32>
    %89 = arith.maximumf %71, %88 : vector<8x512xf32>
    %cst_48 = arith.constant 0.000000e+00 : f32
    %90 = vector.broadcast %cst_48 : f32 to vector<8x512xf32>
    %91 = arith.maximumf %81, %90 : vector<8x512xf32>
    %c1_49 = arith.constant 1 : index
    %c0_50 = arith.constant 0 : index
    %c0_51 = arith.constant 0 : index
    %92 = vector.load %arg2[%c1_49, %c0_50, %c0_51] : memref<102x8x512xf32, #tpu.memory_space<vmem>>, vector<1x8x512xf32>
    %93 = vector.shape_cast %92 : vector<1x8x512xf32> to vector<8x512xf32>
    %94 = arith.mulf %93, %91 : vector<8x512xf32>
    %95 = arith.addf %76, %94 : vector<8x512xf32>
    %c25 = arith.constant 25 : index
    %c0_52 = arith.constant 0 : index
    %c0_53 = arith.constant 0 : index
    %96 = vector.load %arg2[%c25, %c0_52, %c0_53] : memref<102x8x512xf32, #tpu.memory_space<vmem>>, vector<1x8x512xf32>
    %97 = vector.shape_cast %96 : vector<1x8x512xf32> to vector<8x512xf32>
    %98 = arith.mulf %97, %91 : vector<8x512xf32>
    %99 = arith.addf %80, %98 : vector<8x512xf32>
    %c15_i32 = arith.constant 15 : i32
    %100 = tpu.dynamic_rotate %1 by %c15_i32 dim 1 : vector<8x512xf32>, i32 -> vector<8x512xf32>
    %c2 = arith.constant 2 : index
    %c0_54 = arith.constant 0 : index
    %c0_55 = arith.constant 0 : index
    %101 = vector.load %arg4[%c2, %c0_54, %c0_55] : memref<9x8x512xf32, #tpu.memory_space<vmem>>, vector<1x8x512xf32>
    %102 = vector.shape_cast %101 : vector<1x8x512xf32> to vector<8x512xf32>
    %103 = arith.mulf %100, %102 : vector<8x512xf32>
    %104 = arith.addf %85, %103 : vector<8x512xf32>
    %c2_56 = arith.constant 2 : index
    %c0_57 = arith.constant 0 : index
    %c0_58 = arith.constant 0 : index
    %105 = vector.load %arg5[%c2_56, %c0_57, %c0_58] : memref<8x8x512xf32, #tpu.memory_space<vmem>>, vector<1x8x512xf32>
    %106 = vector.shape_cast %105 : vector<1x8x512xf32> to vector<8x512xf32>
    %107 = arith.addf %100, %106 : vector<8x512xf32>
    %108 = arith.maximumf %89, %107 : vector<8x512xf32>
    %cst_59 = arith.constant 0.000000e+00 : f32
    %109 = vector.broadcast %cst_59 : f32 to vector<8x512xf32>
    %110 = arith.maximumf %100, %109 : vector<8x512xf32>
    %c2_60 = arith.constant 2 : index
    %c0_61 = arith.constant 0 : index
    %c0_62 = arith.constant 0 : index
    %111 = vector.load %arg2[%c2_60, %c0_61, %c0_62] : memref<102x8x512xf32, #tpu.memory_space<vmem>>, vector<1x8x512xf32>
    %112 = vector.shape_cast %111 : vector<1x8x512xf32> to vector<8x512xf32>
    %113 = arith.mulf %112, %110 : vector<8x512xf32>
    %114 = arith.addf %95, %113 : vector<8x512xf32>
    %c26 = arith.constant 26 : index
    %c0_63 = arith.constant 0 : index
    %c0_64 = arith.constant 0 : index
    %115 = vector.load %arg2[%c26, %c0_63, %c0_64] : memref<102x8x512xf32, #tpu.memory_space<vmem>>, vector<1x8x512xf32>
    %116 = vector.shape_cast %115 : vector<1x8x512xf32> to vector<8x512xf32>
    %117 = arith.mulf %116, %110 : vector<8x512xf32>
    %118 = arith.addf %99, %117 : vector<8x512xf32>
    %c14_i32 = arith.constant 14 : i32
    %119 = tpu.dynamic_rotate %1 by %c14_i32 dim 1 : vector<8x512xf32>, i32 -> vector<8x512xf32>
    %cst_65 = arith.constant 0.000000e+00 : f32
    %120 = vector.broadcast %cst_65 : f32 to vector<8x512xf32>
    %121 = arith.maximumf %119, %120 : vector<8x512xf32>
    %c27 = arith.constant 27 : index
    %c0_66 = arith.constant 0 : index
    %c0_67 = arith.constant 0 : index
    %122 = vector.load %arg2[%c27, %c0_66, %c0_67] : memref<102x8x512xf32, #tpu.memory_space<vmem>>, vector<1x8x512xf32>
    %123 = vector.shape_cast %122 : vector<1x8x512xf32> to vector<8x512xf32>
    %124 = arith.mulf %123, %121 : vector<8x512xf32>
    %125 = arith.addf %118, %124 : vector<8x512xf32>
    %c2_i32 = arith.constant 2 : i32
    %126 = tpu.dynamic_rotate %1 by %c2_i32 dim 1 : vector<8x512xf32>, i32 -> vector<8x512xf32>
    %cst_68 = arith.constant 0.000000e+00 : f32
    %127 = vector.broadcast %cst_68 : f32 to vector<8x512xf32>
    %128 = arith.maximumf %126, %127 : vector<8x512xf32>
    %c28 = arith.constant 28 : index
    %c0_69 = arith.constant 0 : index
    %c0_70 = arith.constant 0 : index
    %129 = vector.load %arg2[%c28, %c0_69, %c0_70] : memref<102x8x512xf32, #tpu.memory_space<vmem>>, vector<1x8x512xf32>
    %130 = vector.shape_cast %129 : vector<1x8x512xf32> to vector<8x512xf32>
    %131 = arith.mulf %130, %128 : vector<8x512xf32>
    %132 = arith.addf %125, %131 : vector<8x512xf32>
    %c71 = arith.constant 71 : index
    %c0_71 = arith.constant 0 : index
    %c0_72 = arith.constant 0 : index
    %133 = vector.load %arg2[%c71, %c0_71, %c0_72] : memref<102x8x512xf32, #tpu.memory_space<vmem>>, vector<1x8x512xf32>
    %134 = vector.shape_cast %133 : vector<1x8x512xf32> to vector<8x512xf32>
    %135 = arith.mulf %134, %128 : vector<8x512xf32>
    %136 = arith.addf %53, %135 : vector<8x512xf32>
    %c88 = arith.constant 88 : index
    %c0_73 = arith.constant 0 : index
    %c0_74 = arith.constant 0 : index
    %137 = vector.load %arg2[%c88, %c0_73, %c0_74] : memref<102x8x512xf32, #tpu.memory_space<vmem>>, vector<1x8x512xf32>
    %138 = vector.shape_cast %137 : vector<1x8x512xf32> to vector<8x512xf32>
    %139 = arith.mulf %138, %128 : vector<8x512xf32>
    %140 = arith.addf %57, %139 : vector<8x512xf32>
    %c1_i32 = arith.constant 1 : i32
    %141 = tpu.dynamic_rotate %1 by %c1_i32 dim 1 : vector<8x512xf32>, i32 -> vector<8x512xf32>
    %c3 = arith.constant 3 : index
    %c0_75 = arith.constant 0 : index
    %c0_76 = arith.constant 0 : index
    %142 = vector.load %arg4[%c3, %c0_75, %c0_76] : memref<9x8x512xf32, #tpu.memory_space<vmem>>, vector<1x8x512xf32>
    %143 = vector.shape_cast %142 : vector<1x8x512xf32> to vector<8x512xf32>
    %144 = arith.mulf %141, %143 : vector<8x512xf32>
    %145 = arith.addf %104, %144 : vector<8x512xf32>
    %c3_77 = arith.constant 3 : index
    %c0_78 = arith.constant 0 : index
    %c0_79 = arith.constant 0 : index
    %146 = vector.load %arg5[%c3_77, %c0_78, %c0_79] : memref<8x8x512xf32, #tpu.memory_space<vmem>>, vector<1x8x512xf32>
    %147 = vector.shape_cast %146 : vector<1x8x512xf32> to vector<8x512xf32>
    %148 = arith.addf %141, %147 : vector<8x512xf32>
    %149 = arith.maximumf %108, %148 : vector<8x512xf32>
    %cst_80 = arith.constant 0.000000e+00 : f32
    %150 = vector.broadcast %cst_80 : f32 to vector<8x512xf32>
    %151 = arith.maximumf %141, %150 : vector<8x512xf32>
    %c3_81 = arith.constant 3 : index
    %c0_82 = arith.constant 0 : index
    %c0_83 = arith.constant 0 : index
    %152 = vector.load %arg2[%c3_81, %c0_82, %c0_83] : memref<102x8x512xf32, #tpu.memory_space<vmem>>, vector<1x8x512xf32>
    %153 = vector.shape_cast %152 : vector<1x8x512xf32> to vector<8x512xf32>
    %154 = arith.mulf %153, %151 : vector<8x512xf32>
    %155 = arith.addf %114, %154 : vector<8x512xf32>
    %c29 = arith.constant 29 : index
    %c0_84 = arith.constant 0 : index
    %c0_85 = arith.constant 0 : index
    %156 = vector.load %arg2[%c29, %c0_84, %c0_85] : memref<102x8x512xf32, #tpu.memory_space<vmem>>, vector<1x8x512xf32>
    %157 = vector.shape_cast %156 : vector<1x8x512xf32> to vector<8x512xf32>
    %158 = arith.mulf %157, %151 : vector<8x512xf32>
    %159 = arith.addf %132, %158 : vector<8x512xf32>
    %c4 = arith.constant 4 : index
    %c0_86 = arith.constant 0 : index
    %c0_87 = arith.constant 0 : index
    %160 = vector.load %arg4[%c4, %c0_86, %c0_87] : memref<9x8x512xf32, #tpu.memory_space<vmem>>, vector<1x8x512xf32>
    %161 = vector.shape_cast %160 : vector<1x8x512xf32> to vector<8x512xf32>
    %162 = arith.mulf %1, %161 : vector<8x512xf32>
    %163 = arith.addf %145, %162 : vector<8x512xf32>
    %164 = arith.maximumf %149, %1 : vector<8x512xf32>
    %cst_88 = arith.constant 0.000000e+00 : f32
    %165 = vector.broadcast %cst_88 : f32 to vector<8x512xf32>
    %166 = arith.maximumf %1, %165 : vector<8x512xf32>
    %c4_89 = arith.constant 4 : index
    %c0_90 = arith.constant 0 : index
    %c0_91 = arith.constant 0 : index
    %167 = vector.load %arg2[%c4_89, %c0_90, %c0_91] : memref<102x8x512xf32, #tpu.memory_space<vmem>>, vector<1x8x512xf32>
    %168 = vector.shape_cast %167 : vector<1x8x512xf32> to vector<8x512xf32>
    %169 = arith.mulf %168, %166 : vector<8x512xf32>
    %170 = arith.addf %155, %169 : vector<8x512xf32>
    %c30 = arith.constant 30 : index
    %c0_92 = arith.constant 0 : index
    %c0_93 = arith.constant 0 : index
    %171 = vector.load %arg2[%c30, %c0_92, %c0_93] : memref<102x8x512xf32, #tpu.memory_space<vmem>>, vector<1x8x512xf32>
    %172 = vector.shape_cast %171 : vector<1x8x512xf32> to vector<8x512xf32>
    %173 = arith.mulf %172, %166 : vector<8x512xf32>
    %174 = arith.addf %159, %173 : vector<8x512xf32>
    %c72 = arith.constant 72 : index
    %c0_94 = arith.constant 0 : index
    %c0_95 = arith.constant 0 : index
    %175 = vector.load %arg2[%c72, %c0_94, %c0_95] : memref<102x8x512xf32, #tpu.memory_space<vmem>>, vector<1x8x512xf32>
    %176 = vector.shape_cast %175 : vector<1x8x512xf32> to vector<8x512xf32>
    %177 = arith.mulf %176, %166 : vector<8x512xf32>
    %178 = arith.addf %136, %177 : vector<8x512xf32>
    %c89 = arith.constant 89 : index
    %c0_96 = arith.constant 0 : index
    %c0_97 = arith.constant 0 : index
    %179 = vector.load %arg2[%c89, %c0_96, %c0_97] : memref<102x8x512xf32, #tpu.memory_space<vmem>>, vector<1x8x512xf32>
    %180 = vector.shape_cast %179 : vector<1x8x512xf32> to vector<8x512xf32>
    %181 = arith.mulf %180, %166 : vector<8x512xf32>
    %182 = arith.addf %140, %181 : vector<8x512xf32>
    %c511_i32 = arith.constant 511 : i32
    %183 = tpu.dynamic_rotate %1 by %c511_i32 dim 1 : vector<8x512xf32>, i32 -> vector<8x512xf32>
    %c5 = arith.constant 5 : index
    %c0_98 = arith.constant 0 : index
    %c0_99 = arith.constant 0 : index
    %184 = vector.load %arg4[%c5, %c0_98, %c0_99] : memref<9x8x512xf32, #tpu.memory_space<vmem>>, vector<1x8x512xf32>
    %185 = vector.shape_cast %184 : vector<1x8x512xf32> to vector<8x512xf32>
    %186 = arith.mulf %183, %185 : vector<8x512xf32>
    %187 = arith.addf %163, %186 : vector<8x512xf32>
    %c4_100 = arith.constant 4 : index
    %c0_101 = arith.constant 0 : index
    %c0_102 = arith.constant 0 : index
    %188 = vector.load %arg5[%c4_100, %c0_101, %c0_102] : memref<8x8x512xf32, #tpu.memory_space<vmem>>, vector<1x8x512xf32>
    %189 = vector.shape_cast %188 : vector<1x8x512xf32> to vector<8x512xf32>
    %190 = arith.addf %183, %189 : vector<8x512xf32>
    %191 = arith.maximumf %164, %190 : vector<8x512xf32>
    %cst_103 = arith.constant 0.000000e+00 : f32
    %192 = vector.broadcast %cst_103 : f32 to vector<8x512xf32>
    %193 = arith.maximumf %183, %192 : vector<8x512xf32>
    %c5_104 = arith.constant 5 : index
    %c0_105 = arith.constant 0 : index
    %c0_106 = arith.constant 0 : index
    %194 = vector.load %arg2[%c5_104, %c0_105, %c0_106] : memref<102x8x512xf32, #tpu.memory_space<vmem>>, vector<1x8x512xf32>
    %195 = vector.shape_cast %194 : vector<1x8x512xf32> to vector<8x512xf32>
    %196 = arith.mulf %195, %193 : vector<8x512xf32>
    %197 = arith.addf %170, %196 : vector<8x512xf32>
    %c31 = arith.constant 31 : index
    %c0_107 = arith.constant 0 : index
    %c0_108 = arith.constant 0 : index
    %198 = vector.load %arg2[%c31, %c0_107, %c0_108] : memref<102x8x512xf32, #tpu.memory_space<vmem>>, vector<1x8x512xf32>
    %199 = vector.shape_cast %198 : vector<1x8x512xf32> to vector<8x512xf32>
    %200 = arith.mulf %199, %193 : vector<8x512xf32>
    %201 = arith.addf %174, %200 : vector<8x512xf32>
    %c510_i32 = arith.constant 510 : i32
    %202 = tpu.dynamic_rotate %1 by %c510_i32 dim 1 : vector<8x512xf32>, i32 -> vector<8x512xf32>
    %cst_109 = arith.constant 0.000000e+00 : f32
    %203 = vector.broadcast %cst_109 : f32 to vector<8x512xf32>
    %204 = arith.maximumf %202, %203 : vector<8x512xf32>
    %c32 = arith.constant 32 : index
    %c0_110 = arith.constant 0 : index
    %c0_111 = arith.constant 0 : index
    %205 = vector.load %arg2[%c32, %c0_110, %c0_111] : memref<102x8x512xf32, #tpu.memory_space<vmem>>, vector<1x8x512xf32>
    %206 = vector.shape_cast %205 : vector<1x8x512xf32> to vector<8x512xf32>
    %207 = arith.mulf %206, %204 : vector<8x512xf32>
    %208 = arith.addf %201, %207 : vector<8x512xf32>
    %c73 = arith.constant 73 : index
    %c0_112 = arith.constant 0 : index
    %c0_113 = arith.constant 0 : index
    %209 = vector.load %arg2[%c73, %c0_112, %c0_113] : memref<102x8x512xf32, #tpu.memory_space<vmem>>, vector<1x8x512xf32>
    %210 = vector.shape_cast %209 : vector<1x8x512xf32> to vector<8x512xf32>
    %211 = arith.mulf %210, %204 : vector<8x512xf32>
    %212 = arith.addf %178, %211 : vector<8x512xf32>
    %c90 = arith.constant 90 : index
    %c0_114 = arith.constant 0 : index
    %c0_115 = arith.constant 0 : index
    %213 = vector.load %arg2[%c90, %c0_114, %c0_115] : memref<102x8x512xf32, #tpu.memory_space<vmem>>, vector<1x8x512xf32>
    %214 = vector.shape_cast %213 : vector<1x8x512xf32> to vector<8x512xf32>
    %215 = arith.mulf %214, %204 : vector<8x512xf32>
    %216 = arith.addf %182, %215 : vector<8x512xf32>
    %c498_i32 = arith.constant 498 : i32
    %217 = tpu.dynamic_rotate %1 by %c498_i32 dim 1 : vector<8x512xf32>, i32 -> vector<8x512xf32>
    %cst_116 = arith.constant 0.000000e+00 : f32
    %218 = vector.broadcast %cst_116 : f32 to vector<8x512xf32>
    %219 = arith.maximumf %217, %218 : vector<8x512xf32>
    %c33 = arith.constant 33 : index
    %c0_117 = arith.constant 0 : index
    %c0_118 = arith.constant 0 : index
    %220 = vector.load %arg2[%c33, %c0_117, %c0_118] : memref<102x8x512xf32, #tpu.memory_space<vmem>>, vector<1x8x512xf32>
    %221 = vector.shape_cast %220 : vector<1x8x512xf32> to vector<8x512xf32>
    %222 = arith.mulf %221, %219 : vector<8x512xf32>
    %223 = arith.addf %208, %222 : vector<8x512xf32>
    %c497_i32 = arith.constant 497 : i32
    %224 = tpu.dynamic_rotate %1 by %c497_i32 dim 1 : vector<8x512xf32>, i32 -> vector<8x512xf32>
    %c6 = arith.constant 6 : index
    %c0_119 = arith.constant 0 : index
    %c0_120 = arith.constant 0 : index
    %225 = vector.load %arg4[%c6, %c0_119, %c0_120] : memref<9x8x512xf32, #tpu.memory_space<vmem>>, vector<1x8x512xf32>
    %226 = vector.shape_cast %225 : vector<1x8x512xf32> to vector<8x512xf32>
    %227 = arith.mulf %224, %226 : vector<8x512xf32>
    %228 = arith.addf %187, %227 : vector<8x512xf32>
    %c5_121 = arith.constant 5 : index
    %c0_122 = arith.constant 0 : index
    %c0_123 = arith.constant 0 : index
    %229 = vector.load %arg5[%c5_121, %c0_122, %c0_123] : memref<8x8x512xf32, #tpu.memory_space<vmem>>, vector<1x8x512xf32>
    %230 = vector.shape_cast %229 : vector<1x8x512xf32> to vector<8x512xf32>
    %231 = arith.addf %224, %230 : vector<8x512xf32>
    %232 = arith.maximumf %191, %231 : vector<8x512xf32>
    %cst_124 = arith.constant 0.000000e+00 : f32
    %233 = vector.broadcast %cst_124 : f32 to vector<8x512xf32>
    %234 = arith.maximumf %224, %233 : vector<8x512xf32>
    %c6_125 = arith.constant 6 : index
    %c0_126 = arith.constant 0 : index
    %c0_127 = arith.constant 0 : index
    %235 = vector.load %arg2[%c6_125, %c0_126, %c0_127] : memref<102x8x512xf32, #tpu.memory_space<vmem>>, vector<1x8x512xf32>
    %236 = vector.shape_cast %235 : vector<1x8x512xf32> to vector<8x512xf32>
    %237 = arith.mulf %236, %234 : vector<8x512xf32>
    %238 = arith.addf %197, %237 : vector<8x512xf32>
    %c34 = arith.constant 34 : index
    %c0_128 = arith.constant 0 : index
    %c0_129 = arith.constant 0 : index
    %239 = vector.load %arg2[%c34, %c0_128, %c0_129] : memref<102x8x512xf32, #tpu.memory_space<vmem>>, vector<1x8x512xf32>
    %240 = vector.shape_cast %239 : vector<1x8x512xf32> to vector<8x512xf32>
    %241 = arith.mulf %240, %234 : vector<8x512xf32>
    %242 = arith.addf %223, %241 : vector<8x512xf32>
    %c496_i32 = arith.constant 496 : i32
    %243 = tpu.dynamic_rotate %1 by %c496_i32 dim 1 : vector<8x512xf32>, i32 -> vector<8x512xf32>
    %c7 = arith.constant 7 : index
    %c0_130 = arith.constant 0 : index
    %c0_131 = arith.constant 0 : index
    %244 = vector.load %arg4[%c7, %c0_130, %c0_131] : memref<9x8x512xf32, #tpu.memory_space<vmem>>, vector<1x8x512xf32>
    %245 = vector.shape_cast %244 : vector<1x8x512xf32> to vector<8x512xf32>
    %246 = arith.mulf %243, %245 : vector<8x512xf32>
    %247 = arith.addf %228, %246 : vector<8x512xf32>
    %c6_132 = arith.constant 6 : index
    %c0_133 = arith.constant 0 : index
    %c0_134 = arith.constant 0 : index
    %248 = vector.load %arg5[%c6_132, %c0_133, %c0_134] : memref<8x8x512xf32, #tpu.memory_space<vmem>>, vector<1x8x512xf32>
    %249 = vector.shape_cast %248 : vector<1x8x512xf32> to vector<8x512xf32>
    %250 = arith.addf %243, %249 : vector<8x512xf32>
    %251 = arith.maximumf %232, %250 : vector<8x512xf32>
    %cst_135 = arith.constant 0.000000e+00 : f32
    %252 = vector.broadcast %cst_135 : f32 to vector<8x512xf32>
    %253 = arith.maximumf %243, %252 : vector<8x512xf32>
    %c7_136 = arith.constant 7 : index
    %c0_137 = arith.constant 0 : index
    %c0_138 = arith.constant 0 : index
    %254 = vector.load %arg2[%c7_136, %c0_137, %c0_138] : memref<102x8x512xf32, #tpu.memory_space<vmem>>, vector<1x8x512xf32>
    %255 = vector.shape_cast %254 : vector<1x8x512xf32> to vector<8x512xf32>
    %256 = arith.mulf %255, %253 : vector<8x512xf32>
    %257 = arith.addf %238, %256 : vector<8x512xf32>
    %c35 = arith.constant 35 : index
    %c0_139 = arith.constant 0 : index
    %c0_140 = arith.constant 0 : index
    %258 = vector.load %arg2[%c35, %c0_139, %c0_140] : memref<102x8x512xf32, #tpu.memory_space<vmem>>, vector<1x8x512xf32>
    %259 = vector.shape_cast %258 : vector<1x8x512xf32> to vector<8x512xf32>
    %260 = arith.mulf %259, %253 : vector<8x512xf32>
    %261 = arith.addf %242, %260 : vector<8x512xf32>
    %c495_i32 = arith.constant 495 : i32
    %262 = tpu.dynamic_rotate %1 by %c495_i32 dim 1 : vector<8x512xf32>, i32 -> vector<8x512xf32>
    %c8 = arith.constant 8 : index
    %c0_141 = arith.constant 0 : index
    %c0_142 = arith.constant 0 : index
    %263 = vector.load %arg4[%c8, %c0_141, %c0_142] : memref<9x8x512xf32, #tpu.memory_space<vmem>>, vector<1x8x512xf32>
    %264 = vector.shape_cast %263 : vector<1x8x512xf32> to vector<8x512xf32>
    %265 = arith.mulf %262, %264 : vector<8x512xf32>
    %266 = arith.addf %247, %265 : vector<8x512xf32>
    %c7_143 = arith.constant 7 : index
    %c0_144 = arith.constant 0 : index
    %c0_145 = arith.constant 0 : index
    %267 = vector.load %arg5[%c7_143, %c0_144, %c0_145] : memref<8x8x512xf32, #tpu.memory_space<vmem>>, vector<1x8x512xf32>
    %268 = vector.shape_cast %267 : vector<1x8x512xf32> to vector<8x512xf32>
    %269 = arith.addf %262, %268 : vector<8x512xf32>
    %270 = arith.maximumf %251, %269 : vector<8x512xf32>
    %cst_146 = arith.constant 0.000000e+00 : f32
    %271 = vector.broadcast %cst_146 : f32 to vector<8x512xf32>
    %272 = arith.maximumf %262, %271 : vector<8x512xf32>
    %c8_147 = arith.constant 8 : index
    %c0_148 = arith.constant 0 : index
    %c0_149 = arith.constant 0 : index
    %273 = vector.load %arg2[%c8_147, %c0_148, %c0_149] : memref<102x8x512xf32, #tpu.memory_space<vmem>>, vector<1x8x512xf32>
    %274 = vector.shape_cast %273 : vector<1x8x512xf32> to vector<8x512xf32>
    %275 = arith.mulf %274, %272 : vector<8x512xf32>
    %276 = arith.addf %257, %275 : vector<8x512xf32>
    %c36 = arith.constant 36 : index
    %c0_150 = arith.constant 0 : index
    %c0_151 = arith.constant 0 : index
    %277 = vector.load %arg2[%c36, %c0_150, %c0_151] : memref<102x8x512xf32, #tpu.memory_space<vmem>>, vector<1x8x512xf32>
    %278 = vector.shape_cast %277 : vector<1x8x512xf32> to vector<8x512xf32>
    %279 = arith.mulf %278, %272 : vector<8x512xf32>
    %280 = arith.addf %261, %279 : vector<8x512xf32>
    %c494_i32 = arith.constant 494 : i32
    %281 = tpu.dynamic_rotate %1 by %c494_i32 dim 1 : vector<8x512xf32>, i32 -> vector<8x512xf32>
    %cst_152 = arith.constant 0.000000e+00 : f32
    %282 = vector.broadcast %cst_152 : f32 to vector<8x512xf32>
    %283 = arith.maximumf %281, %282 : vector<8x512xf32>
    %c37 = arith.constant 37 : index
    %c0_153 = arith.constant 0 : index
    %c0_154 = arith.constant 0 : index
    %284 = vector.load %arg2[%c37, %c0_153, %c0_154] : memref<102x8x512xf32, #tpu.memory_space<vmem>>, vector<1x8x512xf32>
    %285 = vector.shape_cast %284 : vector<1x8x512xf32> to vector<8x512xf32>
    %286 = arith.mulf %285, %283 : vector<8x512xf32>
    %287 = arith.addf %280, %286 : vector<8x512xf32>
    %c482_i32 = arith.constant 482 : i32
    %288 = tpu.dynamic_rotate %1 by %c482_i32 dim 1 : vector<8x512xf32>, i32 -> vector<8x512xf32>
    %cst_155 = arith.constant 0.000000e+00 : f32
    %289 = vector.broadcast %cst_155 : f32 to vector<8x512xf32>
    %290 = arith.maximumf %288, %289 : vector<8x512xf32>
    %c38 = arith.constant 38 : index
    %c0_156 = arith.constant 0 : index
    %c0_157 = arith.constant 0 : index
    %291 = vector.load %arg2[%c38, %c0_156, %c0_157] : memref<102x8x512xf32, #tpu.memory_space<vmem>>, vector<1x8x512xf32>
    %292 = vector.shape_cast %291 : vector<1x8x512xf32> to vector<8x512xf32>
    %293 = arith.mulf %292, %290 : vector<8x512xf32>
    %294 = arith.addf %287, %293 : vector<8x512xf32>
    %c74 = arith.constant 74 : index
    %c0_158 = arith.constant 0 : index
    %c0_159 = arith.constant 0 : index
    %295 = vector.load %arg2[%c74, %c0_158, %c0_159] : memref<102x8x512xf32, #tpu.memory_space<vmem>>, vector<1x8x512xf32>
    %296 = vector.shape_cast %295 : vector<1x8x512xf32> to vector<8x512xf32>
    %297 = arith.mulf %296, %290 : vector<8x512xf32>
    %298 = arith.addf %212, %297 : vector<8x512xf32>
    %c93 = arith.constant 93 : index
    %c0_160 = arith.constant 0 : index
    %c0_161 = arith.constant 0 : index
    %299 = vector.load %arg2[%c93, %c0_160, %c0_161] : memref<102x8x512xf32, #tpu.memory_space<vmem>>, vector<1x8x512xf32>
    %300 = vector.shape_cast %299 : vector<1x8x512xf32> to vector<8x512xf32>
    %301 = arith.mulf %300, %290 : vector<8x512xf32>
    %302 = arith.addf %216, %301 : vector<8x512xf32>
    %c481_i32 = arith.constant 481 : i32
    %303 = tpu.dynamic_rotate %1 by %c481_i32 dim 1 : vector<8x512xf32>, i32 -> vector<8x512xf32>
    %cst_162 = arith.constant 0.000000e+00 : f32
    %304 = vector.broadcast %cst_162 : f32 to vector<8x512xf32>
    %305 = arith.maximumf %303, %304 : vector<8x512xf32>
    %c39 = arith.constant 39 : index
    %c0_163 = arith.constant 0 : index
    %c0_164 = arith.constant 0 : index
    %306 = vector.load %arg2[%c39, %c0_163, %c0_164] : memref<102x8x512xf32, #tpu.memory_space<vmem>>, vector<1x8x512xf32>
    %307 = vector.shape_cast %306 : vector<1x8x512xf32> to vector<8x512xf32>
    %308 = arith.mulf %307, %305 : vector<8x512xf32>
    %309 = arith.addf %294, %308 : vector<8x512xf32>
    %c480_i32 = arith.constant 480 : i32
    %310 = tpu.dynamic_rotate %1 by %c480_i32 dim 1 : vector<8x512xf32>, i32 -> vector<8x512xf32>
    %cst_165 = arith.constant 0.000000e+00 : f32
    %311 = vector.broadcast %cst_165 : f32 to vector<8x512xf32>
    %312 = arith.maximumf %310, %311 : vector<8x512xf32>
    %c40 = arith.constant 40 : index
    %c0_166 = arith.constant 0 : index
    %c0_167 = arith.constant 0 : index
    %313 = vector.load %arg2[%c40, %c0_166, %c0_167] : memref<102x8x512xf32, #tpu.memory_space<vmem>>, vector<1x8x512xf32>
    %314 = vector.shape_cast %313 : vector<1x8x512xf32> to vector<8x512xf32>
    %315 = arith.mulf %314, %312 : vector<8x512xf32>
    %316 = arith.addf %309, %315 : vector<8x512xf32>
    %c75 = arith.constant 75 : index
    %c0_168 = arith.constant 0 : index
    %c0_169 = arith.constant 0 : index
    %317 = vector.load %arg2[%c75, %c0_168, %c0_169] : memref<102x8x512xf32, #tpu.memory_space<vmem>>, vector<1x8x512xf32>
    %318 = vector.shape_cast %317 : vector<1x8x512xf32> to vector<8x512xf32>
    %319 = arith.mulf %318, %312 : vector<8x512xf32>
    %320 = arith.addf %298, %319 : vector<8x512xf32>
    %c94 = arith.constant 94 : index
    %c0_170 = arith.constant 0 : index
    %c0_171 = arith.constant 0 : index
    %321 = vector.load %arg2[%c94, %c0_170, %c0_171] : memref<102x8x512xf32, #tpu.memory_space<vmem>>, vector<1x8x512xf32>
    %322 = vector.shape_cast %321 : vector<1x8x512xf32> to vector<8x512xf32>
    %323 = arith.mulf %322, %312 : vector<8x512xf32>
    %324 = arith.addf %302, %323 : vector<8x512xf32>
    %c479_i32 = arith.constant 479 : i32
    %325 = tpu.dynamic_rotate %1 by %c479_i32 dim 1 : vector<8x512xf32>, i32 -> vector<8x512xf32>
    %cst_172 = arith.constant 0.000000e+00 : f32
    %326 = vector.broadcast %cst_172 : f32 to vector<8x512xf32>
    %327 = arith.maximumf %325, %326 : vector<8x512xf32>
    %c41 = arith.constant 41 : index
    %c0_173 = arith.constant 0 : index
    %c0_174 = arith.constant 0 : index
    %328 = vector.load %arg2[%c41, %c0_173, %c0_174] : memref<102x8x512xf32, #tpu.memory_space<vmem>>, vector<1x8x512xf32>
    %329 = vector.shape_cast %328 : vector<1x8x512xf32> to vector<8x512xf32>
    %330 = arith.mulf %329, %327 : vector<8x512xf32>
    %331 = arith.addf %316, %330 : vector<8x512xf32>
    %c478_i32 = arith.constant 478 : i32
    %332 = tpu.dynamic_rotate %1 by %c478_i32 dim 1 : vector<8x512xf32>, i32 -> vector<8x512xf32>
    %cst_175 = arith.constant 0.000000e+00 : f32
    %333 = vector.broadcast %cst_175 : f32 to vector<8x512xf32>
    %334 = arith.maximumf %332, %333 : vector<8x512xf32>
    %c42 = arith.constant 42 : index
    %c0_176 = arith.constant 0 : index
    %c0_177 = arith.constant 0 : index
    %335 = vector.load %arg2[%c42, %c0_176, %c0_177] : memref<102x8x512xf32, #tpu.memory_space<vmem>>, vector<1x8x512xf32>
    %336 = vector.shape_cast %335 : vector<1x8x512xf32> to vector<8x512xf32>
    %337 = arith.mulf %336, %334 : vector<8x512xf32>
    %338 = arith.addf %331, %337 : vector<8x512xf32>
    %c76 = arith.constant 76 : index
    %c0_178 = arith.constant 0 : index
    %c0_179 = arith.constant 0 : index
    %339 = vector.load %arg2[%c76, %c0_178, %c0_179] : memref<102x8x512xf32, #tpu.memory_space<vmem>>, vector<1x8x512xf32>
    %340 = vector.shape_cast %339 : vector<1x8x512xf32> to vector<8x512xf32>
    %341 = arith.mulf %340, %334 : vector<8x512xf32>
    %342 = arith.addf %320, %341 : vector<8x512xf32>
    %c95 = arith.constant 95 : index
    %c0_180 = arith.constant 0 : index
    %c0_181 = arith.constant 0 : index
    %343 = vector.load %arg2[%c95, %c0_180, %c0_181] : memref<102x8x512xf32, #tpu.memory_space<vmem>>, vector<1x8x512xf32>
    %344 = vector.shape_cast %343 : vector<1x8x512xf32> to vector<8x512xf32>
    %345 = arith.mulf %344, %334 : vector<8x512xf32>
    %346 = arith.addf %324, %345 : vector<8x512xf32>
    %c68_i32 = arith.constant 68 : i32
    %347 = tpu.dynamic_rotate %1 by %c68_i32 dim 1 : vector<8x512xf32>, i32 -> vector<8x512xf32>
    %cst_182 = arith.constant 0.000000e+00 : f32
    %348 = vector.broadcast %cst_182 : f32 to vector<8x512xf32>
    %349 = arith.maximumf %347, %348 : vector<8x512xf32>
    %c77 = arith.constant 77 : index
    %c0_183 = arith.constant 0 : index
    %c0_184 = arith.constant 0 : index
    %350 = vector.load %arg2[%c77, %c0_183, %c0_184] : memref<102x8x512xf32, #tpu.memory_space<vmem>>, vector<1x8x512xf32>
    %351 = vector.shape_cast %350 : vector<1x8x512xf32> to vector<8x512xf32>
    %352 = arith.mulf %351, %349 : vector<8x512xf32>
    %353 = arith.addf %346, %352 : vector<8x512xf32>
    %c66_i32 = arith.constant 66 : i32
    %354 = tpu.dynamic_rotate %1 by %c66_i32 dim 1 : vector<8x512xf32>, i32 -> vector<8x512xf32>
    %cst_185 = arith.constant 0.000000e+00 : f32
    %355 = vector.broadcast %cst_185 : f32 to vector<8x512xf32>
    %356 = arith.maximumf %354, %355 : vector<8x512xf32>
    %c78 = arith.constant 78 : index
    %c0_186 = arith.constant 0 : index
    %c0_187 = arith.constant 0 : index
    %357 = vector.load %arg2[%c78, %c0_186, %c0_187] : memref<102x8x512xf32, #tpu.memory_space<vmem>>, vector<1x8x512xf32>
    %358 = vector.shape_cast %357 : vector<1x8x512xf32> to vector<8x512xf32>
    %359 = arith.mulf %358, %356 : vector<8x512xf32>
    %360 = arith.addf %353, %359 : vector<8x512xf32>
    %c64_i32 = arith.constant 64 : i32
    %361 = tpu.dynamic_rotate %1 by %c64_i32 dim 1 : vector<8x512xf32>, i32 -> vector<8x512xf32>
    %cst_188 = arith.constant 0.000000e+00 : f32
    %362 = vector.broadcast %cst_188 : f32 to vector<8x512xf32>
    %363 = arith.maximumf %361, %362 : vector<8x512xf32>
    %c79 = arith.constant 79 : index
    %c0_189 = arith.constant 0 : index
    %c0_190 = arith.constant 0 : index
    %364 = vector.load %arg2[%c79, %c0_189, %c0_190] : memref<102x8x512xf32, #tpu.memory_space<vmem>>, vector<1x8x512xf32>
    %365 = vector.shape_cast %364 : vector<1x8x512xf32> to vector<8x512xf32>
    %366 = arith.mulf %365, %363 : vector<8x512xf32>
    %367 = arith.addf %360, %366 : vector<8x512xf32>
    %c62_i32 = arith.constant 62 : i32
    %368 = tpu.dynamic_rotate %1 by %c62_i32 dim 1 : vector<8x512xf32>, i32 -> vector<8x512xf32>
    %cst_191 = arith.constant 0.000000e+00 : f32
    %369 = vector.broadcast %cst_191 : f32 to vector<8x512xf32>
    %370 = arith.maximumf %368, %369 : vector<8x512xf32>
    %c80 = arith.constant 80 : index
    %c0_192 = arith.constant 0 : index
    %c0_193 = arith.constant 0 : index
    %371 = vector.load %arg2[%c80, %c0_192, %c0_193] : memref<102x8x512xf32, #tpu.memory_space<vmem>>, vector<1x8x512xf32>
    %372 = vector.shape_cast %371 : vector<1x8x512xf32> to vector<8x512xf32>
    %373 = arith.mulf %372, %370 : vector<8x512xf32>
    %374 = arith.addf %367, %373 : vector<8x512xf32>
    %c60_i32 = arith.constant 60 : i32
    %375 = tpu.dynamic_rotate %1 by %c60_i32 dim 1 : vector<8x512xf32>, i32 -> vector<8x512xf32>
    %cst_194 = arith.constant 0.000000e+00 : f32
    %376 = vector.broadcast %cst_194 : f32 to vector<8x512xf32>
    %377 = arith.maximumf %375, %376 : vector<8x512xf32>
    %c81 = arith.constant 81 : index
    %c0_195 = arith.constant 0 : index
    %c0_196 = arith.constant 0 : index
    %378 = vector.load %arg2[%c81, %c0_195, %c0_196] : memref<102x8x512xf32, #tpu.memory_space<vmem>>, vector<1x8x512xf32>
    %379 = vector.shape_cast %378 : vector<1x8x512xf32> to vector<8x512xf32>
    %380 = arith.mulf %379, %377 : vector<8x512xf32>
    %381 = arith.addf %374, %380 : vector<8x512xf32>
    %c36_i32 = arith.constant 36 : i32
    %382 = tpu.dynamic_rotate %1 by %c36_i32 dim 1 : vector<8x512xf32>, i32 -> vector<8x512xf32>
    %cst_197 = arith.constant 0.000000e+00 : f32
    %383 = vector.broadcast %cst_197 : f32 to vector<8x512xf32>
    %384 = arith.maximumf %382, %383 : vector<8x512xf32>
    %c82 = arith.constant 82 : index
    %c0_198 = arith.constant 0 : index
    %c0_199 = arith.constant 0 : index
    %385 = vector.load %arg2[%c82, %c0_198, %c0_199] : memref<102x8x512xf32, #tpu.memory_space<vmem>>, vector<1x8x512xf32>
    %386 = vector.shape_cast %385 : vector<1x8x512xf32> to vector<8x512xf32>
    %387 = arith.mulf %386, %384 : vector<8x512xf32>
    %388 = arith.addf %381, %387 : vector<8x512xf32>
    %c28_i32 = arith.constant 28 : i32
    %389 = tpu.dynamic_rotate %1 by %c28_i32 dim 1 : vector<8x512xf32>, i32 -> vector<8x512xf32>
    %cst_200 = arith.constant 0.000000e+00 : f32
    %390 = vector.broadcast %cst_200 : f32 to vector<8x512xf32>
    %391 = arith.maximumf %389, %390 : vector<8x512xf32>
    %c86 = arith.constant 86 : index
    %c0_201 = arith.constant 0 : index
    %c0_202 = arith.constant 0 : index
    %392 = vector.load %arg2[%c86, %c0_201, %c0_202] : memref<102x8x512xf32, #tpu.memory_space<vmem>>, vector<1x8x512xf32>
    %393 = vector.shape_cast %392 : vector<1x8x512xf32> to vector<8x512xf32>
    %394 = arith.mulf %393, %391 : vector<8x512xf32>
    %395 = arith.addf %388, %394 : vector<8x512xf32>
    %c4_i32 = arith.constant 4 : i32
    %396 = tpu.dynamic_rotate %1 by %c4_i32 dim 1 : vector<8x512xf32>, i32 -> vector<8x512xf32>
    %cst_203 = arith.constant 0.000000e+00 : f32
    %397 = vector.broadcast %cst_203 : f32 to vector<8x512xf32>
    %398 = arith.maximumf %396, %397 : vector<8x512xf32>
    %c87 = arith.constant 87 : index
    %c0_204 = arith.constant 0 : index
    %c0_205 = arith.constant 0 : index
    %399 = vector.load %arg2[%c87, %c0_204, %c0_205] : memref<102x8x512xf32, #tpu.memory_space<vmem>>, vector<1x8x512xf32>
    %400 = vector.shape_cast %399 : vector<1x8x512xf32> to vector<8x512xf32>
    %401 = arith.mulf %400, %398 : vector<8x512xf32>
    %402 = arith.addf %395, %401 : vector<8x512xf32>
    %c508_i32 = arith.constant 508 : i32
    %403 = tpu.dynamic_rotate %1 by %c508_i32 dim 1 : vector<8x512xf32>, i32 -> vector<8x512xf32>
    %cst_206 = arith.constant 0.000000e+00 : f32
    %404 = vector.broadcast %cst_206 : f32 to vector<8x512xf32>
    %405 = arith.maximumf %403, %404 : vector<8x512xf32>
    %c91 = arith.constant 91 : index
    %c0_207 = arith.constant 0 : index
    %c0_208 = arith.constant 0 : index
    %406 = vector.load %arg2[%c91, %c0_207, %c0_208] : memref<102x8x512xf32, #tpu.memory_space<vmem>>, vector<1x8x512xf32>
    %407 = vector.shape_cast %406 : vector<1x8x512xf32> to vector<8x512xf32>
    %408 = arith.mulf %407, %405 : vector<8x512xf32>
    %409 = arith.addf %402, %408 : vector<8x512xf32>
    %c484_i32 = arith.constant 484 : i32
    %410 = tpu.dynamic_rotate %1 by %c484_i32 dim 1 : vector<8x512xf32>, i32 -> vector<8x512xf32>
    %cst_209 = arith.constant 0.000000e+00 : f32
    %411 = vector.broadcast %cst_209 : f32 to vector<8x512xf32>
    %412 = arith.maximumf %410, %411 : vector<8x512xf32>
    %c92 = arith.constant 92 : index
    %c0_210 = arith.constant 0 : index
    %c0_211 = arith.constant 0 : index
    %413 = vector.load %arg2[%c92, %c0_210, %c0_211] : memref<102x8x512xf32, #tpu.memory_space<vmem>>, vector<1x8x512xf32>
    %414 = vector.shape_cast %413 : vector<1x8x512xf32> to vector<8x512xf32>
    %415 = arith.mulf %414, %412 : vector<8x512xf32>
    %416 = arith.addf %409, %415 : vector<8x512xf32>
    %c476_i32 = arith.constant 476 : i32
    %417 = tpu.dynamic_rotate %1 by %c476_i32 dim 1 : vector<8x512xf32>, i32 -> vector<8x512xf32>
    %cst_212 = arith.constant 0.000000e+00 : f32
    %418 = vector.broadcast %cst_212 : f32 to vector<8x512xf32>
    %419 = arith.maximumf %417, %418 : vector<8x512xf32>
    %c96 = arith.constant 96 : index
    %c0_213 = arith.constant 0 : index
    %c0_214 = arith.constant 0 : index
    %420 = vector.load %arg2[%c96, %c0_213, %c0_214] : memref<102x8x512xf32, #tpu.memory_space<vmem>>, vector<1x8x512xf32>
    %421 = vector.shape_cast %420 : vector<1x8x512xf32> to vector<8x512xf32>
    %422 = arith.mulf %421, %419 : vector<8x512xf32>
    %423 = arith.addf %416, %422 : vector<8x512xf32>
    %c452_i32 = arith.constant 452 : i32
    %424 = tpu.dynamic_rotate %1 by %c452_i32 dim 1 : vector<8x512xf32>, i32 -> vector<8x512xf32>
    %cst_215 = arith.constant 0.000000e+00 : f32
    %425 = vector.broadcast %cst_215 : f32 to vector<8x512xf32>
    %426 = arith.maximumf %424, %425 : vector<8x512xf32>
    %c97 = arith.constant 97 : index
    %c0_216 = arith.constant 0 : index
    %c0_217 = arith.constant 0 : index
    %427 = vector.load %arg2[%c97, %c0_216, %c0_217] : memref<102x8x512xf32, #tpu.memory_space<vmem>>, vector<1x8x512xf32>
    %428 = vector.shape_cast %427 : vector<1x8x512xf32> to vector<8x512xf32>
    %429 = arith.mulf %428, %426 : vector<8x512xf32>
    %430 = arith.addf %423, %429 : vector<8x512xf32>
    %c450_i32 = arith.constant 450 : i32
    %431 = tpu.dynamic_rotate %1 by %c450_i32 dim 1 : vector<8x512xf32>, i32 -> vector<8x512xf32>
    %cst_218 = arith.constant 0.000000e+00 : f32
    %432 = vector.broadcast %cst_218 : f32 to vector<8x512xf32>
    %433 = arith.maximumf %431, %432 : vector<8x512xf32>
    %c98 = arith.constant 98 : index
    %c0_219 = arith.constant 0 : index
    %c0_220 = arith.constant 0 : index
    %434 = vector.load %arg2[%c98, %c0_219, %c0_220] : memref<102x8x512xf32, #tpu.memory_space<vmem>>, vector<1x8x512xf32>
    %435 = vector.shape_cast %434 : vector<1x8x512xf32> to vector<8x512xf32>
    %436 = arith.mulf %435, %433 : vector<8x512xf32>
    %437 = arith.addf %430, %436 : vector<8x512xf32>
    %c448_i32 = arith.constant 448 : i32
    %438 = tpu.dynamic_rotate %1 by %c448_i32 dim 1 : vector<8x512xf32>, i32 -> vector<8x512xf32>
    %cst_221 = arith.constant 0.000000e+00 : f32
    %439 = vector.broadcast %cst_221 : f32 to vector<8x512xf32>
    %440 = arith.maximumf %438, %439 : vector<8x512xf32>
    %c99 = arith.constant 99 : index
    %c0_222 = arith.constant 0 : index
    %c0_223 = arith.constant 0 : index
    %441 = vector.load %arg2[%c99, %c0_222, %c0_223] : memref<102x8x512xf32, #tpu.memory_space<vmem>>, vector<1x8x512xf32>
    %442 = vector.shape_cast %441 : vector<1x8x512xf32> to vector<8x512xf32>
    %443 = arith.mulf %442, %440 : vector<8x512xf32>
    %444 = arith.addf %437, %443 : vector<8x512xf32>
    %c446_i32 = arith.constant 446 : i32
    %445 = tpu.dynamic_rotate %1 by %c446_i32 dim 1 : vector<8x512xf32>, i32 -> vector<8x512xf32>
    %cst_224 = arith.constant 0.000000e+00 : f32
    %446 = vector.broadcast %cst_224 : f32 to vector<8x512xf32>
    %447 = arith.maximumf %445, %446 : vector<8x512xf32>
    %c100 = arith.constant 100 : index
    %c0_225 = arith.constant 0 : index
    %c0_226 = arith.constant 0 : index
    %448 = vector.load %arg2[%c100, %c0_225, %c0_226] : memref<102x8x512xf32, #tpu.memory_space<vmem>>, vector<1x8x512xf32>
    %449 = vector.shape_cast %448 : vector<1x8x512xf32> to vector<8x512xf32>
    %450 = arith.mulf %449, %447 : vector<8x512xf32>
    %451 = arith.addf %444, %450 : vector<8x512xf32>
    %c444_i32 = arith.constant 444 : i32
    %452 = tpu.dynamic_rotate %1 by %c444_i32 dim 1 : vector<8x512xf32>, i32 -> vector<8x512xf32>
    %cst_227 = arith.constant 0.000000e+00 : f32
    %453 = vector.broadcast %cst_227 : f32 to vector<8x512xf32>
    %454 = arith.maximumf %452, %453 : vector<8x512xf32>
    %c101 = arith.constant 101 : index
    %c0_228 = arith.constant 0 : index
    %c0_229 = arith.constant 0 : index
    %455 = vector.load %arg2[%c101, %c0_228, %c0_229] : memref<102x8x512xf32, #tpu.memory_space<vmem>>, vector<1x8x512xf32>
    %456 = vector.shape_cast %455 : vector<1x8x512xf32> to vector<8x512xf32>
    %457 = arith.mulf %456, %454 : vector<8x512xf32>
    %458 = arith.addf %451, %457 : vector<8x512xf32>
    %c0_230 = arith.constant 0 : index
    %c0_231 = arith.constant 0 : index
    %c0_232 = arith.constant 0 : index
    %459 = vector.load %arg3[%c0_230, %c0_231, %c0_232] : memref<6x8x8xf32, #tpu.memory_space<vmem>>, vector<1x8x8xf32>
    %460 = vector.shape_cast %459 : vector<1x8x8xf32> to vector<8x8xf32>
    %cst_233 = arith.constant dense<0.000000e+00> : vector<8x512xf32>
    %461 = tpu.matmul %460, %276, %cst_233 {dimension_numbers = #tpu.dot_dimension_numbers<[1], [0], [0], [1], [0, 0, 1, 1], [], []>} : vector<8x8xf32>, vector<8x512xf32>, vector<8x512xf32> -> vector<8x512xf32>
    %cst_234 = arith.constant 0.000000e+00 : f32
    %462 = vector.broadcast %cst_234 : f32 to vector<8x512xf32>
    %463 = arith.maximumf %461, %462 : vector<8x512xf32>
    %c2_235 = arith.constant 2 : index
    %c0_236 = arith.constant 0 : index
    %c0_237 = arith.constant 0 : index
    %464 = vector.load %arg3[%c2_235, %c0_236, %c0_237] : memref<6x8x8xf32, #tpu.memory_space<vmem>>, vector<1x8x8xf32>
    %465 = vector.shape_cast %464 : vector<1x8x8xf32> to vector<8x8xf32>
    %cst_238 = arith.constant dense<0.000000e+00> : vector<8x512xf32>
    %466 = tpu.matmul %465, %338, %cst_238 {dimension_numbers = #tpu.dot_dimension_numbers<[1], [0], [0], [1], [0, 0, 1, 1], [], []>} : vector<8x8xf32>, vector<8x512xf32>, vector<8x512xf32> -> vector<8x512xf32>
    %cst_239 = arith.constant 0.000000e+00 : f32
    %467 = vector.broadcast %cst_239 : f32 to vector<8x512xf32>
    %468 = arith.maximumf %466, %467 : vector<8x512xf32>
    %c17_i32_240 = arith.constant 17 : i32
    %469 = tpu.dynamic_rotate %463 by %c17_i32_240 dim 1 : vector<8x512xf32>, i32 -> vector<8x512xf32>
    %c9 = arith.constant 9 : index
    %c0_241 = arith.constant 0 : index
    %c0_242 = arith.constant 0 : index
    %470 = vector.load %arg2[%c9, %c0_241, %c0_242] : memref<102x8x512xf32, #tpu.memory_space<vmem>>, vector<1x8x512xf32>
    %471 = vector.shape_cast %470 : vector<1x8x512xf32> to vector<8x512xf32>
    %472 = arith.mulf %471, %469 : vector<8x512xf32>
    %c16_i32_243 = arith.constant 16 : i32
    %473 = tpu.dynamic_rotate %463 by %c16_i32_243 dim 1 : vector<8x512xf32>, i32 -> vector<8x512xf32>
    %c10 = arith.constant 10 : index
    %c0_244 = arith.constant 0 : index
    %c0_245 = arith.constant 0 : index
    %474 = vector.load %arg2[%c10, %c0_244, %c0_245] : memref<102x8x512xf32, #tpu.memory_space<vmem>>, vector<1x8x512xf32>
    %475 = vector.shape_cast %474 : vector<1x8x512xf32> to vector<8x512xf32>
    %476 = arith.mulf %475, %473 : vector<8x512xf32>
    %477 = arith.addf %472, %476 : vector<8x512xf32>
    %c15_i32_246 = arith.constant 15 : i32
    %478 = tpu.dynamic_rotate %463 by %c15_i32_246 dim 1 : vector<8x512xf32>, i32 -> vector<8x512xf32>
    %c11 = arith.constant 11 : index
    %c0_247 = arith.constant 0 : index
    %c0_248 = arith.constant 0 : index
    %479 = vector.load %arg2[%c11, %c0_247, %c0_248] : memref<102x8x512xf32, #tpu.memory_space<vmem>>, vector<1x8x512xf32>
    %480 = vector.shape_cast %479 : vector<1x8x512xf32> to vector<8x512xf32>
    %481 = arith.mulf %480, %478 : vector<8x512xf32>
    %482 = arith.addf %477, %481 : vector<8x512xf32>
    %c1_i32_249 = arith.constant 1 : i32
    %483 = tpu.dynamic_rotate %463 by %c1_i32_249 dim 1 : vector<8x512xf32>, i32 -> vector<8x512xf32>
    %c12 = arith.constant 12 : index
    %c0_250 = arith.constant 0 : index
    %c0_251 = arith.constant 0 : index
    %484 = vector.load %arg2[%c12, %c0_250, %c0_251] : memref<102x8x512xf32, #tpu.memory_space<vmem>>, vector<1x8x512xf32>
    %485 = vector.shape_cast %484 : vector<1x8x512xf32> to vector<8x512xf32>
    %486 = arith.mulf %485, %483 : vector<8x512xf32>
    %487 = arith.addf %482, %486 : vector<8x512xf32>
    %c13 = arith.constant 13 : index
    %c0_252 = arith.constant 0 : index
    %c0_253 = arith.constant 0 : index
    %488 = vector.load %arg2[%c13, %c0_252, %c0_253] : memref<102x8x512xf32, #tpu.memory_space<vmem>>, vector<1x8x512xf32>
    %489 = vector.shape_cast %488 : vector<1x8x512xf32> to vector<8x512xf32>
    %490 = arith.mulf %489, %463 : vector<8x512xf32>
    %491 = arith.addf %487, %490 : vector<8x512xf32>
    %c511_i32_254 = arith.constant 511 : i32
    %492 = tpu.dynamic_rotate %463 by %c511_i32_254 dim 1 : vector<8x512xf32>, i32 -> vector<8x512xf32>
    %c14 = arith.constant 14 : index
    %c0_255 = arith.constant 0 : index
    %c0_256 = arith.constant 0 : index
    %493 = vector.load %arg2[%c14, %c0_255, %c0_256] : memref<102x8x512xf32, #tpu.memory_space<vmem>>, vector<1x8x512xf32>
    %494 = vector.shape_cast %493 : vector<1x8x512xf32> to vector<8x512xf32>
    %495 = arith.mulf %494, %492 : vector<8x512xf32>
    %496 = arith.addf %491, %495 : vector<8x512xf32>
    %c497_i32_257 = arith.constant 497 : i32
    %497 = tpu.dynamic_rotate %463 by %c497_i32_257 dim 1 : vector<8x512xf32>, i32 -> vector<8x512xf32>
    %c15 = arith.constant 15 : index
    %c0_258 = arith.constant 0 : index
    %c0_259 = arith.constant 0 : index
    %498 = vector.load %arg2[%c15, %c0_258, %c0_259] : memref<102x8x512xf32, #tpu.memory_space<vmem>>, vector<1x8x512xf32>
    %499 = vector.shape_cast %498 : vector<1x8x512xf32> to vector<8x512xf32>
    %500 = arith.mulf %499, %497 : vector<8x512xf32>
    %501 = arith.addf %496, %500 : vector<8x512xf32>
    %c496_i32_260 = arith.constant 496 : i32
    %502 = tpu.dynamic_rotate %463 by %c496_i32_260 dim 1 : vector<8x512xf32>, i32 -> vector<8x512xf32>
    %c16 = arith.constant 16 : index
    %c0_261 = arith.constant 0 : index
    %c0_262 = arith.constant 0 : index
    %503 = vector.load %arg2[%c16, %c0_261, %c0_262] : memref<102x8x512xf32, #tpu.memory_space<vmem>>, vector<1x8x512xf32>
    %504 = vector.shape_cast %503 : vector<1x8x512xf32> to vector<8x512xf32>
    %505 = arith.mulf %504, %502 : vector<8x512xf32>
    %506 = arith.addf %501, %505 : vector<8x512xf32>
    %c495_i32_263 = arith.constant 495 : i32
    %507 = tpu.dynamic_rotate %463 by %c495_i32_263 dim 1 : vector<8x512xf32>, i32 -> vector<8x512xf32>
    %c17 = arith.constant 17 : index
    %c0_264 = arith.constant 0 : index
    %c0_265 = arith.constant 0 : index
    %508 = vector.load %arg2[%c17, %c0_264, %c0_265] : memref<102x8x512xf32, #tpu.memory_space<vmem>>, vector<1x8x512xf32>
    %509 = vector.shape_cast %508 : vector<1x8x512xf32> to vector<8x512xf32>
    %510 = arith.mulf %509, %507 : vector<8x512xf32>
    %511 = arith.addf %506, %510 : vector<8x512xf32>
    %c34_i32_266 = arith.constant 34 : i32
    %512 = tpu.dynamic_rotate %468 by %c34_i32_266 dim 1 : vector<8x512xf32>, i32 -> vector<8x512xf32>
    %c43 = arith.constant 43 : index
    %c0_267 = arith.constant 0 : index
    %c0_268 = arith.constant 0 : index
    %513 = vector.load %arg2[%c43, %c0_267, %c0_268] : memref<102x8x512xf32, #tpu.memory_space<vmem>>, vector<1x8x512xf32>
    %514 = vector.shape_cast %513 : vector<1x8x512xf32> to vector<8x512xf32>
    %515 = arith.mulf %514, %512 : vector<8x512xf32>
    %c33_i32_269 = arith.constant 33 : i32
    %516 = tpu.dynamic_rotate %468 by %c33_i32_269 dim 1 : vector<8x512xf32>, i32 -> vector<8x512xf32>
    %c44 = arith.constant 44 : index
    %c0_270 = arith.constant 0 : index
    %c0_271 = arith.constant 0 : index
    %517 = vector.load %arg2[%c44, %c0_270, %c0_271] : memref<102x8x512xf32, #tpu.memory_space<vmem>>, vector<1x8x512xf32>
    %518 = vector.shape_cast %517 : vector<1x8x512xf32> to vector<8x512xf32>
    %519 = arith.mulf %518, %516 : vector<8x512xf32>
    %520 = arith.addf %515, %519 : vector<8x512xf32>
    %c32_i32_272 = arith.constant 32 : i32
    %521 = tpu.dynamic_rotate %468 by %c32_i32_272 dim 1 : vector<8x512xf32>, i32 -> vector<8x512xf32>
    %c45 = arith.constant 45 : index
    %c0_273 = arith.constant 0 : index
    %c0_274 = arith.constant 0 : index
    %522 = vector.load %arg2[%c45, %c0_273, %c0_274] : memref<102x8x512xf32, #tpu.memory_space<vmem>>, vector<1x8x512xf32>
    %523 = vector.shape_cast %522 : vector<1x8x512xf32> to vector<8x512xf32>
    %524 = arith.mulf %523, %521 : vector<8x512xf32>
    %525 = arith.addf %520, %524 : vector<8x512xf32>
    %c31_i32_275 = arith.constant 31 : i32
    %526 = tpu.dynamic_rotate %468 by %c31_i32_275 dim 1 : vector<8x512xf32>, i32 -> vector<8x512xf32>
    %c46 = arith.constant 46 : index
    %c0_276 = arith.constant 0 : index
    %c0_277 = arith.constant 0 : index
    %527 = vector.load %arg2[%c46, %c0_276, %c0_277] : memref<102x8x512xf32, #tpu.memory_space<vmem>>, vector<1x8x512xf32>
    %528 = vector.shape_cast %527 : vector<1x8x512xf32> to vector<8x512xf32>
    %529 = arith.mulf %528, %526 : vector<8x512xf32>
    %530 = arith.addf %525, %529 : vector<8x512xf32>
    %c30_i32_278 = arith.constant 30 : i32
    %531 = tpu.dynamic_rotate %468 by %c30_i32_278 dim 1 : vector<8x512xf32>, i32 -> vector<8x512xf32>
    %c47 = arith.constant 47 : index
    %c0_279 = arith.constant 0 : index
    %c0_280 = arith.constant 0 : index
    %532 = vector.load %arg2[%c47, %c0_279, %c0_280] : memref<102x8x512xf32, #tpu.memory_space<vmem>>, vector<1x8x512xf32>
    %533 = vector.shape_cast %532 : vector<1x8x512xf32> to vector<8x512xf32>
    %534 = arith.mulf %533, %531 : vector<8x512xf32>
    %535 = arith.addf %530, %534 : vector<8x512xf32>
    %c18_i32_281 = arith.constant 18 : i32
    %536 = tpu.dynamic_rotate %468 by %c18_i32_281 dim 1 : vector<8x512xf32>, i32 -> vector<8x512xf32>
    %c48 = arith.constant 48 : index
    %c0_282 = arith.constant 0 : index
    %c0_283 = arith.constant 0 : index
    %537 = vector.load %arg2[%c48, %c0_282, %c0_283] : memref<102x8x512xf32, #tpu.memory_space<vmem>>, vector<1x8x512xf32>
    %538 = vector.shape_cast %537 : vector<1x8x512xf32> to vector<8x512xf32>
    %539 = arith.mulf %538, %536 : vector<8x512xf32>
    %540 = arith.addf %535, %539 : vector<8x512xf32>
    %c17_i32_284 = arith.constant 17 : i32
    %541 = tpu.dynamic_rotate %468 by %c17_i32_284 dim 1 : vector<8x512xf32>, i32 -> vector<8x512xf32>
    %c49 = arith.constant 49 : index
    %c0_285 = arith.constant 0 : index
    %c0_286 = arith.constant 0 : index
    %542 = vector.load %arg2[%c49, %c0_285, %c0_286] : memref<102x8x512xf32, #tpu.memory_space<vmem>>, vector<1x8x512xf32>
    %543 = vector.shape_cast %542 : vector<1x8x512xf32> to vector<8x512xf32>
    %544 = arith.mulf %543, %541 : vector<8x512xf32>
    %545 = arith.addf %540, %544 : vector<8x512xf32>
    %c16_i32_287 = arith.constant 16 : i32
    %546 = tpu.dynamic_rotate %468 by %c16_i32_287 dim 1 : vector<8x512xf32>, i32 -> vector<8x512xf32>
    %c50 = arith.constant 50 : index
    %c0_288 = arith.constant 0 : index
    %c0_289 = arith.constant 0 : index
    %547 = vector.load %arg2[%c50, %c0_288, %c0_289] : memref<102x8x512xf32, #tpu.memory_space<vmem>>, vector<1x8x512xf32>
    %548 = vector.shape_cast %547 : vector<1x8x512xf32> to vector<8x512xf32>
    %549 = arith.mulf %548, %546 : vector<8x512xf32>
    %550 = arith.addf %545, %549 : vector<8x512xf32>
    %c15_i32_290 = arith.constant 15 : i32
    %551 = tpu.dynamic_rotate %468 by %c15_i32_290 dim 1 : vector<8x512xf32>, i32 -> vector<8x512xf32>
    %c51 = arith.constant 51 : index
    %c0_291 = arith.constant 0 : index
    %c0_292 = arith.constant 0 : index
    %552 = vector.load %arg2[%c51, %c0_291, %c0_292] : memref<102x8x512xf32, #tpu.memory_space<vmem>>, vector<1x8x512xf32>
    %553 = vector.shape_cast %552 : vector<1x8x512xf32> to vector<8x512xf32>
    %554 = arith.mulf %553, %551 : vector<8x512xf32>
    %555 = arith.addf %550, %554 : vector<8x512xf32>
    %c14_i32_293 = arith.constant 14 : i32
    %556 = tpu.dynamic_rotate %468 by %c14_i32_293 dim 1 : vector<8x512xf32>, i32 -> vector<8x512xf32>
    %c52 = arith.constant 52 : index
    %c0_294 = arith.constant 0 : index
    %c0_295 = arith.constant 0 : index
    %557 = vector.load %arg2[%c52, %c0_294, %c0_295] : memref<102x8x512xf32, #tpu.memory_space<vmem>>, vector<1x8x512xf32>
    %558 = vector.shape_cast %557 : vector<1x8x512xf32> to vector<8x512xf32>
    %559 = arith.mulf %558, %556 : vector<8x512xf32>
    %560 = arith.addf %555, %559 : vector<8x512xf32>
    %c2_i32_296 = arith.constant 2 : i32
    %561 = tpu.dynamic_rotate %468 by %c2_i32_296 dim 1 : vector<8x512xf32>, i32 -> vector<8x512xf32>
    %c53 = arith.constant 53 : index
    %c0_297 = arith.constant 0 : index
    %c0_298 = arith.constant 0 : index
    %562 = vector.load %arg2[%c53, %c0_297, %c0_298] : memref<102x8x512xf32, #tpu.memory_space<vmem>>, vector<1x8x512xf32>
    %563 = vector.shape_cast %562 : vector<1x8x512xf32> to vector<8x512xf32>
    %564 = arith.mulf %563, %561 : vector<8x512xf32>
    %565 = arith.addf %560, %564 : vector<8x512xf32>
    %c1_i32_299 = arith.constant 1 : i32
    %566 = tpu.dynamic_rotate %468 by %c1_i32_299 dim 1 : vector<8x512xf32>, i32 -> vector<8x512xf32>
    %c54 = arith.constant 54 : index
    %c0_300 = arith.constant 0 : index
    %c0_301 = arith.constant 0 : index
    %567 = vector.load %arg2[%c54, %c0_300, %c0_301] : memref<102x8x512xf32, #tpu.memory_space<vmem>>, vector<1x8x512xf32>
    %568 = vector.shape_cast %567 : vector<1x8x512xf32> to vector<8x512xf32>
    %569 = arith.mulf %568, %566 : vector<8x512xf32>
    %570 = arith.addf %565, %569 : vector<8x512xf32>
    %c55 = arith.constant 55 : index
    %c0_302 = arith.constant 0 : index
    %c0_303 = arith.constant 0 : index
    %571 = vector.load %arg2[%c55, %c0_302, %c0_303] : memref<102x8x512xf32, #tpu.memory_space<vmem>>, vector<1x8x512xf32>
    %572 = vector.shape_cast %571 : vector<1x8x512xf32> to vector<8x512xf32>
    %573 = arith.mulf %572, %468 : vector<8x512xf32>
    %574 = arith.addf %570, %573 : vector<8x512xf32>
    %c511_i32_304 = arith.constant 511 : i32
    %575 = tpu.dynamic_rotate %468 by %c511_i32_304 dim 1 : vector<8x512xf32>, i32 -> vector<8x512xf32>
    %c56 = arith.constant 56 : index
    %c0_305 = arith.constant 0 : index
    %c0_306 = arith.constant 0 : index
    %576 = vector.load %arg2[%c56, %c0_305, %c0_306] : memref<102x8x512xf32, #tpu.memory_space<vmem>>, vector<1x8x512xf32>
    %577 = vector.shape_cast %576 : vector<1x8x512xf32> to vector<8x512xf32>
    %578 = arith.mulf %577, %575 : vector<8x512xf32>
    %579 = arith.addf %574, %578 : vector<8x512xf32>
    %c510_i32_307 = arith.constant 510 : i32
    %580 = tpu.dynamic_rotate %468 by %c510_i32_307 dim 1 : vector<8x512xf32>, i32 -> vector<8x512xf32>
    %c57 = arith.constant 57 : index
    %c0_308 = arith.constant 0 : index
    %c0_309 = arith.constant 0 : index
    %581 = vector.load %arg2[%c57, %c0_308, %c0_309] : memref<102x8x512xf32, #tpu.memory_space<vmem>>, vector<1x8x512xf32>
    %582 = vector.shape_cast %581 : vector<1x8x512xf32> to vector<8x512xf32>
    %583 = arith.mulf %582, %580 : vector<8x512xf32>
    %584 = arith.addf %579, %583 : vector<8x512xf32>
    %c498_i32_310 = arith.constant 498 : i32
    %585 = tpu.dynamic_rotate %468 by %c498_i32_310 dim 1 : vector<8x512xf32>, i32 -> vector<8x512xf32>
    %c58 = arith.constant 58 : index
    %c0_311 = arith.constant 0 : index
    %c0_312 = arith.constant 0 : index
    %586 = vector.load %arg2[%c58, %c0_311, %c0_312] : memref<102x8x512xf32, #tpu.memory_space<vmem>>, vector<1x8x512xf32>
    %587 = vector.shape_cast %586 : vector<1x8x512xf32> to vector<8x512xf32>
    %588 = arith.mulf %587, %585 : vector<8x512xf32>
    %589 = arith.addf %584, %588 : vector<8x512xf32>
    %c497_i32_313 = arith.constant 497 : i32
    %590 = tpu.dynamic_rotate %468 by %c497_i32_313 dim 1 : vector<8x512xf32>, i32 -> vector<8x512xf32>
    %c59 = arith.constant 59 : index
    %c0_314 = arith.constant 0 : index
    %c0_315 = arith.constant 0 : index
    %591 = vector.load %arg2[%c59, %c0_314, %c0_315] : memref<102x8x512xf32, #tpu.memory_space<vmem>>, vector<1x8x512xf32>
    %592 = vector.shape_cast %591 : vector<1x8x512xf32> to vector<8x512xf32>
    %593 = arith.mulf %592, %590 : vector<8x512xf32>
    %594 = arith.addf %589, %593 : vector<8x512xf32>
    %c496_i32_316 = arith.constant 496 : i32
    %595 = tpu.dynamic_rotate %468 by %c496_i32_316 dim 1 : vector<8x512xf32>, i32 -> vector<8x512xf32>
    %c60 = arith.constant 60 : index
    %c0_317 = arith.constant 0 : index
    %c0_318 = arith.constant 0 : index
    %596 = vector.load %arg2[%c60, %c0_317, %c0_318] : memref<102x8x512xf32, #tpu.memory_space<vmem>>, vector<1x8x512xf32>
    %597 = vector.shape_cast %596 : vector<1x8x512xf32> to vector<8x512xf32>
    %598 = arith.mulf %597, %595 : vector<8x512xf32>
    %599 = arith.addf %594, %598 : vector<8x512xf32>
    %c495_i32_319 = arith.constant 495 : i32
    %600 = tpu.dynamic_rotate %468 by %c495_i32_319 dim 1 : vector<8x512xf32>, i32 -> vector<8x512xf32>
    %c61 = arith.constant 61 : index
    %c0_320 = arith.constant 0 : index
    %c0_321 = arith.constant 0 : index
    %601 = vector.load %arg2[%c61, %c0_320, %c0_321] : memref<102x8x512xf32, #tpu.memory_space<vmem>>, vector<1x8x512xf32>
    %602 = vector.shape_cast %601 : vector<1x8x512xf32> to vector<8x512xf32>
    %603 = arith.mulf %602, %600 : vector<8x512xf32>
    %604 = arith.addf %599, %603 : vector<8x512xf32>
    %c494_i32_322 = arith.constant 494 : i32
    %605 = tpu.dynamic_rotate %468 by %c494_i32_322 dim 1 : vector<8x512xf32>, i32 -> vector<8x512xf32>
    %c62 = arith.constant 62 : index
    %c0_323 = arith.constant 0 : index
    %c0_324 = arith.constant 0 : index
    %606 = vector.load %arg2[%c62, %c0_323, %c0_324] : memref<102x8x512xf32, #tpu.memory_space<vmem>>, vector<1x8x512xf32>
    %607 = vector.shape_cast %606 : vector<1x8x512xf32> to vector<8x512xf32>
    %608 = arith.mulf %607, %605 : vector<8x512xf32>
    %609 = arith.addf %604, %608 : vector<8x512xf32>
    %c482_i32_325 = arith.constant 482 : i32
    %610 = tpu.dynamic_rotate %468 by %c482_i32_325 dim 1 : vector<8x512xf32>, i32 -> vector<8x512xf32>
    %c63 = arith.constant 63 : index
    %c0_326 = arith.constant 0 : index
    %c0_327 = arith.constant 0 : index
    %611 = vector.load %arg2[%c63, %c0_326, %c0_327] : memref<102x8x512xf32, #tpu.memory_space<vmem>>, vector<1x8x512xf32>
    %612 = vector.shape_cast %611 : vector<1x8x512xf32> to vector<8x512xf32>
    %613 = arith.mulf %612, %610 : vector<8x512xf32>
    %614 = arith.addf %609, %613 : vector<8x512xf32>
    %c481_i32_328 = arith.constant 481 : i32
    %615 = tpu.dynamic_rotate %468 by %c481_i32_328 dim 1 : vector<8x512xf32>, i32 -> vector<8x512xf32>
    %c64 = arith.constant 64 : index
    %c0_329 = arith.constant 0 : index
    %c0_330 = arith.constant 0 : index
    %616 = vector.load %arg2[%c64, %c0_329, %c0_330] : memref<102x8x512xf32, #tpu.memory_space<vmem>>, vector<1x8x512xf32>
    %617 = vector.shape_cast %616 : vector<1x8x512xf32> to vector<8x512xf32>
    %618 = arith.mulf %617, %615 : vector<8x512xf32>
    %619 = arith.addf %614, %618 : vector<8x512xf32>
    %c480_i32_331 = arith.constant 480 : i32
    %620 = tpu.dynamic_rotate %468 by %c480_i32_331 dim 1 : vector<8x512xf32>, i32 -> vector<8x512xf32>
    %c65 = arith.constant 65 : index
    %c0_332 = arith.constant 0 : index
    %c0_333 = arith.constant 0 : index
    %621 = vector.load %arg2[%c65, %c0_332, %c0_333] : memref<102x8x512xf32, #tpu.memory_space<vmem>>, vector<1x8x512xf32>
    %622 = vector.shape_cast %621 : vector<1x8x512xf32> to vector<8x512xf32>
    %623 = arith.mulf %622, %620 : vector<8x512xf32>
    %624 = arith.addf %619, %623 : vector<8x512xf32>
    %c479_i32_334 = arith.constant 479 : i32
    %625 = tpu.dynamic_rotate %468 by %c479_i32_334 dim 1 : vector<8x512xf32>, i32 -> vector<8x512xf32>
    %c66 = arith.constant 66 : index
    %c0_335 = arith.constant 0 : index
    %c0_336 = arith.constant 0 : index
    %626 = vector.load %arg2[%c66, %c0_335, %c0_336] : memref<102x8x512xf32, #tpu.memory_space<vmem>>, vector<1x8x512xf32>
    %627 = vector.shape_cast %626 : vector<1x8x512xf32> to vector<8x512xf32>
    %628 = arith.mulf %627, %625 : vector<8x512xf32>
    %629 = arith.addf %624, %628 : vector<8x512xf32>
    %c478_i32_337 = arith.constant 478 : i32
    %630 = tpu.dynamic_rotate %468 by %c478_i32_337 dim 1 : vector<8x512xf32>, i32 -> vector<8x512xf32>
    %c67 = arith.constant 67 : index
    %c0_338 = arith.constant 0 : index
    %c0_339 = arith.constant 0 : index
    %631 = vector.load %arg2[%c67, %c0_338, %c0_339] : memref<102x8x512xf32, #tpu.memory_space<vmem>>, vector<1x8x512xf32>
    %632 = vector.shape_cast %631 : vector<1x8x512xf32> to vector<8x512xf32>
    %633 = arith.mulf %632, %630 : vector<8x512xf32>
    %634 = arith.addf %629, %633 : vector<8x512xf32>
    %c3_340 = arith.constant 3 : index
    %635 = memref.load %arg1[%c3_340] : memref<8xf32, #tpu.memory_space<smem>>
    %636 = vector.broadcast %635 : f32 to vector<8x512xf32>
    %637 = arith.mulf %636, %1 : vector<8x512xf32>
    %c1_341 = arith.constant 1 : index
    %638 = memref.load %arg1[%c1_341] : memref<8xf32, #tpu.memory_space<smem>>
    %639 = vector.broadcast %638 : f32 to vector<8x512xf32>
    %640 = arith.mulf %639, %270 : vector<8x512xf32>
    %641 = arith.addf %637, %640 : vector<8x512xf32>
    %642 = arith.addf %641, %266 : vector<8x512xf32>
    %c1_342 = arith.constant 1 : index
    %c0_343 = arith.constant 0 : index
    %c0_344 = arith.constant 0 : index
    %643 = vector.load %arg3[%c1_342, %c0_343, %c0_344] : memref<6x8x8xf32, #tpu.memory_space<vmem>>, vector<1x8x8xf32>
    %644 = vector.shape_cast %643 : vector<1x8x8xf32> to vector<8x8xf32>
    %cst_345 = arith.constant dense<0.000000e+00> : vector<8x512xf32>
    %645 = tpu.matmul %644, %511, %cst_345 {dimension_numbers = #tpu.dot_dimension_numbers<[1], [0], [0], [1], [0, 0, 1, 1], [], []>} : vector<8x8xf32>, vector<8x512xf32>, vector<8x512xf32> -> vector<8x512xf32>
    %646 = arith.addf %642, %645 : vector<8x512xf32>
    %c3_346 = arith.constant 3 : index
    %c0_347 = arith.constant 0 : index
    %c0_348 = arith.constant 0 : index
    %647 = vector.load %arg3[%c3_346, %c0_347, %c0_348] : memref<6x8x8xf32, #tpu.memory_space<vmem>>, vector<1x8x8xf32>
    %648 = vector.shape_cast %647 : vector<1x8x8xf32> to vector<8x8xf32>
    %cst_349 = arith.constant dense<0.000000e+00> : vector<8x512xf32>
    %649 = tpu.matmul %648, %634, %cst_349 {dimension_numbers = #tpu.dot_dimension_numbers<[1], [0], [0], [1], [0, 0, 1, 1], [], []>} : vector<8x8xf32>, vector<8x512xf32>, vector<8x512xf32> -> vector<8x512xf32>
    %650 = arith.addf %646, %649 : vector<8x512xf32>
    %c4_350 = arith.constant 4 : index
    %c0_351 = arith.constant 0 : index
    %c0_352 = arith.constant 0 : index
    %651 = vector.load %arg3[%c4_350, %c0_351, %c0_352] : memref<6x8x8xf32, #tpu.memory_space<vmem>>, vector<1x8x8xf32>
    %652 = vector.shape_cast %651 : vector<1x8x8xf32> to vector<8x8xf32>
    %cst_353 = arith.constant dense<0.000000e+00> : vector<8x512xf32>
    %653 = tpu.matmul %652, %342, %cst_353 {dimension_numbers = #tpu.dot_dimension_numbers<[1], [0], [0], [1], [0, 0, 1, 1], [], []>} : vector<8x8xf32>, vector<8x512xf32>, vector<8x512xf32> -> vector<8x512xf32>
    %654 = arith.addf %650, %653 : vector<8x512xf32>
    %c5_354 = arith.constant 5 : index
    %c0_355 = arith.constant 0 : index
    %c0_356 = arith.constant 0 : index
    %655 = vector.load %arg3[%c5_354, %c0_355, %c0_356] : memref<6x8x8xf32, #tpu.memory_space<vmem>>, vector<1x8x8xf32>
    %656 = vector.shape_cast %655 : vector<1x8x8xf32> to vector<8x8xf32>
    %cst_357 = arith.constant dense<0.000000e+00> : vector<8x512xf32>
    %657 = tpu.matmul %656, %458, %cst_357 {dimension_numbers = #tpu.dot_dimension_numbers<[1], [0], [0], [1], [0, 0, 1, 1], [], []>} : vector<8x8xf32>, vector<8x512xf32>, vector<8x512xf32> -> vector<8x512xf32>
    %658 = arith.addf %654, %657 : vector<8x512xf32>
    %c0_358 = arith.constant 0 : index
    %c0_359 = arith.constant 0 : index
    %c0_360 = arith.constant 0 : index
    %659 = vector.load %arg7[%c0_358, %c0_359, %c0_360] : memref<1x8x512xf32, #tpu.memory_space<vmem>>, vector<1x8x512xf32>
    %660 = vector.shape_cast %659 : vector<1x8x512xf32> to vector<8x512xf32>
    %661 = vector.shape_cast %658 : vector<8x512xf32> to vector<1x8x512xf32>
    tpu.vector_store %arg7[%c0_358, %c0_359, %c0_360], %661 {strides = array<i32>} : memref<1x8x512xf32, #tpu.memory_space<vmem>>, vector<1x8x512xf32>,
    return
  }
  func.func @transform_0(%arg0: i32) -> i32 {
    %c0_i32 = arith.constant 0 : i32
    %c0_i32_0 = arith.constant 0 : i32
    return %c0_i32 : i32
  }
  func.func @transform_1(%arg0: i32) -> (i32, i32, i32) {
    %c0_i32 = arith.constant 0 : i32
    %c0_i32_0 = arith.constant 0 : i32
    %c0_i32_1 = arith.constant 0 : i32
    %c0_i32_2 = arith.constant 0 : i32
    return %c0_i32, %c0_i32_0, %c0_i32_1 : i32, i32, i32
  }
  func.func @transform_2(%arg0: i32) -> (i32, i32, i32) {
    %c0_i32 = arith.constant 0 : i32
    %c0_i32_0 = arith.constant 0 : i32
    %c0_i32_1 = arith.constant 0 : i32
    %c0_i32_2 = arith.constant 0 : i32
    return %c0_i32, %c0_i32_0, %c0_i32_1 : i32, i32, i32
  }
  func.func @transform_3(%arg0: i32) -> (i32, i32, i32) {
    %c0_i32 = arith.constant 0 : i32
    %c0_i32_0 = arith.constant 0 : i32
    %c0_i32_1 = arith.constant 0 : i32
    %c0_i32_2 = arith.constant 0 : i32
    return %c0_i32, %c0_i32_0, %c0_i32_1 : i32, i32, i32
  }
  func.func @transform_4(%arg0: i32) -> (i32, i32, i32) {
    %c0_i32 = arith.constant 0 : i32
    %c0_i32_0 = arith.constant 0 : i32
    %c0_i32_1 = arith.constant 0 : i32
    %c0_i32_2 = arith.constant 0 : i32
    return %c0_i32, %c0_i32_0, %c0_i32_1 : i32, i32, i32
  }
  func.func @transform_5(%arg0: i32) -> (i32, i32, i32) {
    %c0_i32 = arith.constant 0 : i32
    %c0_i32_0 = arith.constant 0 : i32
    %c0_i32_1 = arith.constant 0 : i32
    return %arg0, %c0_i32, %c0_i32_0 : i32, i32, i32
  }
  func.func @transform_6(%arg0: i32) -> (i32, i32, i32) {
    %c0_i32 = arith.constant 0 : i32
    %c0_i32_0 = arith.constant 0 : i32
    %c0_i32_1 = arith.constant 0 : i32
    return %arg0, %c0_i32, %c0_i32_0 : i32, i32, i32
  }
}

</mosaic_0001>

<llo_original>
// kernel: tpu_custom_call.1
$region0: #{tpu_custom_call.1}
  #allocation0 [shape = 'u32[]', space=smem, size = 0x4, offset = 0x4, fixed_abs, tag = 'smem constant byte address 0x4 - core index']
  #allocation1 [shape = 'u32[144,128]{1,0:T(1,128)}', space=vmem, size = 0x12000, scoped, tag = 'internal scratch']
  %s0 = inlined_call_operand.hbm [shape: f32[8], index: 0, kind: input, shape index: {}]
  %s1 = inlined_call_operand.hbm [shape: f32[102,8,512], index: 1, kind: input, shape index: {}]
  %s2 = inlined_call_operand.hbm [shape: f32[6,8,8], index: 2, kind: input, shape index: {}]
  %s3 = inlined_call_operand.hbm [shape: f32[9,8,512], index: 3, kind: input, shape index: {}]
  %s4 = inlined_call_operand.hbm [shape: f32[8,8,512], index: 4, kind: input, shape index: {}]
  %s5 = inlined_call_operand.hbm [shape: f32[2,8,512], index: 5, kind: input, shape index: {}]
  %s6 = inlined_call_operand.hbm [shape: f32[2,8,512], index: 6, kind: output, shape index: {}]
  %s7 = sld [smem:[#allocation0]]
  $region81: #{tpu_custom_call.1} parent=0
    _
  %s9 = ssub.s32 1, %s7
  %s10 = scalar_select 0, %s9, %s7
  $region1: #{tpu_custom_call.1} parent=0
    #allocation2 [shape = 'u8[512]{0}', space=smem, size = 0x200, scoped, tag = 'input window, operand 0, single buffered']
    #allocation3 [shape = 's32[2]{0}', space=sflag, size = 0x8, scoped, tag = 'scoped memory for tpu_custom_call.1']
    #allocation4 [shape = 's32[2]{0}', space=sflag, size = 0x8, scoped, tag = 'scoped memory for tpu_custom_call.1']
    #allocation5 [shape = 's32[2]{0}', space=sflag, size = 0x8, scoped, tag = 'scoped memory for tpu_custom_call.1']
    #allocation6 [shape = 'u8[1671168]{0}', space=vmem, size = 0x198000, scoped, tag = 'input window, operand 1, single buffered']
    #allocation7 [shape = 'u8[24576]{0}', space=vmem, size = 0x6000, scoped, tag = 'input window, operand 2, single buffered']
    #allocation8 [shape = 's32[1]{0}', space=sflag, size = 0x4, scoped, tag = 'scoped memory for tpu_custom_call.1']
    #allocation9 [shape = 'u8[147456]{0}', space=vmem, size = 0x24000, scoped, tag = 'input window, operand 3, single buffered']
    #allocation10 [shape = 'u8[131072]{0}', space=vmem, size = 0x20000, scoped, tag = 'input window, operand 4, single buffered']
    #allocation11 [shape = 's32[1]{0}', space=sflag, size = 0x4, scoped, tag = 'scoped memory for tpu_custom_call.1']
    #allocation12 [shape = 'u8[32768]{0}', space=vmem, size = 0x8000, scoped, tag = 'input window, operand 5']
    #allocation13 [shape = 'u8[32768]{0}', space=vmem, size = 0x8000, scoped, tag = 'output window, operand 0']
    %11 = vsyncpa [#allocation5], 0
    %12 = vsyncpa [#allocation3], 0
    %13 = vsyncpa [#allocation8], 0
    %14 = vsyncpa [#allocation11], 0
    %15 = vsyncpa [#allocation4], 0
    %s16 = scalar_lea.sflag [#allocation4], 1
    %17 = vsyncpa %s16, 0
    loop: start=0, step=1, limit=4
    $region2: #{tpu_custom_call.1} parent=1 // loop_pre_header
      _
    $region3: #{tpu_custom_call.1} parent=1 // loop_header
      %s19 = sphi 0, %s23
      %p20 = scmp.ge.s32.totalorder %s19, 4
      %s27 = sphi 0, %s27
      %s29 = sphi 0, %s27
      %s30 = sphi 0, %s29
      %s44 = sphi 0, %s30
      %s48 = sphi 0, %s48
      %s50 = sphi 0, %s48
      %s51 = sphi 0, %s50
      %s65 = sphi 0, %s51
      %s69 = sphi 0, %s69
      %s71 = sphi 0, %s69
      %s72 = sphi 0, %s71
      %s86 = sphi 0, %s72
      %s90 = sphi 0, %s90
      %s92 = sphi 0, %s90
      %s93 = sphi 0, %s92
      %s107 = sphi 0, %s93
      %s111 = sphi 0, %s111
      %s113 = sphi 0, %s111
      %s114 = sphi 0, %s113
      %s128 = sphi 0, %s114
      %s134 = sphi 0, %s136
      %s137 = sphi 0, %s134
      %s138 = sphi 0, %s137
      %s154 = sphi 0, %s138
      %s160 = sphi 0, %s162
      %s163 = sphi 0, %s160
      %s164 = sphi 0, %s163
      %s180 = sphi 0, %s164
    $region4: #{tpu_custom_call.1} parent=1 // loop_header_branch
      %22 = sbr.rel (%p20) target = $region8
    $region5: #{tpu_custom_call.1} parent=1 // loop_body
      %s24 = ssub.s32 %s19, 1
      %s25 = ssub.s32 %s19, 2
      %s26 = sadd.s32 %s19, 1
      %s28 = sadd.s32 %s27, 1
      %p31 = scmp.eq.s32.totalorder %s19, 1
      %p32 = scmp.ne.s32.totalorder %s27, %s29
      %p33 = scmp.eq.s32.totalorder %s19, 0
      %p34 = por %p32, %p33
      %p35 = scmp.ne.s32.totalorder %s27, %s29
      %p36 = scmp.eq.s32.totalorder %s24, 1
      %p37 = por %p35, %p36
      %p38 = scmp.ne.s32.totalorder %s29, %s30
      %p39 = scmp.eq.s32.totalorder %s24, 0
      %p40 = por %p38, %p39
      %p41 = scmp.ne.s32.totalorder %s29, %s30
      %p42 = scmp.eq.s32.totalorder %s25, 1
      %p43 = por %p41, %p42
      %p45 = scmp.ne.s32.totalorder %s30, %s44
      %p46 = scmp.eq.s32.totalorder %s25, 0
      %p47 = por %p45, %p46
      %s49 = sadd.s32 %s48, 1
      %p52 = scmp.eq.s32.totalorder %s19, 1
      %p53 = scmp.ne.s32.totalorder %s48, %s50
      %p54 = scmp.eq.s32.totalorder %s19, 0
      %p55 = por %p53, %p54
      %p56 = scmp.ne.s32.totalorder %s48, %s50
      %p57 = scmp.eq.s32.totalorder %s24, 1
      %p58 = por %p56, %p57
      %p59 = scmp.ne.s32.totalorder %s50, %s51
      %p60 = scmp.eq.s32.totalorder %s24, 0
      %p61 = por %p59, %p60
      %p62 = scmp.ne.s32.totalorder %s50, %s51
      %p63 = scmp.eq.s32.totalorder %s25, 1
      %p64 = por %p62, %p63
      %p66 = scmp.ne.s32.totalorder %s51, %s65
      %p67 = scmp.eq.s32.totalorder %s25, 0
      %p68 = por %p66, %p67
      %s70 = sadd.s32 %s69, 1
      %p73 = scmp.eq.s32.totalorder %s19, 1
      %p74 = scmp.ne.s32.totalorder %s69, %s71
      %p75 = scmp.eq.s32.totalorder %s19, 0
      %p76 = por %p74, %p75
      %p77 = scmp.ne.s32.totalorder %s69, %s71
      %p78 = scmp.eq.s32.totalorder %s24, 1
      %p79 = por %p77, %p78
      %p80 = scmp.ne.s32.totalorder %s71, %s72
      %p81 = scmp.eq.s32.totalorder %s24, 0
      %p82 = por %p80, %p81
      %p83 = scmp.ne.s32.totalorder %s71, %s72
      %p84 = scmp.eq.s32.totalorder %s25, 1
      %p85 = por %p83, %p84
      %p87 = scmp.ne.s32.totalorder %s72, %s86
      %p88 = scmp.eq.s32.totalorder %s25, 0
      %p89 = por %p87, %p88
      %s91 = sadd.s32 %s90, 1
      %p94 = scmp.eq.s32.totalorder %s19, 1
      %p95 = scmp.ne.s32.totalorder %s90, %s92
      %p96 = scmp.eq.s32.totalorder %s19, 0
      %p97 = por %p95, %p96
      %p98 = scmp.ne.s32.totalorder %s90, %s92
      %p99 = scmp.eq.s32.totalorder %s24, 1
      %p100 = por %p98, %p99
      %p101 = scmp.ne.s32.totalorder %s92, %s93
      %p102 = scmp.eq.s32.totalorder %s24, 0
      %p103 = por %p101, %p102
      %p104 = scmp.ne.s32.totalorder %s92, %s93
      %p105 = scmp.eq.s32.totalorder %s25, 1
      %p106 = por %p104, %p105
      %p108 = scmp.ne.s32.totalorder %s93, %s107
      %p109 = scmp.eq.s32.totalorder %s25, 0
      %p110 = por %p108, %p109
      %s112 = sadd.s32 %s111, 1
      %p115 = scmp.eq.s32.totalorder %s19, 1
      %p116 = scmp.ne.s32.totalorder %s111, %s113
      %p117 = scmp.eq.s32.totalorder %s19, 0
      %p118 = por %p116, %p117
      %p119 = scmp.ne.s32.totalorder %s111, %s113
      %p120 = scmp.eq.s32.totalorder %s24, 1
      %p121 = por %p119, %p120
      %p122 = scmp.ne.s32.totalorder %s113, %s114
      %p123 = scmp.eq.s32.totalorder %s24, 0
      %p124 = por %p122, %p123
      %p125 = scmp.ne.s32.totalorder %s113, %s114
      %p126 = scmp.eq.s32.totalorder %s25, 1
      %p127 = por %p125, %p126
      %p129 = scmp.ne.s32.totalorder %s114, %s128
      %p130 = scmp.eq.s32.totalorder %s25, 0
      %p131 = por %p129, %p130
      %s132 = ssub.s32 %s19, %s26
      %p133 = scmp.eq.s32.totalorder %s132, 0
      %s135 = sadd.s32 %s134, 1
      %s136 = scalar_select %p133, %s134, %s135
      %p139 = pneg %p133
      %p140 = scmp.eq.s32.totalorder %s19, 1
      %p141 = por %p139, %p140
      %p142 = scmp.ne.s32.totalorder %s134, %s137
      %p143 = scmp.eq.s32.totalorder %s19, 0
      %p144 = por %p142, %p143
      %p145 = scmp.ne.s32.totalorder %s134, %s137
      %p146 = scmp.eq.s32.totalorder %s24, 1
      %p147 = por %p145, %p146
      %p148 = scmp.ne.s32.totalorder %s137, %s138
      %p149 = scmp.eq.s32.totalorder %s24, 0
      %p150 = por %p148, %p149
      %p151 = scmp.ne.s32.totalorder %s137, %s138
      %p152 = scmp.eq.s32.totalorder %s25, 1
      %p153 = por %p151, %p152
      %p155 = scmp.ne.s32.totalorder %s138, %s154
      %p156 = scmp.eq.s32.totalorder %s25, 0
      %p157 = por %p155, %p156
      %s158 = ssub.s32 %s19, %s26
      %p159 = scmp.eq.s32.totalorder %s158, 0
      %s161 = sadd.s32 %s160, 1
      %s162 = scalar_select %p159, %s160, %s161
      %p165 = pneg %p159
      %p166 = scmp.eq.s32.totalorder %s19, 1
      %p167 = por %p165, %p166
      %p168 = scmp.ne.s32.totalorder %s160, %s163
      %p169 = scmp.eq.s32.totalorder %s19, 0
      %p170 = por %p168, %p169
      %p171 = scmp.ne.s32.totalorder %s160, %s163
      %p172 = scmp.eq.s32.totalorder %s24, 1
      %p173 = por %p171, %p172
      %p174 = scmp.ne.s32.totalorder %s163, %s164
      %p175 = scmp.eq.s32.totalorder %s24, 0
      %p176 = por %p174, %p175
      %p177 = scmp.ne.s32.totalorder %s163, %s164
      %p178 = scmp.eq.s32.totalorder %s25, 1
      %p179 = por %p177, %p178
      %p181 = scmp.ne.s32.totalorder %s164, %s180
      %p182 = scmp.eq.s32.totalorder %s25, 0
      %p183 = por %p181, %p182
      %p184 = scmp.le.s32.totalorder 1, %s19
      %p185 = scmp.lt.s32.totalorder %s19, 3
      %p186 = pnand %p184, %p185
      %p187 = pneg %p186
      // Predicated region
      $region9: #{tpu_custom_call.1} parent=5 // pred_check
        _
      $region10: #{tpu_custom_call.1} parent=5 // pred_check_branch
        %189 = sbr.rel (%p186) target = $region12
      $region11: #{tpu_custom_call.1} parent=5 // pred_region
        %s190 = ssub.s32 %s19, 1
        // Predicated region
        $region13: #{tpu_custom_call.1} parent=11 // pred_check
          %p191 = pneg %p40
        $region14: #{tpu_custom_call.1} parent=11 // pred_check_branch
          %193 = sbr.rel (%p191) target = $region16
        $region15: #{tpu_custom_call.1} parent=11 // pred_region
          %s195 = ssub.s32 16, 16
          %196 = vsyncadd [#allocation5], %s195
          %199 = dma.hbm_to_smem %s0, 16, [#allocation2], [#allocation5]
        $region16: #{tpu_custom_call.1} parent=11 // pred_fallthru
          _
        // Predicated region
        $region17: #{tpu_custom_call.1} parent=11 // pred_check
          %p200 = pneg %p61
        $region18: #{tpu_custom_call.1} parent=11 // pred_check_branch
          %202 = sbr.rel (%p200) target = $region20
        $region19: #{tpu_custom_call.1} parent=11 // pred_region
          %s204 = ssub.s32 52224, 52224
          %205 = vsyncadd [#allocation3], %s204
          %s206 = sshll.u32 [#allocation6], 4
          %s207 = int_to_ptr.vmem [resolvable:$true] %s206
          %212 = dma.hbm_to_vmem [thread:$0]  %s1, 52224, %s207, [#allocation3], 512, 512, 32
        $region20: #{tpu_custom_call.1} parent=11 // pred_fallthru
          _
        // Predicated region
        $region21: #{tpu_custom_call.1} parent=11 // pred_check
          %p213 = pneg %p82
        $region22: #{tpu_custom_call.1} parent=11 // pred_check_branch
          %215 = sbr.rel (%p213) target = $region24
        $region23: #{tpu_custom_call.1} parent=11 // pred_region
          %s217 = ssub.s32 768, 768
          %218 = vsyncadd [#allocation8], %s217
          %s219 = sshll.u32 [#allocation7], 4
          %s220 = int_to_ptr.vmem [resolvable:$true] %s219
          %225 = dma.hbm_to_vmem [thread:$0]  %s2, 768, %s220, [#allocation8], 128, 128, 8
        $region24: #{tpu_custom_call.1} parent=11 // pred_fallthru
          _
        // Predicated region
        $region25: #{tpu_custom_call.1} parent=11 // pred_check
          %p226 = pneg %p103
        $region26: #{tpu_custom_call.1} parent=11 // pred_check_branch
          %228 = sbr.rel (%p226) target = $region28
        $region27: #{tpu_custom_call.1} parent=11 // pred_region
          %s230 = ssub.s32 4608, 4608
          %231 = vsyncadd [#allocation8], %s230
          %s232 = sshll.u32 [#allocation9], 4
          %s233 = int_to_ptr.vmem [resolvable:$true] %s232
          %238 = dma.hbm_to_vmem [thread:$0]  %s3, 4608, %s233, [#allocation8], 512, 512, 32
        $region28: #{tpu_custom_call.1} parent=11 // pred_fallthru
          _
        // Predicated region
        $region29: #{tpu_custom_call.1} parent=11 // pred_check
          %p239 = pneg %p124
        $region30: #{tpu_custom_call.1} parent=11 // pred_check_branch
          %241 = sbr.rel (%p239) target = $region32
        $region31: #{tpu_custom_call.1} parent=11 // pred_region
          %s243 = ssub.s32 4096, 4096
          %244 = vsyncadd [#allocation11], %s243
          %s245 = sshll.u32 [#allocation10], 4
          %s246 = int_to_ptr.vmem [resolvable:$true] %s245
          %251 = dma.hbm_to_vmem [thread:$0]  %s4, 4096, %s246, [#allocation11], 512, 512, 32
        $region32: #{tpu_custom_call.1} parent=11 // pred_fallthru
          _
      $region12: #{tpu_custom_call.1} parent=5 // pred_fallthru
        _
      %p252 = scmp.lt.s32.totalorder %s19, 2
      // Predicated region
      $region33: #{tpu_custom_call.1} parent=5 // pred_check
        %p253 = pneg %p252
      $region34: #{tpu_custom_call.1} parent=5 // pred_check_branch
        %255 = sbr.rel (%p253) target = $region36
      $region35: #{tpu_custom_call.1} parent=5 // pred_region
        // Predicated region
        $region37: #{tpu_custom_call.1} parent=35 // pred_check
          %p256 = pneg %p144
        $region38: #{tpu_custom_call.1} parent=35 // pred_check_branch
          %258 = sbr.rel (%p256) target = $region40
        $region39: #{tpu_custom_call.1} parent=35 // pred_region
          %s259 = sand.u32 %s19, 1
          %s260 = scalar_lea.sflag [#allocation3], %s259
          %s261 = sand.u32 %s134, 1
          %s262 = smul.addr %s261, 32
          %s263 = scalar_lea.vmem [#allocation12], %s262
          %s265 = ssub.s32 512, 512
          %266 = vsyncadd %s260, %s265
          %s267 = smul.addr %s19, 4
          %s268 = smul.addr %s267, 128
          %s269 = scalar_lea.hbm %s5, %s268
          %s271 = sshll.u32 %s263, 4
          %s272 = int_to_ptr.vmem [resolvable:$true] %s271
          %274 = dma.hbm_to_vmem [thread:$0]  %s269, 512, %s272, %s260
        $region40: #{tpu_custom_call.1} parent=35 // pred_fallthru
          _
      $region36: #{tpu_custom_call.1} parent=5 // pred_fallthru
        _
      %p275 = scmp.le.s32.totalorder 1, %s19
      %p276 = scmp.lt.s32.totalorder %s19, 3
      %p277 = pnand %p275, %p276
      %p278 = pneg %p277
      // Predicated region
      $region41: #{tpu_custom_call.1} parent=5 // pred_check
        _
      $region42: #{tpu_custom_call.1} parent=5 // pred_check_branch
        %280 = sbr.rel (%p277) target = $region44
      $region43: #{tpu_custom_call.1} parent=5 // pred_region
        %s281 = ssub.s32 %s19, 1
        // Predicated region
        $region45: #{tpu_custom_call.1} parent=43 // pred_check
          %p282 = pneg %p40
        $region46: #{tpu_custom_call.1} parent=43 // pred_check_branch
          %284 = sbr.rel (%p282) target = $region48
        $region47: #{tpu_custom_call.1} parent=43 // pred_region
          %285 = dma.done [#allocation5], 16
        $region48: #{tpu_custom_call.1} parent=43 // pred_fallthru
          _
        // Predicated region
        $region49: #{tpu_custom_call.1} parent=43 // pred_check
          %p286 = pneg %p61
        $region50: #{tpu_custom_call.1} parent=43 // pred_check_branch
          %288 = sbr.rel (%p286) target = $region52
        $region51: #{tpu_custom_call.1} parent=43 // pred_region
          %289 = dma.done [#allocation3], 52224
        $region52: #{tpu_custom_call.1} parent=43 // pred_fallthru
          _
        // Predicated region
        $region53: #{tpu_custom_call.1} parent=43 // pred_check
          %p290 = pneg %p82
        $region54: #{tpu_custom_call.1} parent=43 // pred_check_branch
          %292 = sbr.rel (%p290) target = $region56
        $region55: #{tpu_custom_call.1} parent=43 // pred_region
          %293 = dma.done [#allocation8], 768
        $region56: #{tpu_custom_call.1} parent=43 // pred_fallthru
          _
        // Predicated region
        $region57: #{tpu_custom_call.1} parent=43 // pred_check
          %p294 = pneg %p103
        $region58: #{tpu_custom_call.1} parent=43 // pred_check_branch
          %296 = sbr.rel (%p294) target = $region60
        $region59: #{tpu_custom_call.1} parent=43 // pred_region
          %297 = dma.done [#allocation8], 4608
        $region60: #{tpu_custom_call.1} parent=43 // pred_fallthru
          _
        // Predicated region
        $region61: #{tpu_custom_call.1} parent=43 // pred_check
          %p298 = pneg %p124
        $region62: #{tpu_custom_call.1} parent=43 // pred_check_branch
          %300 = sbr.rel (%p298) target = $region64
        $region63: #{tpu_custom_call.1} parent=43 // pred_region
          %301 = dma.done [#allocation11], 4096
        $region64: #{tpu_custom_call.1} parent=43 // pred_fallthru
          _
        %s302 = sand.u32 %s24, 1
        %s303 = scalar_lea.sflag [#allocation3], %s302
        %s304 = sand.u32 %s137, 1
        %s305 = smul.addr %s304, 32
        %s306 = scalar_lea.vmem [#allocation12], %s305
        // Predicated region
        $region65: #{tpu_custom_call.1} parent=43 // pred_check
          %p307 = pneg %p150
        $region66: #{tpu_custom_call.1} parent=43 // pred_check_branch
          %309 = sbr.rel (%p307) target = $region68
        $region67: #{tpu_custom_call.1} parent=43 // pred_region
          %310 = dma.done %s303, 512
        $region68: #{tpu_custom_call.1} parent=43 // pred_fallthru
          _
        %311 = sfence
        %p312 = pneg %p40
        %p313 = pneg %p37
        %p314 = pneg %p61
        %p315 = pneg %p58
        %p316 = pneg %p82
        %p317 = pneg %p79
        %p318 = pneg %p103
        %p319 = pneg %p100
        %p320 = pneg %p124
        %p321 = pneg %p121
        %s322 = sand.u32 %s24, 1
        %s323 = scalar_lea.sflag [#allocation3], %s322
        %s324 = sand.u32 %s137, 1
        %s325 = smul.addr %s324, 32
        %s326 = scalar_lea.vmem [#allocation12], %s325
        %p327 = pneg %p150
        %p328 = pneg %p147
        %p329 = pneg %p176
        %p330 = pneg %p173
        %s331 = sand.u32 %s163, 1
        %s332 = scalar_lea.sflag [#allocation4], %s331
        %s333 = sand.u32 %s163, 1
        %s334 = smul.addr %s333, 32
        %s335 = scalar_lea.vmem [#allocation13], %s334
        %v336 = vld [vmem:[%s306] sm:$0xff]
        %v337 = vld [vmem:[%s306 + $0x8] sm:$0xff]
        %v338 = vld [vmem:[%s306 + $0x10] sm:$0xff]
        %v339 = vld [vmem:[%s306 + $0x18] sm:$0xff]
        %340 = vrot.lane.b32.xlu0 %v336, 34
        %v341 = vpop.permute.xlu0 %340
        %342 = vrot.lane.b32.xlu0 %v337, 34
        %v343 = vpop.permute.xlu0 %342
        %344 = vrot.lane.b32.xlu0 %v338, 34
        %v345 = vpop.permute.xlu0 %344
        %346 = vrot.lane.b32.xlu0 %v339, 34
        %v347 = vpop.permute.xlu0 %346
        %v348 = vlaneseq
        %v349 = vand.u32 %v348, 127
        %vm350 = vcmp.lt.s32.totalorder %v349, 34
        %v351 = vsel %vm350, %v345, %v347
        %v352 = vsel %vm350, %v343, %v345
        %v353 = vsel %vm350, %v341, %v343
        %v354 = vsel %vm350, %v347, %v341
        %v355 = vmax.f32 %v354, 0.0
        %v356 = vmax.f32 %v353, 0.0
        %v357 = vmax.f32 %v352, 0.0
        %v358 = vmax.f32 %v351, 0.0
        %s359 = scalar_lea.vmem [#allocation6], 576
        %v360 = vld [vmem:[%s359] sm:$0xff]
        %v361 = vld [vmem:[%s359 + $0x8] sm:$0xff]
        %v362 = vld [vmem:[%s359 + $0x10] sm:$0xff]
        %v363 = vld [vmem:[%s359 + $0x18] sm:$0xff]
        %v364 = vmul.f32 %v360, %v355
        %v365 = vmul.f32 %v361, %v356
        %v366 = vmul.f32 %v362, %v357
        %v367 = vmul.f32 %v363, %v358
        %s368 = scalar_lea.vmem [#allocation6], 2176
        %v369 = vld [vmem:[%s368] sm:$0xff]
        %v370 = vld [vmem:[%s368 + $0x8] sm:$0xff]
        %v371 = vld [vmem:[%s368 + $0x10] sm:$0xff]
        %v372 = vld [vmem:[%s368 + $0x18] sm:$0xff]
        %v373 = vmul.f32 %v369, %v355
        %v374 = vmul.f32 %v370, %v356
        %v375 = vmul.f32 %v371, %v357
        %v376 = vmul.f32 %v372, %v358
        %s377 = scalar_lea.vmem [#allocation6], 2656
        %v378 = vld [vmem:[%s377] sm:$0xff]
        %v379 = vld [vmem:[%s377 + $0x8] sm:$0xff]
        %v380 = vld [vmem:[%s377 + $0x10] sm:$0xff]
        %v381 = vld [vmem:[%s377 + $0x18] sm:$0xff]
        %v382 = vmul.f32 %v378, %v355
        %v383 = vmul.f32 %v379, %v356
        %v384 = vmul.f32 %v380, %v357
        %v385 = vmul.f32 %v381, %v358
        %386 = vrot.lane.b32.xlu0 %v336, 33
        %v387 = vpop.permute.xlu0 %386
        %388 = vrot.lane.b32.xlu0 %v337, 33
        %v389 = vpop.permute.xlu0 %388
        %390 = vrot.lane.b32.xlu0 %v338, 33
        %v391 = vpop.permute.xlu0 %390
        %392 = vrot.lane.b32.xlu0 %v339, 33
        %v393 = vpop.permute.xlu0 %392
        %vm394 = vcmp.lt.s32.totalorder %v349, 33
        %v395 = vsel %vm394, %v391, %v393
        %v396 = vsel %vm394, %v389, %v391
        %v397 = vsel %vm394, %v387, %v389
        %v398 = vsel %vm394, %v393, %v387
        %v399 = vmax.f32 %v398, 0.0
        %v400 = vmax.f32 %v397, 0.0
        %v401 = vmax.f32 %v396, 0.0
        %v402 = vmax.f32 %v395, 0.0
        %s403 = scalar_lea.vmem [#allocation6], 608
        %v404 = vld [vmem:[%s403] sm:$0xff]
        %v405 = vld [vmem:[%s403 + $0x8] sm:$0xff]
        %v406 = vld [vmem:[%s403 + $0x10] sm:$0xff]
        %v407 = vld [vmem:[%s403 + $0x18] sm:$0xff]
        %v408 = vmul.f32 %v404, %v399
        %v409 = vmul.f32 %v405, %v400
        %v410 = vmul.f32 %v406, %v401
        %v411 = vmul.f32 %v407, %v402
        %v412 = vadd.f32 %v364, %v408
        %v413 = vadd.f32 %v365, %v409
        %v414 = vadd.f32 %v366, %v410
        %v415 = vadd.f32 %v367, %v411
        %416 = vrot.lane.b32.xlu0 %v336, 32
        %v417 = vpop.permute.xlu0 %416
        %418 = vrot.lane.b32.xlu0 %v337, 32
        %v419 = vpop.permute.xlu0 %418
        %420 = vrot.lane.b32.xlu0 %v338, 32
        %v421 = vpop.permute.xlu0 %420
        %422 = vrot.lane.b32.xlu0 %v339, 32
        %v423 = vpop.permute.xlu0 %422
        %vm424 = vcmp.lt.s32.totalorder %v349, 32
        %v425 = vsel %vm424, %v421, %v423
        %v426 = vsel %vm424, %v419, %v421
        %v427 = vsel %vm424, %v417, %v419
        %v428 = vsel %vm424, %v423, %v417
        %v429 = vmax.f32 %v428, 0.0
        %v430 = vmax.f32 %v427, 0.0
        %v431 = vmax.f32 %v426, 0.0
        %v432 = vmax.f32 %v425, 0.0
        %s433 = scalar_lea.vmem [#allocation6], 640
        %v434 = vld [vmem:[%s433] sm:$0xff]
        %v435 = vld [vmem:[%s433 + $0x8] sm:$0xff]
        %v436 = vld [vmem:[%s433 + $0x10] sm:$0xff]
        %v437 = vld [vmem:[%s433 + $0x18] sm:$0xff]
        %v438 = vmul.f32 %v434, %v429
        %v439 = vmul.f32 %v435, %v430
        %v440 = vmul.f32 %v436, %v431
        %v441 = vmul.f32 %v437, %v432
        %v442 = vadd.f32 %v412, %v438
        %v443 = vadd.f32 %v413, %v439
        %v444 = vadd.f32 %v414, %v440
        %v445 = vadd.f32 %v415, %v441
        %s446 = scalar_lea.vmem [#allocation6], 2208
        %v447 = vld [vmem:[%s446] sm:$0xff]
        %v448 = vld [vmem:[%s446 + $0x8] sm:$0xff]
        %v449 = vld [vmem:[%s446 + $0x10] sm:$0xff]
        %v450 = vld [vmem:[%s446 + $0x18] sm:$0xff]
        %v451 = vmul.f32 %v447, %v429
        %v452 = vmul.f32 %v448, %v430
        %v453 = vmul.f32 %v449, %v431
        %v454 = vmul.f32 %v450, %v432
        %v455 = vadd.f32 %v373, %v451
        %v456 = vadd.f32 %v374, %v452
        %v457 = vadd.f32 %v375, %v453
        %v458 = vadd.f32 %v376, %v454
        %s459 = scalar_lea.vmem [#allocation6], 2688
        %v460 = vld [vmem:[%s459] sm:$0xff]
        %v461 = vld [vmem:[%s459 + $0x8] sm:$0xff]
        %v462 = vld [vmem:[%s459 + $0x10] sm:$0xff]
        %v463 = vld [vmem:[%s459 + $0x18] sm:$0xff]
        %v464 = vmul.f32 %v460, %v429
        %v465 = vmul.f32 %v461, %v430
        %v466 = vmul.f32 %v462, %v431
        %v467 = vmul.f32 %v463, %v432
        %v468 = vadd.f32 %v382, %v464
        %v469 = vadd.f32 %v383, %v465
        %v470 = vadd.f32 %v384, %v466
        %v471 = vadd.f32 %v385, %v467
        %472 = vrot.lane.b32.xlu0 %v336, 31
        %v473 = vpop.permute.xlu0 %472
        %474 = vrot.lane.b32.xlu0 %v337, 31
        %v475 = vpop.permute.xlu0 %474
        %476 = vrot.lane.b32.xlu0 %v338, 31
        %v477 = vpop.permute.xlu0 %476
        %478 = vrot.lane.b32.xlu0 %v339, 31
        %v479 = vpop.permute.xlu0 %478
        %vm480 = vcmp.lt.s32.totalorder %v349, 31
        %v481 = vsel %vm480, %v477, %v479
        %v482 = vsel %vm480, %v475, %v477
        %v483 = vsel %vm480, %v473, %v475
        %v484 = vsel %vm480, %v479, %v473
        %v485 = vmax.f32 %v484, 0.0
        %v486 = vmax.f32 %v483, 0.0
        %v487 = vmax.f32 %v482, 0.0
        %v488 = vmax.f32 %v481, 0.0
        %s489 = scalar_lea.vmem [#allocation6], 672
        %v490 = vld [vmem:[%s489] sm:$0xff]
        %v491 = vld [vmem:[%s489 + $0x8] sm:$0xff]
        %v492 = vld [vmem:[%s489 + $0x10] sm:$0xff]
        %v493 = vld [vmem:[%s489 + $0x18] sm:$0xff]
        %v494 = vmul.f32 %v490, %v485
        %v495 = vmul.f32 %v491, %v486
        %v496 = vmul.f32 %v492, %v487
        %v497 = vmul.f32 %v493, %v488
        %v498 = vadd.f32 %v442, %v494
        %v499 = vadd.f32 %v443, %v495
        %v500 = vadd.f32 %v444, %v496
        %v501 = vadd.f32 %v445, %v497
        %502 = vrot.lane.b32.xlu0 %v336, 30
        %v503 = vpop.permute.xlu0 %502
        %504 = vrot.lane.b32.xlu0 %v337, 30
        %v505 = vpop.permute.xlu0 %504
        %506 = vrot.lane.b32.xlu0 %v338, 30
        %v507 = vpop.permute.xlu0 %506
        %508 = vrot.lane.b32.xlu0 %v339, 30
        %v509 = vpop.permute.xlu0 %508
        %vm510 = vcmp.lt.s32.totalorder %v349, 30
        %v511 = vsel %vm510, %v507, %v509
        %v512 = vsel %vm510, %v505, %v507
        %v513 = vsel %vm510, %v503, %v505
        %v514 = vsel %vm510, %v509, %v503
        %v515 = vmax.f32 %v514, 0.0
        %v516 = vmax.f32 %v513, 0.0
        %v517 = vmax.f32 %v512, 0.0
        %v518 = vmax.f32 %v511, 0.0
        %s519 = scalar_lea.vmem [#allocation6], 704
        %v520 = vld [vmem:[%s519] sm:$0xff]
        %v521 = vld [vmem:[%s519 + $0x8] sm:$0xff]
        %v522 = vld [vmem:[%s519 + $0x10] sm:$0xff]
        %v523 = vld [vmem:[%s519 + $0x18] sm:$0xff]
        %v524 = vmul.f32 %v520, %v515
        %v525 = vmul.f32 %v521, %v516
        %v526 = vmul.f32 %v522, %v517
        %v527 = vmul.f32 %v523, %v518
        %v528 = vadd.f32 %v498, %v524
        %v529 = vadd.f32 %v499, %v525
        %v530 = vadd.f32 %v500, %v526
        %v531 = vadd.f32 %v501, %v527
        %s532 = scalar_lea.vmem [#allocation6], 2240
        %v533 = vld [vmem:[%s532] sm:$0xff]
        %v534 = vld [vmem:[%s532 + $0x8] sm:$0xff]
        %v535 = vld [vmem:[%s532 + $0x10] sm:$0xff]
        %v536 = vld [vmem:[%s532 + $0x18] sm:$0xff]
        %v537 = vmul.f32 %v533, %v515
        %v538 = vmul.f32 %v534, %v516
        %v539 = vmul.f32 %v535, %v517
        %v540 = vmul.f32 %v536, %v518
        %v541 = vadd.f32 %v455, %v537
        %v542 = vadd.f32 %v456, %v538
        %v543 = vadd.f32 %v457, %v539
        %v544 = vadd.f32 %v458, %v540
        %s545 = scalar_lea.vmem [#allocation6], 2720
        %v546 = vld [vmem:[%s545] sm:$0xff]
        %v547 = vld [vmem:[%s545 + $0x8] sm:$0xff]
        %v548 = vld [vmem:[%s545 + $0x10] sm:$0xff]
        %v549 = vld [vmem:[%s545 + $0x18] sm:$0xff]
        %v550 = vmul.f32 %v546, %v515
        %v551 = vmul.f32 %v547, %v516
        %v552 = vmul.f32 %v548, %v517
        %v553 = vmul.f32 %v549, %v518
        %v554 = vadd.f32 %v468, %v550
        %v555 = vadd.f32 %v469, %v551
        %v556 = vadd.f32 %v470, %v552
        %v557 = vadd.f32 %v471, %v553
        %558 = vrot.lane.b32.xlu0 %v336, 18
        %v559 = vpop.permute.xlu0 %558
        %560 = vrot.lane.b32.xlu0 %v337, 18
        %v561 = vpop.permute.xlu0 %560
        %562 = vrot.lane.b32.xlu0 %v338, 18
        %v563 = vpop.permute.xlu0 %562
        %564 = vrot.lane.b32.xlu0 %v339, 18
        %v565 = vpop.permute.xlu0 %564
        %vm566 = vcmp.lt.s32.totalorder %v349, 18
        %v567 = vsel %vm566, %v563, %v565
        %v568 = vsel %vm566, %v561, %v563
        %v569 = vsel %vm566, %v559, %v561
        %v570 = vsel %vm566, %v565, %v559
        %v571 = vmax.f32 %v570, 0.0
        %v572 = vmax.f32 %v569, 0.0
        %v573 = vmax.f32 %v568, 0.0
        %v574 = vmax.f32 %v567, 0.0
        %s575 = scalar_lea.vmem [#allocation6], 736
        %v576 = vld [vmem:[%s575] sm:$0xff]
        %v577 = vld [vmem:[%s575 + $0x8] sm:$0xff]
        %v578 = vld [vmem:[%s575 + $0x10] sm:$0xff]
        %v579 = vld [vmem:[%s575 + $0x18] sm:$0xff]
        %v580 = vmul.f32 %v576, %v571
        %v581 = vmul.f32 %v577, %v572
        %v582 = vmul.f32 %v578, %v573
        %v583 = vmul.f32 %v579, %v574
        %v584 = vadd.f32 %v528, %v580
        %v585 = vadd.f32 %v529, %v581
        %v586 = vadd.f32 %v530, %v582
        %v587 = vadd.f32 %v531, %v583
        %588 = vrot.lane.b32.xlu0 %v336, 17
        %v589 = vpop.permute.xlu0 %588
        %590 = vrot.lane.b32.xlu0 %v337, 17
        %v591 = vpop.permute.xlu0 %590
        %592 = vrot.lane.b32.xlu0 %v338, 17
        %v593 = vpop.permute.xlu0 %592
        %594 = vrot.lane.b32.xlu0 %v339, 17
        %v595 = vpop.permute.xlu0 %594
        %vm596 = vcmp.lt.s32.totalorder %v349, 17
        %v597 = vsel %vm596, %v593, %v595
        %v598 = vsel %vm596, %v591, %v593
        %v599 = vsel %vm596, %v589, %v591
        %v600 = vsel %vm596, %v595, %v589
        %v601 = vld [vmem:[#allocation9] sm:$0xff]
        %v602 = vld [vmem:[#allocation9 + $0x8] sm:$0xff]
        %v603 = vld [vmem:[#allocation9 + $0x10] sm:$0xff]
        %v604 = vld [vmem:[#allocation9 + $0x18] sm:$0xff]
        %v605 = vmul.f32 %v600, %v601
        %v606 = vmul.f32 %v599, %v602
        %v607 = vmul.f32 %v598, %v603
        %v608 = vmul.f32 %v597, %v604
        %v609 = vld [vmem:[#allocation10] sm:$0xff]
        %v610 = vld [vmem:[#allocation10 + $0x8] sm:$0xff]
        %v611 = vld [vmem:[#allocation10 + $0x10] sm:$0xff]
        %v612 = vld [vmem:[#allocation10 + $0x18] sm:$0xff]
        %v613 = vadd.f32 %v600, %v609
        %v614 = vadd.f32 %v599, %v610
        %v615 = vadd.f32 %v598, %v611
        %v616 = vadd.f32 %v597, %v612
        %v617 = vmax.f32 %v600, 0.0
        %v618 = vmax.f32 %v599, 0.0
        %v619 = vmax.f32 %v598, 0.0
        %v620 = vmax.f32 %v597, 0.0
        %v621 = vld [vmem:[#allocation6] sm:$0xff]
        %v622 = vld [vmem:[#allocation6 + $0x8] sm:$0xff]
        %v623 = vld [vmem:[#allocation6 + $0x10] sm:$0xff]
        %v624 = vld [vmem:[#allocation6 + $0x18] sm:$0xff]
        %v625 = vmul.f32 %v621, %v617
        %v626 = vmul.f32 %v622, %v618
        %v627 = vmul.f32 %v623, %v619
        %v628 = vmul.f32 %v624, %v620
        %s629 = scalar_lea.vmem [#allocation6], 768
        %v630 = vld [vmem:[%s629] sm:$0xff]
        %v631 = vld [vmem:[%s629 + $0x8] sm:$0xff]
        %v632 = vld [vmem:[%s629 + $0x10] sm:$0xff]
        %v633 = vld [vmem:[%s629 + $0x18] sm:$0xff]
        %v634 = vmul.f32 %v630, %v617
        %v635 = vmul.f32 %v631, %v618
        %v636 = vmul.f32 %v632, %v619
        %v637 = vmul.f32 %v633, %v620
        %v638 = vadd.f32 %v584, %v634
        %v639 = vadd.f32 %v585, %v635
        %v640 = vadd.f32 %v586, %v636
        %v641 = vadd.f32 %v587, %v637
        %642 = vrot.lane.b32.xlu0 %v336, 16
        %v643 = vpop.permute.xlu0 %642
        %644 = vrot.lane.b32.xlu0 %v337, 16
        %v645 = vpop.permute.xlu0 %644
        %646 = vrot.lane.b32.xlu0 %v338, 16
        %v647 = vpop.permute.xlu0 %646
        %648 = vrot.lane.b32.xlu0 %v339, 16
        %v649 = vpop.permute.xlu0 %648
        %vm650 = vcmp.lt.s32.totalorder %v349, 16
        %v651 = vsel %vm650, %v647, %v649
        %v652 = vsel %vm650, %v645, %v647
        %v653 = vsel %vm650, %v643, %v645
        %v654 = vsel %vm650, %v649, %v643
        %s655 = scalar_lea.vmem [#allocation9], 32
        %v656 = vld [vmem:[%s655] sm:$0xff]
        %v657 = vld [vmem:[%s655 + $0x8] sm:$0xff]
        %v658 = vld [vmem:[%s655 + $0x10] sm:$0xff]
        %v659 = vld [vmem:[%s655 + $0x18] sm:$0xff]
        %v660 = vmul.f32 %v654, %v656
        %v661 = vmul.f32 %v653, %v657
        %v662 = vmul.f32 %v652, %v658
        %v663 = vmul.f32 %v651, %v659
        %v664 = vadd.f32 %v605, %v660
        %v665 = vadd.f32 %v606, %v661
        %v666 = vadd.f32 %v607, %v662
        %v667 = vadd.f32 %v608, %v663
        %s668 = scalar_lea.vmem [#allocation10], 32
        %v669 = vld [vmem:[%s668] sm:$0xff]
        %v670 = vld [vmem:[%s668 + $0x8] sm:$0xff]
        %v671 = vld [vmem:[%s668 + $0x10] sm:$0xff]
        %v672 = vld [vmem:[%s668 + $0x18] sm:$0xff]
        %v673 = vadd.f32 %v654, %v669
        %v674 = vadd.f32 %v653, %v670
        %v675 = vadd.f32 %v652, %v671
        %v676 = vadd.f32 %v651, %v672
        %v677 = vmax.f32 %v613, %v673
        %v678 = vmax.f32 %v614, %v674
        %v679 = vmax.f32 %v615, %v675
        %v680 = vmax.f32 %v616, %v676
        %v681 = vmax.f32 %v654, 0.0
        %v682 = vmax.f32 %v653, 0.0
        %v683 = vmax.f32 %v652, 0.0
        %v684 = vmax.f32 %v651, 0.0
        %s685 = scalar_lea.vmem [#allocation6], 32
        %v686 = vld [vmem:[%s685] sm:$0xff]
        %v687 = vld [vmem:[%s685 + $0x8] sm:$0xff]
        %v688 = vld [vmem:[%s685 + $0x10] sm:$0xff]
        %v689 = vld [vmem:[%s685 + $0x18] sm:$0xff]
        %v690 = vmul.f32 %v686, %v681
        %v691 = vmul.f32 %v687, %v682
        %v692 = vmul.f32 %v688, %v683
        %v693 = vmul.f32 %v689, %v684
        %v694 = vadd.f32 %v625, %v690
        %v695 = vadd.f32 %v626, %v691
        %v696 = vadd.f32 %v627, %v692
        %v697 = vadd.f32 %v628, %v693
        %s698 = scalar_lea.vmem [#allocation6], 800
        %v699 = vld [vmem:[%s698] sm:$0xff]
        %v700 = vld [vmem:[%s698 + $0x8] sm:$0xff]
        %v701 = vld [vmem:[%s698 + $0x10] sm:$0xff]
        %v702 = vld [vmem:[%s698 + $0x18] sm:$0xff]
        %v703 = vmul.f32 %v699, %v681
        %v704 = vmul.f32 %v700, %v682
        %v705 = vmul.f32 %v701, %v683
        %v706 = vmul.f32 %v702, %v684
        %v707 = vadd.f32 %v638, %v703
        %v708 = vadd.f32 %v639, %v704
        %v709 = vadd.f32 %v640, %v705
        %v710 = vadd.f32 %v641, %v706
        %711 = vrot.lane.b32.xlu0 %v336, 15
        %v712 = vpop.permute.xlu0 %711
        %713 = vrot.lane.b32.xlu0 %v337, 15
        %v714 = vpop.permute.xlu0 %713
        %715 = vrot.lane.b32.xlu0 %v338, 15
        %v716 = vpop.permute.xlu0 %715
        %717 = vrot.lane.b32.xlu0 %v339, 15
        %v718 = vpop.permute.xlu0 %717
        %vm719 = vcmp.lt.s32.totalorder %v349, 15
        %v720 = vsel %vm719, %v716, %v718
        %v721 = vsel %vm719, %v714, %v716
        %v722 = vsel %vm719, %v712, %v714
        %v723 = vsel %vm719, %v718, %v712
        %s724 = scalar_lea.vmem [#allocation9], 64
        %v725 = vld [vmem:[%s724] sm:$0xff]
        %v726 = vld [vmem:[%s724 + $0x8] sm:$0xff]
        %v727 = vld [vmem:[%s724 + $0x10] sm:$0xff]
        %v728 = vld [vmem:[%s724 + $0x18] sm:$0xff]
        %v729 = vmul.f32 %v723, %v725
        %v730 = vmul.f32 %v722, %v726
        %v731 = vmul.f32 %v721, %v727
        %v732 = vmul.f32 %v720, %v728
        %v733 = vadd.f32 %v664, %v729
        %v734 = vadd.f32 %v665, %v730
        %v735 = vadd.f32 %v666, %v731
        %v736 = vadd.f32 %v667, %v732
        %s737 = scalar_lea.vmem [#allocation10], 64
        %v738 = vld [vmem:[%s737] sm:$0xff]
        %v739 = vld [vmem:[%s737 + $0x8] sm:$0xff]
        %v740 = vld [vmem:[%s737 + $0x10] sm:$0xff]
        %v741 = vld [vmem:[%s737 + $0x18] sm:$0xff]
        %v742 = vadd.f32 %v723, %v738
        %v743 = vadd.f32 %v722, %v739
        %v744 = vadd.f32 %v721, %v740
        %v745 = vadd.f32 %v720, %v741
        %v746 = vmax.f32 %v677, %v742
        %v747 = vmax.f32 %v678, %v743
        %v748 = vmax.f32 %v679, %v744
        %v749 = vmax.f32 %v680, %v745
        %v750 = vmax.f32 %v723, 0.0
        %v751 = vmax.f32 %v722, 0.0
        %v752 = vmax.f32 %v721, 0.0
        %v753 = vmax.f32 %v720, 0.0
        %s754 = scalar_lea.vmem [#allocation6], 64
        %v755 = vld [vmem:[%s754] sm:$0xff]
        %v756 = vld [vmem:[%s754 + $0x8] sm:$0xff]
        %v757 = vld [vmem:[%s754 + $0x10] sm:$0xff]
        %v758 = vld [vmem:[%s754 + $0x18] sm:$0xff]
        %v759 = vmul.f32 %v755, %v750
        %v760 = vmul.f32 %v756, %v751
        %v761 = vmul.f32 %v757, %v752
        %v762 = vmul.f32 %v758, %v753
        %v763 = vadd.f32 %v694, %v759
        %v764 = vadd.f32 %v695, %v760
        %v765 = vadd.f32 %v696, %v761
        %v766 = vadd.f32 %v697, %v762
        %s767 = scalar_lea.vmem [#allocation6], 832
        %v768 = vld [vmem:[%s767] sm:$0xff]
        %v769 = vld [vmem:[%s767 + $0x8] sm:$0xff]
        %v770 = vld [vmem:[%s767 + $0x10] sm:$0xff]
        %v771 = vld [vmem:[%s767 + $0x18] sm:$0xff]
        %v772 = vmul.f32 %v768, %v750
        %v773 = vmul.f32 %v769, %v751
        %v774 = vmul.f32 %v770, %v752
        %v775 = vmul.f32 %v771, %v753
        %v776 = vadd.f32 %v707, %v772
        %v777 = vadd.f32 %v708, %v773
        %v778 = vadd.f32 %v709, %v774
        %v779 = vadd.f32 %v710, %v775
        %780 = vrot.lane.b32.xlu0 %v336, 14
        %v781 = vpop.permute.xlu0 %780
        %782 = vrot.lane.b32.xlu0 %v337, 14
        %v783 = vpop.permute.xlu0 %782
        %784 = vrot.lane.b32.xlu0 %v338, 14
        %v785 = vpop.permute.xlu0 %784
        %786 = vrot.lane.b32.xlu0 %v339, 14
        %v787 = vpop.permute.xlu0 %786
        %vm788 = vcmp.lt.s32.totalorder %v349, 14
        %v789 = vsel %vm788, %v785, %v787
        %v790 = vsel %vm788, %v783, %v785
        %v791 = vsel %vm788, %v781, %v783
        %v792 = vsel %vm788, %v787, %v781
        %v793 = vmax.f32 %v792, 0.0
        %v794 = vmax.f32 %v791, 0.0
        %v795 = vmax.f32 %v790, 0.0
        %v796 = vmax.f32 %v789, 0.0
        %s797 = scalar_lea.vmem [#allocation6], 864
        %v798 = vld [vmem:[%s797] sm:$0xff]
        %v799 = vld [vmem:[%s797 + $0x8] sm:$0xff]
        %v800 = vld [vmem:[%s797 + $0x10] sm:$0xff]
        %v801 = vld [vmem:[%s797 + $0x18] sm:$0xff]
        %v802 = vmul.f32 %v798, %v793
        %v803 = vmul.f32 %v799, %v794
        %v804 = vmul.f32 %v800, %v795
        %v805 = vmul.f32 %v801, %v796
        %v806 = vadd.f32 %v776, %v802
        %v807 = vadd.f32 %v777, %v803
        %v808 = vadd.f32 %v778, %v804
        %v809 = vadd.f32 %v779, %v805
        %810 = vrot.lane.b32.xlu0 %v336, 2
        %v811 = vpop.permute.xlu0 %810
        %812 = vrot.lane.b32.xlu0 %v337, 2
        %v813 = vpop.permute.xlu0 %812
        %814 = vrot.lane.b32.xlu0 %v338, 2
        %v815 = vpop.permute.xlu0 %814
        %816 = vrot.lane.b32.xlu0 %v339, 2
        %v817 = vpop.permute.xlu0 %816
        %vm818 = vcmp.lt.s32.totalorder %v349, 2
        %v819 = vsel %vm818, %v815, %v817
        %v820 = vsel %vm818, %v813, %v815
        %v821 = vsel %vm818, %v811, %v813
        %v822 = vsel %vm818, %v817, %v811
        %v823 = vmax.f32 %v822, 0.0
        %v824 = vmax.f32 %v821, 0.0
        %v825 = vmax.f32 %v820, 0.0
        %v826 = vmax.f32 %v819, 0.0
        %s827 = scalar_lea.vmem [#allocation6], 896
        %v828 = vld [vmem:[%s827] sm:$0xff]
        %v829 = vld [vmem:[%s827 + $0x8] sm:$0xff]
        %v830 = vld [vmem:[%s827 + $0x10] sm:$0xff]
        %v831 = vld [vmem:[%s827 + $0x18] sm:$0xff]
        %v832 = vmul.f32 %v828, %v823
        %v833 = vmul.f32 %v829, %v824
        %v834 = vmul.f32 %v830, %v825
        %v835 = vmul.f32 %v831, %v826
        %v836 = vadd.f32 %v806, %v832
        %v837 = vadd.f32 %v807, %v833
        %v838 = vadd.f32 %v808, %v834
        %v839 = vadd.f32 %v809, %v835
        %s840 = scalar_lea.vmem [#allocation6], 2272
        %v841 = vld [vmem:[%s840] sm:$0xff]
        %v842 = vld [vmem:[%s840 + $0x8] sm:$0xff]
        %v843 = vld [vmem:[%s840 + $0x10] sm:$0xff]
        %v844 = vld [vmem:[%s840 + $0x18] sm:$0xff]
        %v845 = vmul.f32 %v841, %v823
        %v846 = vmul.f32 %v842, %v824
        %v847 = vmul.f32 %v843, %v825
        %v848 = vmul.f32 %v844, %v826
        %v849 = vadd.f32 %v541, %v845
        %v850 = vadd.f32 %v542, %v846
        %v851 = vadd.f32 %v543, %v847
        %v852 = vadd.f32 %v544, %v848
        %s853 = scalar_lea.vmem [#allocation6], 2816
        %v854 = vld [vmem:[%s853] sm:$0xff]
        %v855 = vld [vmem:[%s853 + $0x8] sm:$0xff]
        %v856 = vld [vmem:[%s853 + $0x10] sm:$0xff]
        %v857 = vld [vmem:[%s853 + $0x18] sm:$0xff]
        %v858 = vmul.f32 %v854, %v823
        %v859 = vmul.f32 %v855, %v824
        %v860 = vmul.f32 %v856, %v825
        %v861 = vmul.f32 %v857, %v826
        %v862 = vadd.f32 %v554, %v858
        %v863 = vadd.f32 %v555, %v859
        %v864 = vadd.f32 %v556, %v860
        %v865 = vadd.f32 %v557, %v861
        %866 = vrot.lane.b32.xlu0 %v336, 1
        %v867 = vpop.permute.xlu0 %866
        %868 = vrot.lane.b32.xlu0 %v337, 1
        %v869 = vpop.permute.xlu0 %868
        %870 = vrot.lane.b32.xlu0 %v338, 1
        %v871 = vpop.permute.xlu0 %870
        %872 = vrot.lane.b32.xlu0 %v339, 1
        %v873 = vpop.permute.xlu0 %872
        %vm874 = vcmp.lt.s32.totalorder %v349, 1
        %v875 = vsel %vm874, %v871, %v873
        %v876 = vsel %vm874, %v869, %v871
        %v877 = vsel %vm874, %v867, %v869
        %v878 = vsel %vm874, %v873, %v867
        %s879 = scalar_lea.vmem [#allocation9], 96
        %v880 = vld [vmem:[%s879] sm:$0xff]
        %v881 = vld [vmem:[%s879 + $0x8] sm:$0xff]
        %v882 = vld [vmem:[%s879 + $0x10] sm:$0xff]
        %v883 = vld [vmem:[%s879 + $0x18] sm:$0xff]
        %v884 = vmul.f32 %v878, %v880
        %v885 = vmul.f32 %v877, %v881
        %v886 = vmul.f32 %v876, %v882
        %v887 = vmul.f32 %v875, %v883
        %v888 = vadd.f32 %v733, %v884
        %v889 = vadd.f32 %v734, %v885
        %v890 = vadd.f32 %v735, %v886
        %v891 = vadd.f32 %v736, %v887
        %s892 = scalar_lea.vmem [#allocation10], 96
        %v893 = vld [vmem:[%s892] sm:$0xff]
        %v894 = vld [vmem:[%s892 + $0x8] sm:$0xff]
        %v895 = vld [vmem:[%s892 + $0x10] sm:$0xff]
        %v896 = vld [vmem:[%s892 + $0x18] sm:$0xff]
        %v897 = vadd.f32 %v878, %v893
        %v898 = vadd.f32 %v877, %v894
        %v899 = vadd.f32 %v876, %v895
        %v900 = vadd.f32 %v875, %v896
        %v901 = vmax.f32 %v746, %v897
        %v902 = vmax.f32 %v747, %v898
        %v903 = vmax.f32 %v748, %v899
        %v904 = vmax.f32 %v749, %v900
        %v905 = vmax.f32 %v878, 0.0
        %v906 = vmax.f32 %v877, 0.0
        %v907 = vmax.f32 %v876, 0.0
        %v908 = vmax.f32 %v875, 0.0
        %s909 = scalar_lea.vmem [#allocation6], 96
        %v910 = vld [vmem:[%s909] sm:$0xff]
        %v911 = vld [vmem:[%s909 + $0x8] sm:$0xff]
        %v912 = vld [vmem:[%s909 + $0x10] sm:$0xff]
        %v913 = vld [vmem:[%s909 + $0x18] sm:$0xff]
        %v914 = vmul.f32 %v910, %v905
        %v915 = vmul.f32 %v911, %v906
        %v916 = vmul.f32 %v912, %v907
        %v917 = vmul.f32 %v913, %v908
        %v918 = vadd.f32 %v763, %v914
        %v919 = vadd.f32 %v764, %v915
        %v920 = vadd.f32 %v765, %v916
        %v921 = vadd.f32 %v766, %v917
        %s922 = scalar_lea.vmem [#allocation6], 928
        %v923 = vld [vmem:[%s922] sm:$0xff]
        %v924 = vld [vmem:[%s922 + $0x8] sm:$0xff]
        %v925 = vld [vmem:[%s922 + $0x10] sm:$0xff]
        %v926 = vld [vmem:[%s922 + $0x18] sm:$0xff]
        %v927 = vmul.f32 %v923, %v905
        %v928 = vmul.f32 %v924, %v906
        %v929 = vmul.f32 %v925, %v907
        %v930 = vmul.f32 %v926, %v908
        %v931 = vadd.f32 %v836, %v927
        %v932 = vadd.f32 %v837, %v928
        %v933 = vadd.f32 %v838, %v929
        %v934 = vadd.f32 %v839, %v930
        %s935 = scalar_lea.vmem [#allocation9], 128
        %v936 = vld [vmem:[%s935] sm:$0xff]
        %v937 = vld [vmem:[%s935 + $0x8] sm:$0xff]
        %v938 = vld [vmem:[%s935 + $0x10] sm:$0xff]
        %v939 = vld [vmem:[%s935 + $0x18] sm:$0xff]
        %v940 = vmul.f32 %v336, %v936
        %v941 = vmul.f32 %v337, %v937
        %v942 = vmul.f32 %v338, %v938
        %v943 = vmul.f32 %v339, %v939
        %v944 = vadd.f32 %v888, %v940
        %v945 = vadd.f32 %v889, %v941
        %v946 = vadd.f32 %v890, %v942
        %v947 = vadd.f32 %v891, %v943
        %v948 = vmax.f32 %v901, %v336
        %v949 = vmax.f32 %v902, %v337
        %v950 = vmax.f32 %v903, %v338
        %v951 = vmax.f32 %v904, %v339
        %v952 = vmax.f32 %v336, 0.0
        %v953 = vmax.f32 %v337, 0.0
        %v954 = vmax.f32 %v338, 0.0
        %v955 = vmax.f32 %v339, 0.0
        %s956 = scalar_lea.vmem [#allocation6], 128
        %v957 = vld [vmem:[%s956] sm:$0xff]
        %v958 = vld [vmem:[%s956 + $0x8] sm:$0xff]
        %v959 = vld [vmem:[%s956 + $0x10] sm:$0xff]
        %v960 = vld [vmem:[%s956 + $0x18] sm:$0xff]
        %v961 = vmul.f32 %v957, %v952
        %v962 = vmul.f32 %v958, %v953
        %v963 = vmul.f32 %v959, %v954
        %v964 = vmul.f32 %v960, %v955
        %v965 = vadd.f32 %v918, %v961
        %v966 = vadd.f32 %v919, %v962
        %v967 = vadd.f32 %v920, %v963
        %v968 = vadd.f32 %v921, %v964
        %s969 = scalar_lea.vmem [#allocation6], 960
        %v970 = vld [vmem:[%s969] sm:$0xff]
        %v971 = vld [vmem:[%s969 + $0x8] sm:$0xff]
        %v972 = vld [vmem:[%s969 + $0x10] sm:$0xff]
        %v973 = vld [vmem:[%s969 + $0x18] sm:$0xff]
        %v974 = vmul.f32 %v970, %v952
        %v975 = vmul.f32 %v971, %v953
        %v976 = vmul.f32 %v972, %v954
        %v977 = vmul.f32 %v973, %v955
        %v978 = vadd.f32 %v931, %v974
        %v979 = vadd.f32 %v932, %v975
        %v980 = vadd.f32 %v933, %v976
        %v981 = vadd.f32 %v934, %v977
        %s982 = scalar_lea.vmem [#allocation6], 2304
        %v983 = vld [vmem:[%s982] sm:$0xff]
        %v984 = vld [vmem:[%s982 + $0x8] sm:$0xff]
        %v985 = vld [vmem:[%s982 + $0x10] sm:$0xff]
        %v986 = vld [vmem:[%s982 + $0x18] sm:$0xff]
        %v987 = vmul.f32 %v983, %v952
        %v988 = vmul.f32 %v984, %v953
        %v989 = vmul.f32 %v985, %v954
        %v990 = vmul.f32 %v986, %v955
        %v991 = vadd.f32 %v849, %v987
        %v992 = vadd.f32 %v850, %v988
        %v993 = vadd.f32 %v851, %v989
        %v994 = vadd.f32 %v852, %v990
        %s995 = scalar_lea.vmem [#allocation6], 2848
        %v996 = vld [vmem:[%s995] sm:$0xff]
        %v997 = vld [vmem:[%s995 + $0x8] sm:$0xff]
        %v998 = vld [vmem:[%s995 + $0x10] sm:$0xff]
        %v999 = vld [vmem:[%s995 + $0x18] sm:$0xff]
        %v1000 = vmul.f32 %v996, %v952
        %v1001 = vmul.f32 %v997, %v953
        %v1002 = vmul.f32 %v998, %v954
        %v1003 = vmul.f32 %v999, %v955
        %v1004 = vadd.f32 %v862, %v1000
        %v1005 = vadd.f32 %v863, %v1001
        %v1006 = vadd.f32 %v864, %v1002
        %v1007 = vadd.f32 %v865, %v1003
        %1008 = vrot.lane.b32.xlu0 %v336, 127
        %v1009 = vpop.permute.xlu0 %1008
        %1010 = vrot.lane.b32.xlu0 %v337, 127
        %v1011 = vpop.permute.xlu0 %1010
        %1012 = vrot.lane.b32.xlu0 %v338, 127
        %v1013 = vpop.permute.xlu0 %1012
        %1014 = vrot.lane.b32.xlu0 %v339, 127
        %v1015 = vpop.permute.xlu0 %1014
        %vm1016 = vcmp.lt.s32.totalorder %v349, 127
        %v1017 = vsel %vm1016, %v1013, %v1015
        %v1018 = vsel %vm1016, %v1011, %v1013
        %v1019 = vsel %vm1016, %v1009, %v1011
        %v1020 = vsel %vm1016, %v1015, %v1009
        %s1021 = scalar_lea.vmem [#allocation9], 160
        %v1022 = vld [vmem:[%s1021] sm:$0xff]
        %v1023 = vld [vmem:[%s1021 + $0x8] sm:$0xff]
        %v1024 = vld [vmem:[%s1021 + $0x10] sm:$0xff]
        %v1025 = vld [vmem:[%s1021 + $0x18] sm:$0xff]
        %v1026 = vmul.f32 %v1019, %v1022
        %v1027 = vmul.f32 %v1018, %v1023
        %v1028 = vmul.f32 %v1017, %v1024
        %v1029 = vmul.f32 %v1020, %v1025
        %v1030 = vadd.f32 %v944, %v1026
        %v1031 = vadd.f32 %v945, %v1027
        %v1032 = vadd.f32 %v946, %v1028
        %v1033 = vadd.f32 %v947, %v1029
        %s1034 = scalar_lea.vmem [#allocation10], 128
        %v1035 = vld [vmem:[%s1034] sm:$0xff]
        %v1036 = vld [vmem:[%s1034 + $0x8] sm:$0xff]
        %v1037 = vld [vmem:[%s1034 + $0x10] sm:$0xff]
        %v1038 = vld [vmem:[%s1034 + $0x18] sm:$0xff]
        %v1039 = vadd.f32 %v1019, %v1035
        %v1040 = vadd.f32 %v1018, %v1036
        %v1041 = vadd.f32 %v1017, %v1037
        %v1042 = vadd.f32 %v1020, %v1038
        %v1043 = vmax.f32 %v948, %v1039
        %v1044 = vmax.f32 %v949, %v1040
        %v1045 = vmax.f32 %v950, %v1041
        %v1046 = vmax.f32 %v951, %v1042
        %v1047 = vmax.f32 %v1019, 0.0
        %v1048 = vmax.f32 %v1018, 0.0
        %v1049 = vmax.f32 %v1017, 0.0
        %v1050 = vmax.f32 %v1020, 0.0
        %s1051 = scalar_lea.vmem [#allocation6], 160
        %v1052 = vld [vmem:[%s1051] sm:$0xff]
        %v1053 = vld [vmem:[%s1051 + $0x8] sm:$0xff]
        %v1054 = vld [vmem:[%s1051 + $0x10] sm:$0xff]
        %v1055 = vld [vmem:[%s1051 + $0x18] sm:$0xff]
        %v1056 = vmul.f32 %v1052, %v1047
        %v1057 = vmul.f32 %v1053, %v1048
        %v1058 = vmul.f32 %v1054, %v1049
        %v1059 = vmul.f32 %v1055, %v1050
        %v1060 = vadd.f32 %v965, %v1056
        %v1061 = vadd.f32 %v966, %v1057
        %v1062 = vadd.f32 %v967, %v1058
        %v1063 = vadd.f32 %v968, %v1059
        %s1064 = scalar_lea.vmem [#allocation6], 992
        %v1065 = vld [vmem:[%s1064] sm:$0xff]
        %v1066 = vld [vmem:[%s1064 + $0x8] sm:$0xff]
        %v1067 = vld [vmem:[%s1064 + $0x10] sm:$0xff]
        %v1068 = vld [vmem:[%s1064 + $0x18] sm:$0xff]
        %v1069 = vmul.f32 %v1065, %v1047
        %v1070 = vmul.f32 %v1066, %v1048
        %v1071 = vmul.f32 %v1067, %v1049
        %v1072 = vmul.f32 %v1068, %v1050
        %v1073 = vadd.f32 %v978, %v1069
        %v1074 = vadd.f32 %v979, %v1070
        %v1075 = vadd.f32 %v980, %v1071
        %v1076 = vadd.f32 %v981, %v1072
        %1077 = vrot.lane.b32.xlu0 %v336, 126
        %v1078 = vpop.permute.xlu0 %1077
        %1079 = vrot.lane.b32.xlu0 %v337, 126
        %v1080 = vpop.permute.xlu0 %1079
        %1081 = vrot.lane.b32.xlu0 %v338, 126
        %v1082 = vpop.permute.xlu0 %1081
        %1083 = vrot.lane.b32.xlu0 %v339, 126
        %v1084 = vpop.permute.xlu0 %1083
        %vm1085 = vcmp.lt.s32.totalorder %v349, 126
        %v1086 = vsel %vm1085, %v1082, %v1084
        %v1087 = vsel %vm1085, %v1080, %v1082
        %v1088 = vsel %vm1085, %v1078, %v1080
        %v1089 = vsel %vm1085, %v1084, %v1078
        %v1090 = vmax.f32 %v1088, 0.0
        %v1091 = vmax.f32 %v1087, 0.0
        %v1092 = vmax.f32 %v1086, 0.0
        %v1093 = vmax.f32 %v1089, 0.0
        %s1094 = scalar_lea.vmem [#allocation6], 1024
        %v1095 = vld [vmem:[%s1094] sm:$0xff]
        %v1096 = vld [vmem:[%s1094 + $0x8] sm:$0xff]
        %v1097 = vld [vmem:[%s1094 + $0x10] sm:$0xff]
        %v1098 = vld [vmem:[%s1094 + $0x18] sm:$0xff]
        %v1099 = vmul.f32 %v1095, %v1090
        %v1100 = vmul.f32 %v1096, %v1091
        %v1101 = vmul.f32 %v1097, %v1092
        %v1102 = vmul.f32 %v1098, %v1093
        %v1103 = vadd.f32 %v1073, %v1099
        %v1104 = vadd.f32 %v1074, %v1100
        %v1105 = vadd.f32 %v1075, %v1101
        %v1106 = vadd.f32 %v1076, %v1102
        %s1107 = scalar_lea.vmem [#allocation6], 2336
        %v1108 = vld [vmem:[%s1107] sm:$0xff]
        %v1109 = vld [vmem:[%s1107 + $0x8] sm:$0xff]
        %v1110 = vld [vmem:[%s1107 + $0x10] sm:$0xff]
        %v1111 = vld [vmem:[%s1107 + $0x18] sm:$0xff]
        %v1112 = vmul.f32 %v1108, %v1090
        %v1113 = vmul.f32 %v1109, %v1091
        %v1114 = vmul.f32 %v1110, %v1092
        %v1115 = vmul.f32 %v1111, %v1093
        %v1116 = vadd.f32 %v991, %v1112
        %v1117 = vadd.f32 %v992, %v1113
        %v1118 = vadd.f32 %v993, %v1114
        %v1119 = vadd.f32 %v994, %v1115
        %s1120 = scalar_lea.vmem [#allocation6], 2880
        %v1121 = vld [vmem:[%s1120] sm:$0xff]
        %v1122 = vld [vmem:[%s1120 + $0x8] sm:$0xff]
        %v1123 = vld [vmem:[%s1120 + $0x10] sm:$0xff]
        %v1124 = vld [vmem:[%s1120 + $0x18] sm:$0xff]
        %v1125 = vmul.f32 %v1121, %v1090
        %v1126 = vmul.f32 %v1122, %v1091
        %v1127 = vmul.f32 %v1123, %v1092
        %v1128 = vmul.f32 %v1124, %v1093
        %v1129 = vadd.f32 %v1004, %v1125
        %v1130 = vadd.f32 %v1005, %v1126
        %v1131 = vadd.f32 %v1006, %v1127
        %v1132 = vadd.f32 %v1007, %v1128
        %1133 = vrot.lane.b32.xlu0 %v336, 114
        %v1134 = vpop.permute.xlu0 %1133
        %1135 = vrot.lane.b32.xlu0 %v337, 114
        %v1136 = vpop.permute.xlu0 %1135
        %1137 = vrot.lane.b32.xlu0 %v338, 114
        %v1138 = vpop.permute.xlu0 %1137
        %1139 = vrot.lane.b32.xlu0 %v339, 114
        %v1140 = vpop.permute.xlu0 %1139
        %vm1141 = vcmp.lt.s32.totalorder %v349, 114
        %v1142 = vsel %vm1141, %v1138, %v1140
        %v1143 = vsel %vm1141, %v1136, %v1138
        %v1144 = vsel %vm1141, %v1134, %v1136
        %v1145 = vsel %vm1141, %v1140, %v1134
        %v1146 = vmax.f32 %v1144, 0.0
        %v1147 = vmax.f32 %v1143, 0.0
        %v1148 = vmax.f32 %v1142, 0.0
        %v1149 = vmax.f32 %v1145, 0.0
        %s1150 = scalar_lea.vmem [#allocation6], 1056
        %v1151 = vld [vmem:[%s1150] sm:$0xff]
        %v1152 = vld [vmem:[%s1150 + $0x8] sm:$0xff]
        %v1153 = vld [vmem:[%s1150 + $0x10] sm:$0xff]
        %v1154 = vld [vmem:[%s1150 + $0x18] sm:$0xff]
        %v1155 = vmul.f32 %v1151, %v1146
        %v1156 = vmul.f32 %v1152, %v1147
        %v1157 = vmul.f32 %v1153, %v1148
        %v1158 = vmul.f32 %v1154, %v1149
        %v1159 = vadd.f32 %v1103, %v1155
        %v1160 = vadd.f32 %v1104, %v1156
        %v1161 = vadd.f32 %v1105, %v1157
        %v1162 = vadd.f32 %v1106, %v1158
        %1163 = vrot.lane.b32.xlu0 %v336, 113
        %v1164 = vpop.permute.xlu0 %1163
        %1165 = vrot.lane.b32.xlu0 %v337, 113
        %v1166 = vpop.permute.xlu0 %1165
        %1167 = vrot.lane.b32.xlu0 %v338, 113
        %v1168 = vpop.permute.xlu0 %1167
        %1169 = vrot.lane.b32.xlu0 %v339, 113
        %v1170 = vpop.permute.xlu0 %1169
        %vm1171 = vcmp.lt.s32.totalorder %v349, 113
        %v1172 = vsel %vm1171, %v1168, %v1170
        %v1173 = vsel %vm1171, %v1166, %v1168
        %v1174 = vsel %vm1171, %v1164, %v1166
        %v1175 = vsel %vm1171, %v1170, %v1164
        %s1176 = scalar_lea.vmem [#allocation9], 192
        %v1177 = vld [vmem:[%s1176] sm:$0xff]
        %v1178 = vld [vmem:[%s1176 + $0x8] sm:$0xff]
        %v1179 = vld [vmem:[%s1176 + $0x10] sm:$0xff]
        %v1180 = vld [vmem:[%s1176 + $0x18] sm:$0xff]
        %v1181 = vmul.f32 %v1174, %v1177
        %v1182 = vmul.f32 %v1173, %v1178
        %v1183 = vmul.f32 %v1172, %v1179
        %v1184 = vmul.f32 %v1175, %v1180
        %v1185 = vadd.f32 %v1030, %v1181
        %v1186 = vadd.f32 %v1031, %v1182
        %v1187 = vadd.f32 %v1032, %v1183
        %v1188 = vadd.f32 %v1033, %v1184
        %s1189 = scalar_lea.vmem [#allocation10], 160
        %v1190 = vld [vmem:[%s1189] sm:$0xff]
        %v1191 = vld [vmem:[%s1189 + $0x8] sm:$0xff]
        %v1192 = vld [vmem:[%s1189 + $0x10] sm:$0xff]
        %v1193 = vld [vmem:[%s1189 + $0x18] sm:$0xff]
        %v1194 = vadd.f32 %v1174, %v1190
        %v1195 = vadd.f32 %v1173, %v1191
        %v1196 = vadd.f32 %v1172, %v1192
        %v1197 = vadd.f32 %v1175, %v1193
        %v1198 = vmax.f32 %v1043, %v1194
        %v1199 = vmax.f32 %v1044, %v1195
        %v1200 = vmax.f32 %v1045, %v1196
        %v1201 = vmax.f32 %v1046, %v1197
        %v1202 = vmax.f32 %v1174, 0.0
        %v1203 = vmax.f32 %v1173, 0.0
        %v1204 = vmax.f32 %v1172, 0.0
        %v1205 = vmax.f32 %v1175, 0.0
        %s1206 = scalar_lea.vmem [#allocation6], 192
        %v1207 = vld [vmem:[%s1206] sm:$0xff]
        %v1208 = vld [vmem:[%s1206 + $0x8] sm:$0xff]
        %v1209 = vld [vmem:[%s1206 + $0x10] sm:$0xff]
        %v1210 = vld [vmem:[%s1206 + $0x18] sm:$0xff]
        %v1211 = vmul.f32 %v1207, %v1202
        %v1212 = vmul.f32 %v1208, %v1203
        %v1213 = vmul.f32 %v1209, %v1204
        %v1214 = vmul.f32 %v1210, %v1205
        %v1215 = vadd.f32 %v1060, %v1211
        %v1216 = vadd.f32 %v1061, %v1212
        %v1217 = vadd.f32 %v1062, %v1213
        %v1218 = vadd.f32 %v1063, %v1214
        %s1219 = scalar_lea.vmem [#allocation6], 1088
        %v1220 = vld [vmem:[%s1219] sm:$0xff]
        %v1221 = vld [vmem:[%s1219 + $0x8] sm:$0xff]
        %v1222 = vld [vmem:[%s1219 + $0x10] sm:$0xff]
        %v1223 = vld [vmem:[%s1219 + $0x18] sm:$0xff]
        %v1224 = vmul.f32 %v1220, %v1202
        %v1225 = vmul.f32 %v1221, %v1203
        %v1226 = vmul.f32 %v1222, %v1204
        %v1227 = vmul.f32 %v1223, %v1205
        %v1228 = vadd.f32 %v1159, %v1224
        %v1229 = vadd.f32 %v1160, %v1225
        %v1230 = vadd.f32 %v1161, %v1226
        %v1231 = vadd.f32 %v1162, %v1227
        %1232 = vrot.lane.b32.xlu0 %v336, 112
        %v1233 = vpop.permute.xlu0 %1232
        %1234 = vrot.lane.b32.xlu0 %v337, 112
        %v1235 = vpop.permute.xlu0 %1234
        %1236 = vrot.lane.b32.xlu0 %v338, 112
        %v1237 = vpop.permute.xlu0 %1236
        %1238 = vrot.lane.b32.xlu0 %v339, 112
        %v1239 = vpop.permute.xlu0 %1238
        %vm1240 = vcmp.lt.s32.totalorder %v349, 112
        %v1241 = vsel %vm1240, %v1237, %v1239
        %v1242 = vsel %vm1240, %v1235, %v1237
        %v1243 = vsel %vm1240, %v1233, %v1235
        %v1244 = vsel %vm1240, %v1239, %v1233
        %s1245 = scalar_lea.vmem [#allocation9], 224
        %v1246 = vld [vmem:[%s1245] sm:$0xff]
        %v1247 = vld [vmem:[%s1245 + $0x8] sm:$0xff]
        %v1248 = vld [vmem:[%s1245 + $0x10] sm:$0xff]
        %v1249 = vld [vmem:[%s1245 + $0x18] sm:$0xff]
        %v1250 = vmul.f32 %v1243, %v1246
        %v1251 = vmul.f32 %v1242, %v1247
        %v1252 = vmul.f32 %v1241, %v1248
        %v1253 = vmul.f32 %v1244, %v1249
        %v1254 = vadd.f32 %v1185, %v1250
        %v1255 = vadd.f32 %v1186, %v1251
        %v1256 = vadd.f32 %v1187, %v1252
        %v1257 = vadd.f32 %v1188, %v1253
        %s1258 = scalar_lea.vmem [#allocation10], 192
        %v1259 = vld [vmem:[%s1258] sm:$0xff]
        %v1260 = vld [vmem:[%s1258 + $0x8] sm:$0xff]
        %v1261 = vld [vmem:[%s1258 + $0x10] sm:$0xff]
        %v1262 = vld [vmem:[%s1258 + $0x18] sm:$0xff]
        %v1263 = vadd.f32 %v1243, %v1259
        %v1264 = vadd.f32 %v1242, %v1260
        %v1265 = vadd.f32 %v1241, %v1261
        %v1266 = vadd.f32 %v1244, %v1262
        %v1267 = vmax.f32 %v1198, %v1263
        %v1268 = vmax.f32 %v1199, %v1264
        %v1269 = vmax.f32 %v1200, %v1265
        %v1270 = vmax.f32 %v1201, %v1266
        %v1271 = vmax.f32 %v1243, 0.0
        %v1272 = vmax.f32 %v1242, 0.0
        %v1273 = vmax.f32 %v1241, 0.0
        %v1274 = vmax.f32 %v1244, 0.0
        %s1275 = scalar_lea.vmem [#allocation6], 224
        %v1276 = vld [vmem:[%s1275] sm:$0xff]
        %v1277 = vld [vmem:[%s1275 + $0x8] sm:$0xff]
        %v1278 = vld [vmem:[%s1275 + $0x10] sm:$0xff]
        %v1279 = vld [vmem:[%s1275 + $0x18] sm:$0xff]
        %v1280 = vmul.f32 %v1276, %v1271
        %v1281 = vmul.f32 %v1277, %v1272
        %v1282 = vmul.f32 %v1278, %v1273
        %v1283 = vmul.f32 %v1279, %v1274
        %v1284 = vadd.f32 %v1215, %v1280
        %v1285 = vadd.f32 %v1216, %v1281
        %v1286 = vadd.f32 %v1217, %v1282
        %v1287 = vadd.f32 %v1218, %v1283
        %s1288 = scalar_lea.vmem [#allocation6], 1120
        %v1289 = vld [vmem:[%s1288] sm:$0xff]
        %v1290 = vld [vmem:[%s1288 + $0x8] sm:$0xff]
        %v1291 = vld [vmem:[%s1288 + $0x10] sm:$0xff]
        %v1292 = vld [vmem:[%s1288 + $0x18] sm:$0xff]
        %v1293 = vmul.f32 %v1289, %v1271
        %v1294 = vmul.f32 %v1290, %v1272
        %v1295 = vmul.f32 %v1291, %v1273
        %v1296 = vmul.f32 %v1292, %v1274
        %v1297 = vadd.f32 %v1228, %v1293
        %v1298 = vadd.f32 %v1229, %v1294
        %v1299 = vadd.f32 %v1230, %v1295
        %v1300 = vadd.f32 %v1231, %v1296
        %1301 = vrot.lane.b32.xlu0 %v336, 111
        %v1302 = vpop.permute.xlu0 %1301
        %1303 = vrot.lane.b32.xlu0 %v337, 111
        %v1304 = vpop.permute.xlu0 %1303
        %1305 = vrot.lane.b32.xlu0 %v338, 111
        %v1306 = vpop.permute.xlu0 %1305
        %1307 = vrot.lane.b32.xlu0 %v339, 111
        %v1308 = vpop.permute.xlu0 %1307
        %vm1309 = vcmp.lt.s32.totalorder %v349, 111
        %v1310 = vsel %vm1309, %v1306, %v1308
        %v1311 = vsel %vm1309, %v1304, %v1306
        %v1312 = vsel %vm1309, %v1302, %v1304
        %v1313 = vsel %vm1309, %v1308, %v1302
        %s1314 = scalar_lea.vmem [#allocation9], 256
        %v1315 = vld [vmem:[%s1314] sm:$0xff]
        %v1316 = vld [vmem:[%s1314 + $0x8] sm:$0xff]
        %v1317 = vld [vmem:[%s1314 + $0x10] sm:$0xff]
        %v1318 = vld [vmem:[%s1314 + $0x18] sm:$0xff]
        %v1319 = vmul.f32 %v1312, %v1315
        %v1320 = vmul.f32 %v1311, %v1316
        %v1321 = vmul.f32 %v1310, %v1317
        %v1322 = vmul.f32 %v1313, %v1318
        %v1323 = vadd.f32 %v1254, %v1319
        %v1324 = vadd.f32 %v1255, %v1320
        %v1325 = vadd.f32 %v1256, %v1321
        %v1326 = vadd.f32 %v1257, %v1322
        %s1327 = scalar_lea.vmem [#allocation10], 224
        %v1328 = vld [vmem:[%s1327] sm:$0xff]
        %v1329 = vld [vmem:[%s1327 + $0x8] sm:$0xff]
        %v1330 = vld [vmem:[%s1327 + $0x10] sm:$0xff]
        %v1331 = vld [vmem:[%s1327 + $0x18] sm:$0xff]
        %v1332 = vadd.f32 %v1312, %v1328
        %v1333 = vadd.f32 %v1311, %v1329
        %v1334 = vadd.f32 %v1310, %v1330
        %v1335 = vadd.f32 %v1313, %v1331
        %v1336 = vmax.f32 %v1267, %v1332
        %v1337 = vmax.f32 %v1268, %v1333
        %v1338 = vmax.f32 %v1269, %v1334
        %v1339 = vmax.f32 %v1270, %v1335
        %v1340 = vmax.f32 %v1312, 0.0
        %v1341 = vmax.f32 %v1311, 0.0
        %v1342 = vmax.f32 %v1310, 0.0
        %v1343 = vmax.f32 %v1313, 0.0
        %s1344 = scalar_lea.vmem [#allocation6], 256
        %v1345 = vld [vmem:[%s1344] sm:$0xff]
        %v1346 = vld [vmem:[%s1344 + $0x8] sm:$0xff]
        %v1347 = vld [vmem:[%s1344 + $0x10] sm:$0xff]
        %v1348 = vld [vmem:[%s1344 + $0x18] sm:$0xff]
        %v1349 = vmul.f32 %v1345, %v1340
        %v1350 = vmul.f32 %v1346, %v1341
        %v1351 = vmul.f32 %v1347, %v1342
        %v1352 = vmul.f32 %v1348, %v1343
        %v1353 = vadd.f32 %v1284, %v1349
        %v1354 = vadd.f32 %v1285, %v1350
        %v1355 = vadd.f32 %v1286, %v1351
        %v1356 = vadd.f32 %v1287, %v1352
        %s1357 = scalar_lea.vmem [#allocation6], 1152
        %v1358 = vld [vmem:[%s1357] sm:$0xff]
        %v1359 = vld [vmem:[%s1357 + $0x8] sm:$0xff]
        %v1360 = vld [vmem:[%s1357 + $0x10] sm:$0xff]
        %v1361 = vld [vmem:[%s1357 + $0x18] sm:$0xff]
        %v1362 = vmul.f32 %v1358, %v1340
        %v1363 = vmul.f32 %v1359, %v1341
        %v1364 = vmul.f32 %v1360, %v1342
        %v1365 = vmul.f32 %v1361, %v1343
        %v1366 = vadd.f32 %v1297, %v1362
        %v1367 = vadd.f32 %v1298, %v1363
        %v1368 = vadd.f32 %v1299, %v1364
        %v1369 = vadd.f32 %v1300, %v1365
        %1370 = vrot.lane.b32.xlu0 %v336, 110
        %v1371 = vpop.permute.xlu0 %1370
        %1372 = vrot.lane.b32.xlu0 %v337, 110
        %v1373 = vpop.permute.xlu0 %1372
        %1374 = vrot.lane.b32.xlu0 %v338, 110
        %v1375 = vpop.permute.xlu0 %1374
        %1376 = vrot.lane.b32.xlu0 %v339, 110
        %v1377 = vpop.permute.xlu0 %1376
        %vm1378 = vcmp.lt.s32.totalorder %v349, 110
        %v1379 = vsel %vm1378, %v1375, %v1377
        %v1380 = vsel %vm1378, %v1373, %v1375
        %v1381 = vsel %vm1378, %v1371, %v1373
        %v1382 = vsel %vm1378, %v1377, %v1371
        %v1383 = vmax.f32 %v1381, 0.0
        %v1384 = vmax.f32 %v1380, 0.0
        %v1385 = vmax.f32 %v1379, 0.0
        %v1386 = vmax.f32 %v1382, 0.0
        %s1387 = scalar_lea.vmem [#allocation6], 1184
        %v1388 = vld [vmem:[%s1387] sm:$0xff]
        %v1389 = vld [vmem:[%s1387 + $0x8] sm:$0xff]
        %v1390 = vld [vmem:[%s1387 + $0x10] sm:$0xff]
        %v1391 = vld [vmem:[%s1387 + $0x18] sm:$0xff]
        %v1392 = vmul.f32 %v1388, %v1383
        %v1393 = vmul.f32 %v1389, %v1384
        %v1394 = vmul.f32 %v1390, %v1385
        %v1395 = vmul.f32 %v1391, %v1386
        %v1396 = vadd.f32 %v1366, %v1392
        %v1397 = vadd.f32 %v1367, %v1393
        %v1398 = vadd.f32 %v1368, %v1394
        %v1399 = vadd.f32 %v1369, %v1395
        %1400 = vrot.lane.b32.xlu0 %v336, 98
        %v1401 = vpop.permute.xlu0 %1400
        %1402 = vrot.lane.b32.xlu0 %v337, 98
        %v1403 = vpop.permute.xlu0 %1402
        %1404 = vrot.lane.b32.xlu0 %v338, 98
        %v1405 = vpop.permute.xlu0 %1404
        %1406 = vrot.lane.b32.xlu0 %v339, 98
        %v1407 = vpop.permute.xlu0 %1406
        %vm1408 = vcmp.lt.s32.totalorder %v349, 98
        %v1409 = vsel %vm1408, %v1405, %v1407
        %v1410 = vsel %vm1408, %v1403, %v1405
        %v1411 = vsel %vm1408, %v1401, %v1403
        %v1412 = vsel %vm1408, %v1407, %v1401
        %v1413 = vmax.f32 %v1411, 0.0
        %v1414 = vmax.f32 %v1410, 0.0
        %v1415 = vmax.f32 %v1409, 0.0
        %v1416 = vmax.f32 %v1412, 0.0
        %s1417 = scalar_lea.vmem [#allocation6], 1216
        %v1418 = vld [vmem:[%s1417] sm:$0xff]
        %v1419 = vld [vmem:[%s1417 + $0x8] sm:$0xff]
        %v1420 = vld [vmem:[%s1417 + $0x10] sm:$0xff]
        %v1421 = vld [vmem:[%s1417 + $0x18] sm:$0xff]
        %v1422 = vmul.f32 %v1418, %v1413
        %v1423 = vmul.f32 %v1419, %v1414
        %v1424 = vmul.f32 %v1420, %v1415
        %v1425 = vmul.f32 %v1421, %v1416
        %v1426 = vadd.f32 %v1396, %v1422
        %v1427 = vadd.f32 %v1397, %v1423
        %v1428 = vadd.f32 %v1398, %v1424
        %v1429 = vadd.f32 %v1399, %v1425
        %s1430 = scalar_lea.vmem [#allocation6], 2368
        %v1431 = vld [vmem:[%s1430] sm:$0xff]
        %v1432 = vld [vmem:[%s1430 + $0x8] sm:$0xff]
        %v1433 = vld [vmem:[%s1430 + $0x10] sm:$0xff]
        %v1434 = vld [vmem:[%s1430 + $0x18] sm:$0xff]
        %v1435 = vmul.f32 %v1431, %v1413
        %v1436 = vmul.f32 %v1432, %v1414
        %v1437 = vmul.f32 %v1433, %v1415
        %v1438 = vmul.f32 %v1434, %v1416
        %v1439 = vadd.f32 %v1116, %v1435
        %v1440 = vadd.f32 %v1117, %v1436
        %v1441 = vadd.f32 %v1118, %v1437
        %v1442 = vadd.f32 %v1119, %v1438
        %s1443 = scalar_lea.vmem [#allocation6], 2976
        %v1444 = vld [vmem:[%s1443] sm:$0xff]
        %v1445 = vld [vmem:[%s1443 + $0x8] sm:$0xff]
        %v1446 = vld [vmem:[%s1443 + $0x10] sm:$0xff]
        %v1447 = vld [vmem:[%s1443 + $0x18] sm:$0xff]
        %v1448 = vmul.f32 %v1444, %v1413
        %v1449 = vmul.f32 %v1445, %v1414
        %v1450 = vmul.f32 %v1446, %v1415
        %v1451 = vmul.f32 %v1447, %v1416
        %v1452 = vadd.f32 %v1129, %v1448
        %v1453 = vadd.f32 %v1130, %v1449
        %v1454 = vadd.f32 %v1131, %v1450
        %v1455 = vadd.f32 %v1132, %v1451
        %1456 = vrot.lane.b32.xlu0 %v336, 97
        %v1457 = vpop.permute.xlu0 %1456
        %1458 = vrot.lane.b32.xlu0 %v337, 97
        %v1459 = vpop.permute.xlu0 %1458
        %1460 = vrot.lane.b32.xlu0 %v338, 97
        %v1461 = vpop.permute.xlu0 %1460
        %1462 = vrot.lane.b32.xlu0 %v339, 97
        %v1463 = vpop.permute.xlu0 %1462
        %vm1464 = vcmp.lt.s32.totalorder %v349, 97
        %v1465 = vsel %vm1464, %v1461, %v1463
        %v1466 = vsel %vm1464, %v1459, %v1461
        %v1467 = vsel %vm1464, %v1457, %v1459
        %v1468 = vsel %vm1464, %v1463, %v1457
        %v1469 = vmax.f32 %v1467, 0.0
        %v1470 = vmax.f32 %v1466, 0.0
        %v1471 = vmax.f32 %v1465, 0.0
        %v1472 = vmax.f32 %v1468, 0.0
        %s1473 = scalar_lea.vmem [#allocation6], 1248
        %v1474 = vld [vmem:[%s1473] sm:$0xff]
        %v1475 = vld [vmem:[%s1473 + $0x8] sm:$0xff]
        %v1476 = vld [vmem:[%s1473 + $0x10] sm:$0xff]
        %v1477 = vld [vmem:[%s1473 + $0x18] sm:$0xff]
        %v1478 = vmul.f32 %v1474, %v1469
        %v1479 = vmul.f32 %v1475, %v1470
        %v1480 = vmul.f32 %v1476, %v1471
        %v1481 = vmul.f32 %v1477, %v1472
        %v1482 = vadd.f32 %v1426, %v1478
        %v1483 = vadd.f32 %v1427, %v1479
        %v1484 = vadd.f32 %v1428, %v1480
        %v1485 = vadd.f32 %v1429, %v1481
        %1486 = vrot.lane.b32.xlu0 %v336, 96
        %v1487 = vpop.permute.xlu0 %1486
        %1488 = vrot.lane.b32.xlu0 %v337, 96
        %v1489 = vpop.permute.xlu0 %1488
        %1490 = vrot.lane.b32.xlu0 %v338, 96
        %v1491 = vpop.permute.xlu0 %1490
        %1492 = vrot.lane.b32.xlu0 %v339, 96
        %v1493 = vpop.permute.xlu0 %1492
        %vm1494 = vcmp.lt.s32.totalorder %v349, 96
        %v1495 = vsel %vm1494, %v1491, %v1493
        %v1496 = vsel %vm1494, %v1489, %v1491
        %v1497 = vsel %vm1494, %v1487, %v1489
        %v1498 = vsel %vm1494, %v1493, %v1487
        %v1499 = vmax.f32 %v1497, 0.0
        %v1500 = vmax.f32 %v1496, 0.0
        %v1501 = vmax.f32 %v1495, 0.0
        %v1502 = vmax.f32 %v1498, 0.0
        %s1503 = scalar_lea.vmem [#allocation6], 1280
        %v1504 = vld [vmem:[%s1503] sm:$0xff]
        %v1505 = vld [vmem:[%s1503 + $0x8] sm:$0xff]
        %v1506 = vld [vmem:[%s1503 + $0x10] sm:$0xff]
        %v1507 = vld [vmem:[%s1503 + $0x18] sm:$0xff]
        %v1508 = vmul.f32 %v1504, %v1499
        %v1509 = vmul.f32 %v1505, %v1500
        %v1510 = vmul.f32 %v1506, %v1501
        %v1511 = vmul.f32 %v1507, %v1502
        %v1512 = vadd.f32 %v1482, %v1508
        %v1513 = vadd.f32 %v1483, %v1509
        %v1514 = vadd.f32 %v1484, %v1510
        %v1515 = vadd.f32 %v1485, %v1511
        %s1516 = scalar_lea.vmem [#allocation6], 2400
        %v1517 = vld [vmem:[%s1516] sm:$0xff]
        %v1518 = vld [vmem:[%s1516 + $0x8] sm:$0xff]
        %v1519 = vld [vmem:[%s1516 + $0x10] sm:$0xff]
        %v1520 = vld [vmem:[%s1516 + $0x18] sm:$0xff]
        %v1521 = vmul.f32 %v1517, %v1499
        %v1522 = vmul.f32 %v1518, %v1500
        %v1523 = vmul.f32 %v1519, %v1501
        %v1524 = vmul.f32 %v1520, %v1502
        %v1525 = vadd.f32 %v1439, %v1521
        %v1526 = vadd.f32 %v1440, %v1522
        %v1527 = vadd.f32 %v1441, %v1523
        %v1528 = vadd.f32 %v1442, %v1524
        %s1529 = scalar_lea.vmem [#allocation6], 3008
        %v1530 = vld [vmem:[%s1529] sm:$0xff]
        %v1531 = vld [vmem:[%s1529 + $0x8] sm:$0xff]
        %v1532 = vld [vmem:[%s1529 + $0x10] sm:$0xff]
        %v1533 = vld [vmem:[%s1529 + $0x18] sm:$0xff]
        %v1534 = vmul.f32 %v1530, %v1499
        %v1535 = vmul.f32 %v1531, %v1500
        %v1536 = vmul.f32 %v1532, %v1501
        %v1537 = vmul.f32 %v1533, %v1502
        %v1538 = vadd.f32 %v1452, %v1534
        %v1539 = vadd.f32 %v1453, %v1535
        %v1540 = vadd.f32 %v1454, %v1536
        %v1541 = vadd.f32 %v1455, %v1537
        %1542 = vrot.lane.b32.xlu0 %v336, 95
        %v1543 = vpop.permute.xlu0 %1542
        %1544 = vrot.lane.b32.xlu0 %v337, 95
        %v1545 = vpop.permute.xlu0 %1544
        %1546 = vrot.lane.b32.xlu0 %v338, 95
        %v1547 = vpop.permute.xlu0 %1546
        %1548 = vrot.lane.b32.xlu0 %v339, 95
        %v1549 = vpop.permute.xlu0 %1548
        %vm1550 = vcmp.lt.s32.totalorder %v349, 95
        %v1551 = vsel %vm1550, %v1547, %v1549
        %v1552 = vsel %vm1550, %v1545, %v1547
        %v1553 = vsel %vm1550, %v1543, %v1545
        %v1554 = vsel %vm1550, %v1549, %v1543
        %v1555 = vmax.f32 %v1553, 0.0
        %v1556 = vmax.f32 %v1552, 0.0
        %v1557 = vmax.f32 %v1551, 0.0
        %v1558 = vmax.f32 %v1554, 0.0
        %s1559 = scalar_lea.vmem [#allocation6], 1312
        %v1560 = vld [vmem:[%s1559] sm:$0xff]
        %v1561 = vld [vmem:[%s1559 + $0x8] sm:$0xff]
        %v1562 = vld [vmem:[%s1559 + $0x10] sm:$0xff]
        %v1563 = vld [vmem:[%s1559 + $0x18] sm:$0xff]
        %v1564 = vmul.f32 %v1560, %v1555
        %v1565 = vmul.f32 %v1561, %v1556
        %v1566 = vmul.f32 %v1562, %v1557
        %v1567 = vmul.f32 %v1563, %v1558
        %v1568 = vadd.f32 %v1512, %v1564
        %v1569 = vadd.f32 %v1513, %v1565
        %v1570 = vadd.f32 %v1514, %v1566
        %v1571 = vadd.f32 %v1515, %v1567
        %1572 = vrot.lane.b32.xlu0 %v336, 94
        %v1573 = vpop.permute.xlu0 %1572
        %1574 = vrot.lane.b32.xlu0 %v337, 94
        %v1575 = vpop.permute.xlu0 %1574
        %1576 = vrot.lane.b32.xlu0 %v338, 94
        %v1577 = vpop.permute.xlu0 %1576
        %1578 = vrot.lane.b32.xlu0 %v339, 94
        %v1579 = vpop.permute.xlu0 %1578
        %vm1580 = vcmp.lt.s32.totalorder %v349, 94
        %v1581 = vsel %vm1580, %v1577, %v1579
        %v1582 = vsel %vm1580, %v1575, %v1577
        %v1583 = vsel %vm1580, %v1573, %v1575
        %v1584 = vsel %vm1580, %v1579, %v1573
        %v1585 = vmax.f32 %v1583, 0.0
        %v1586 = vmax.f32 %v1582, 0.0
        %v1587 = vmax.f32 %v1581, 0.0
        %v1588 = vmax.f32 %v1584, 0.0
        %s1589 = scalar_lea.vmem [#allocation6], 1344
        %v1590 = vld [vmem:[%s1589] sm:$0xff]
        %v1591 = vld [vmem:[%s1589 + $0x8] sm:$0xff]
        %v1592 = vld [vmem:[%s1589 + $0x10] sm:$0xff]
        %v1593 = vld [vmem:[%s1589 + $0x18] sm:$0xff]
        %v1594 = vmul.f32 %v1590, %v1585
        %v1595 = vmul.f32 %v1591, %v1586
        %v1596 = vmul.f32 %v1592, %v1587
        %v1597 = vmul.f32 %v1593, %v1588
        %v1598 = vadd.f32 %v1568, %v1594
        %v1599 = vadd.f32 %v1569, %v1595
        %v1600 = vadd.f32 %v1570, %v1596
        %v1601 = vadd.f32 %v1571, %v1597
        %s1602 = scalar_lea.vmem [#allocation6], 2432
        %v1603 = vld [vmem:[%s1602] sm:$0xff]
        %v1604 = vld [vmem:[%s1602 + $0x8] sm:$0xff]
        %v1605 = vld [vmem:[%s1602 + $0x10] sm:$0xff]
        %v1606 = vld [vmem:[%s1602 + $0x18] sm:$0xff]
        %v1607 = vmul.f32 %v1603, %v1585
        %v1608 = vmul.f32 %v1604, %v1586
        %v1609 = vmul.f32 %v1605, %v1587
        %v1610 = vmul.f32 %v1606, %v1588
        %v1611 = vadd.f32 %v1525, %v1607
        %v1612 = vadd.f32 %v1526, %v1608
        %v1613 = vadd.f32 %v1527, %v1609
        %v1614 = vadd.f32 %v1528, %v1610
        %s1615 = scalar_lea.vmem [#allocation6], 3040
        %v1616 = vld [vmem:[%s1615] sm:$0xff]
        %v1617 = vld [vmem:[%s1615 + $0x8] sm:$0xff]
        %v1618 = vld [vmem:[%s1615 + $0x10] sm:$0xff]
        %v1619 = vld [vmem:[%s1615 + $0x18] sm:$0xff]
        %v1620 = vmul.f32 %v1616, %v1585
        %v1621 = vmul.f32 %v1617, %v1586
        %v1622 = vmul.f32 %v1618, %v1587
        %v1623 = vmul.f32 %v1619, %v1588
        %v1624 = vadd.f32 %v1538, %v1620
        %v1625 = vadd.f32 %v1539, %v1621
        %v1626 = vadd.f32 %v1540, %v1622
        %v1627 = vadd.f32 %v1541, %v1623
        %1628 = vrot.lane.b32.xlu0 %v336, 68
        %v1629 = vpop.permute.xlu0 %1628
        %1630 = vrot.lane.b32.xlu0 %v337, 68
        %v1631 = vpop.permute.xlu0 %1630
        %1632 = vrot.lane.b32.xlu0 %v338, 68
        %v1633 = vpop.permute.xlu0 %1632
        %1634 = vrot.lane.b32.xlu0 %v339, 68
        %v1635 = vpop.permute.xlu0 %1634
        %vm1636 = vcmp.lt.s32.totalorder %v349, 68
        %v1637 = vsel %vm1636, %v1633, %v1635
        %v1638 = vsel %vm1636, %v1631, %v1633
        %v1639 = vsel %vm1636, %v1629, %v1631
        %v1640 = vsel %vm1636, %v1635, %v1629
        %v1641 = vmax.f32 %v1640, 0.0
        %v1642 = vmax.f32 %v1639, 0.0
        %v1643 = vmax.f32 %v1638, 0.0
        %v1644 = vmax.f32 %v1637, 0.0
        %s1645 = scalar_lea.vmem [#allocation6], 2464
        %v1646 = vld [vmem:[%s1645] sm:$0xff]
        %v1647 = vld [vmem:[%s1645 + $0x8] sm:$0xff]
        %v1648 = vld [vmem:[%s1645 + $0x10] sm:$0xff]
        %v1649 = vld [vmem:[%s1645 + $0x18] sm:$0xff]
        %v1650 = vmul.f32 %v1646, %v1641
        %v1651 = vmul.f32 %v1647, %v1642
        %v1652 = vmul.f32 %v1648, %v1643
        %v1653 = vmul.f32 %v1649, %v1644
        %v1654 = vadd.f32 %v1624, %v1650
        %v1655 = vadd.f32 %v1625, %v1651
        %v1656 = vadd.f32 %v1626, %v1652
        %v1657 = vadd.f32 %v1627, %v1653
        %1658 = vrot.lane.b32.xlu0 %v336, 66
        %v1659 = vpop.permute.xlu0 %1658
        %1660 = vrot.lane.b32.xlu0 %v337, 66
        %v1661 = vpop.permute.xlu0 %1660
        %1662 = vrot.lane.b32.xlu0 %v338, 66
        %v1663 = vpop.permute.xlu0 %1662
        %1664 = vrot.lane.b32.xlu0 %v339, 66
        %v1665 = vpop.permute.xlu0 %1664
        %vm1666 = vcmp.lt.s32.totalorder %v349, 66
        %v1667 = vsel %vm1666, %v1663, %v1665
        %v1668 = vsel %vm1666, %v1661, %v1663
        %v1669 = vsel %vm1666, %v1659, %v1661
        %v1670 = vsel %vm1666, %v1665, %v1659
        %v1671 = vmax.f32 %v1670, 0.0
        %v1672 = vmax.f32 %v1669, 0.0
        %v1673 = vmax.f32 %v1668, 0.0
        %v1674 = vmax.f32 %v1667, 0.0
        %s1675 = scalar_lea.vmem [#allocation6], 2496
        %v1676 = vld [vmem:[%s1675] sm:$0xff]
        %v1677 = vld [vmem:[%s1675 + $0x8] sm:$0xff]
        %v1678 = vld [vmem:[%s1675 + $0x10] sm:$0xff]
        %v1679 = vld [vmem:[%s1675 + $0x18] sm:$0xff]
        %v1680 = vmul.f32 %v1676, %v1671
        %v1681 = vmul.f32 %v1677, %v1672
        %v1682 = vmul.f32 %v1678, %v1673
        %v1683 = vmul.f32 %v1679, %v1674
        %v1684 = vadd.f32 %v1654, %v1680
        %v1685 = vadd.f32 %v1655, %v1681
        %v1686 = vadd.f32 %v1656, %v1682
        %v1687 = vadd.f32 %v1657, %v1683
        %1688 = vrot.lane.b32.xlu0 %v336, 64
        %v1689 = vpop.permute.xlu0 %1688
        %1690 = vrot.lane.b32.xlu0 %v337, 64
        %v1691 = vpop.permute.xlu0 %1690
        %1692 = vrot.lane.b32.xlu0 %v338, 64
        %v1693 = vpop.permute.xlu0 %1692
        %1694 = vrot.lane.b32.xlu0 %v339, 64
        %v1695 = vpop.permute.xlu0 %1694
        %vm1696 = vcmp.lt.s32.totalorder %v349, 64
        %v1697 = vsel %vm1696, %v1693, %v1695
        %v1698 = vsel %vm1696, %v1691, %v1693
        %v1699 = vsel %vm1696, %v1689, %v1691
        %v1700 = vsel %vm1696, %v1695, %v1689
        %v1701 = vmax.f32 %v1700, 0.0
        %v1702 = vmax.f32 %v1699, 0.0
        %v1703 = vmax.f32 %v1698, 0.0
        %v1704 = vmax.f32 %v1697, 0.0
        %s1705 = scalar_lea.vmem [#allocation6], 2528
        %v1706 = vld [vmem:[%s1705] sm:$0xff]
        %v1707 = vld [vmem:[%s1705 + $0x8] sm:$0xff]
        %v1708 = vld [vmem:[%s1705 + $0x10] sm:$0xff]
        %v1709 = vld [vmem:[%s1705 + $0x18] sm:$0xff]
        %v1710 = vmul.f32 %v1706, %v1701
        %v1711 = vmul.f32 %v1707, %v1702
        %v1712 = vmul.f32 %v1708, %v1703
        %v1713 = vmul.f32 %v1709, %v1704
        %v1714 = vadd.f32 %v1684, %v1710
        %v1715 = vadd.f32 %v1685, %v1711
        %v1716 = vadd.f32 %v1686, %v1712
        %v1717 = vadd.f32 %v1687, %v1713
        %1718 = vrot.lane.b32.xlu0 %v336, 62
        %v1719 = vpop.permute.xlu0 %1718
        %1720 = vrot.lane.b32.xlu0 %v337, 62
        %v1721 = vpop.permute.xlu0 %1720
        %1722 = vrot.lane.b32.xlu0 %v338, 62
        %v1723 = vpop.permute.xlu0 %1722
        %1724 = vrot.lane.b32.xlu0 %v339, 62
        %v1725 = vpop.permute.xlu0 %1724
        %vm1726 = vcmp.lt.s32.totalorder %v349, 62
        %v1727 = vsel %vm1726, %v1723, %v1725
        %v1728 = vsel %vm1726, %v1721, %v1723
        %v1729 = vsel %vm1726, %v1719, %v1721
        %v1730 = vsel %vm1726, %v1725, %v1719
        %v1731 = vmax.f32 %v1730, 0.0
        %v1732 = vmax.f32 %v1729, 0.0
        %v1733 = vmax.f32 %v1728, 0.0
        %v1734 = vmax.f32 %v1727, 0.0
        %s1735 = scalar_lea.vmem [#allocation6], 2560
        %v1736 = vld [vmem:[%s1735] sm:$0xff]
        %v1737 = vld [vmem:[%s1735 + $0x8] sm:$0xff]
        %v1738 = vld [vmem:[%s1735 + $0x10] sm:$0xff]
        %v1739 = vld [vmem:[%s1735 + $0x18] sm:$0xff]
        %v1740 = vmul.f32 %v1736, %v1731
        %v1741 = vmul.f32 %v1737, %v1732
        %v1742 = vmul.f32 %v1738, %v1733
        %v1743 = vmul.f32 %v1739, %v1734
        %v1744 = vadd.f32 %v1714, %v1740
        %v1745 = vadd.f32 %v1715, %v1741
        %v1746 = vadd.f32 %v1716, %v1742
        %v1747 = vadd.f32 %v1717, %v1743
        %1748 = vrot.lane.b32.xlu0 %v336, 60
        %v1749 = vpop.permute.xlu0 %1748
        %1750 = vrot.lane.b32.xlu0 %v337, 60
        %v1751 = vpop.permute.xlu0 %1750
        %1752 = vrot.lane.b32.xlu0 %v338, 60
        %v1753 = vpop.permute.xlu0 %1752
        %1754 = vrot.lane.b32.xlu0 %v339, 60
        %v1755 = vpop.permute.xlu0 %1754
        %vm1756 = vcmp.lt.s32.totalorder %v349, 60
        %v1757 = vsel %vm1756, %v1753, %v1755
        %v1758 = vsel %vm1756, %v1751, %v1753
        %v1759 = vsel %vm1756, %v1749, %v1751
        %v1760 = vsel %vm1756, %v1755, %v1749
        %v1761 = vmax.f32 %v1760, 0.0
        %v1762 = vmax.f32 %v1759, 0.0
        %v1763 = vmax.f32 %v1758, 0.0
        %v1764 = vmax.f32 %v1757, 0.0
        %s1765 = scalar_lea.vmem [#allocation6], 2592
        %v1766 = vld [vmem:[%s1765] sm:$0xff]
        %v1767 = vld [vmem:[%s1765 + $0x8] sm:$0xff]
        %v1768 = vld [vmem:[%s1765 + $0x10] sm:$0xff]
        %v1769 = vld [vmem:[%s1765 + $0x18] sm:$0xff]
        %v1770 = vmul.f32 %v1766, %v1761
        %v1771 = vmul.f32 %v1767, %v1762
        %v1772 = vmul.f32 %v1768, %v1763
        %v1773 = vmul.f32 %v1769, %v1764
        %v1774 = vadd.f32 %v1744, %v1770
        %v1775 = vadd.f32 %v1745, %v1771
        %v1776 = vadd.f32 %v1746, %v1772
        %v1777 = vadd.f32 %v1747, %v1773
        %1778 = vrot.lane.b32.xlu0 %v336, 36
        %v1779 = vpop.permute.xlu0 %1778
        %1780 = vrot.lane.b32.xlu0 %v337, 36
        %v1781 = vpop.permute.xlu0 %1780
        %1782 = vrot.lane.b32.xlu0 %v338, 36
        %v1783 = vpop.permute.xlu0 %1782
        %1784 = vrot.lane.b32.xlu0 %v339, 36
        %v1785 = vpop.permute.xlu0 %1784
        %vm1786 = vcmp.lt.s32.totalorder %v349, 36
        %v1787 = vsel %vm1786, %v1783, %v1785
        %v1788 = vsel %vm1786, %v1781, %v1783
        %v1789 = vsel %vm1786, %v1779, %v1781
        %v1790 = vsel %vm1786, %v1785, %v1779
        %v1791 = vmax.f32 %v1790, 0.0
        %v1792 = vmax.f32 %v1789, 0.0
        %v1793 = vmax.f32 %v1788, 0.0
        %v1794 = vmax.f32 %v1787, 0.0
        %s1795 = scalar_lea.vmem [#allocation6], 2624
        %v1796 = vld [vmem:[%s1795] sm:$0xff]
        %v1797 = vld [vmem:[%s1795 + $0x8] sm:$0xff]
        %v1798 = vld [vmem:[%s1795 + $0x10] sm:$0xff]
        %v1799 = vld [vmem:[%s1795 + $0x18] sm:$0xff]
        %v1800 = vmul.f32 %v1796, %v1791
        %v1801 = vmul.f32 %v1797, %v1792
        %v1802 = vmul.f32 %v1798, %v1793
        %v1803 = vmul.f32 %v1799, %v1794
        %v1804 = vadd.f32 %v1774, %v1800
        %v1805 = vadd.f32 %v1775, %v1801
        %v1806 = vadd.f32 %v1776, %v1802
        %v1807 = vadd.f32 %v1777, %v1803
        %1808 = vrot.lane.b32.xlu0 %v336, 28
        %v1809 = vpop.permute.xlu0 %1808
        %1810 = vrot.lane.b32.xlu0 %v337, 28
        %v1811 = vpop.permute.xlu0 %1810
        %1812 = vrot.lane.b32.xlu0 %v338, 28
        %v1813 = vpop.permute.xlu0 %1812
        %1814 = vrot.lane.b32.xlu0 %v339, 28
        %v1815 = vpop.permute.xlu0 %1814
        %vm1816 = vcmp.lt.s32.totalorder %v349, 28
        %v1817 = vsel %vm1816, %v1813, %v1815
        %v1818 = vsel %vm1816, %v1811, %v1813
        %v1819 = vsel %vm1816, %v1809, %v1811
        %v1820 = vsel %vm1816, %v1815, %v1809
        %v1821 = vmax.f32 %v1820, 0.0
        %v1822 = vmax.f32 %v1819, 0.0
        %v1823 = vmax.f32 %v1818, 0.0
        %v1824 = vmax.f32 %v1817, 0.0
        %s1825 = scalar_lea.vmem [#allocation6], 2752
        %v1826 = vld [vmem:[%s1825] sm:$0xff]
        %v1827 = vld [vmem:[%s1825 + $0x8] sm:$0xff]
        %v1828 = vld [vmem:[%s1825 + $0x10] sm:$0xff]
        %v1829 = vld [vmem:[%s1825 + $0x18] sm:$0xff]
        %v1830 = vmul.f32 %v1826, %v1821
        %v1831 = vmul.f32 %v1827, %v1822
        %v1832 = vmul.f32 %v1828, %v1823
        %v1833 = vmul.f32 %v1829, %v1824
        %v1834 = vadd.f32 %v1804, %v1830
        %v1835 = vadd.f32 %v1805, %v1831
        %v1836 = vadd.f32 %v1806, %v1832
        %v1837 = vadd.f32 %v1807, %v1833
        %1838 = vrot.lane.b32.xlu0 %v336, 4
        %v1839 = vpop.permute.xlu0 %1838
        %1840 = vrot.lane.b32.xlu0 %v337, 4
        %v1841 = vpop.permute.xlu0 %1840
        %1842 = vrot.lane.b32.xlu0 %v338, 4
        %v1843 = vpop.permute.xlu0 %1842
        %1844 = vrot.lane.b32.xlu0 %v339, 4
        %v1845 = vpop.permute.xlu0 %1844
        %vm1846 = vcmp.lt.s32.totalorder %v349, 4
        %v1847 = vsel %vm1846, %v1843, %v1845
        %v1848 = vsel %vm1846, %v1841, %v1843
        %v1849 = vsel %vm1846, %v1839, %v1841
        %v1850 = vsel %vm1846, %v1845, %v1839
        %v1851 = vmax.f32 %v1850, 0.0
        %v1852 = vmax.f32 %v1849, 0.0
        %v1853 = vmax.f32 %v1848, 0.0
        %v1854 = vmax.f32 %v1847, 0.0
        %s1855 = scalar_lea.vmem [#allocation6], 2784
        %v1856 = vld [vmem:[%s1855] sm:$0xff]
        %v1857 = vld [vmem:[%s1855 + $0x8] sm:$0xff]
        %v1858 = vld [vmem:[%s1855 + $0x10] sm:$0xff]
        %v1859 = vld [vmem:[%s1855 + $0x18] sm:$0xff]
        %v1860 = vmul.f32 %v1856, %v1851
        %v1861 = vmul.f32 %v1857, %v1852
        %v1862 = vmul.f32 %v1858, %v1853
        %v1863 = vmul.f32 %v1859, %v1854
        %v1864 = vadd.f32 %v1834, %v1860
        %v1865 = vadd.f32 %v1835, %v1861
        %v1866 = vadd.f32 %v1836, %v1862
        %v1867 = vadd.f32 %v1837, %v1863
        %1868 = vrot.lane.b32.xlu0 %v336, 124
        %v1869 = vpop.permute.xlu0 %1868
        %1870 = vrot.lane.b32.xlu0 %v337, 124
        %v1871 = vpop.permute.xlu0 %1870
        %1872 = vrot.lane.b32.xlu0 %v338, 124
        %v1873 = vpop.permute.xlu0 %1872
        %1874 = vrot.lane.b32.xlu0 %v339, 124
        %v1875 = vpop.permute.xlu0 %1874
        %vm1876 = vcmp.lt.s32.totalorder %v349, 124
        %v1877 = vsel %vm1876, %v1873, %v1875
        %v1878 = vsel %vm1876, %v1871, %v1873
        %v1879 = vsel %vm1876, %v1869, %v1871
        %v1880 = vsel %vm1876, %v1875, %v1869
        %v1881 = vmax.f32 %v1879, 0.0
        %v1882 = vmax.f32 %v1878, 0.0
        %v1883 = vmax.f32 %v1877, 0.0
        %v1884 = vmax.f32 %v1880, 0.0
        %s1885 = scalar_lea.vmem [#allocation6], 2912
        %v1886 = vld [vmem:[%s1885] sm:$0xff]
        %v1887 = vld [vmem:[%s1885 + $0x8] sm:$0xff]
        %v1888 = vld [vmem:[%s1885 + $0x10] sm:$0xff]
        %v1889 = vld [vmem:[%s1885 + $0x18] sm:$0xff]
        %v1890 = vmul.f32 %v1886, %v1881
        %v1891 = vmul.f32 %v1887, %v1882
        %v1892 = vmul.f32 %v1888, %v1883
        %v1893 = vmul.f32 %v1889, %v1884
        %v1894 = vadd.f32 %v1864, %v1890
        %v1895 = vadd.f32 %v1865, %v1891
        %v1896 = vadd.f32 %v1866, %v1892
        %v1897 = vadd.f32 %v1867, %v1893
        %1898 = vrot.lane.b32.xlu0 %v336, 100
        %v1899 = vpop.permute.xlu0 %1898
        %1900 = vrot.lane.b32.xlu0 %v337, 100
        %v1901 = vpop.permute.xlu0 %1900
        %1902 = vrot.lane.b32.xlu0 %v338, 100
        %v1903 = vpop.permute.xlu0 %1902
        %1904 = vrot.lane.b32.xlu0 %v339, 100
        %v1905 = vpop.permute.xlu0 %1904
        %vm1906 = vcmp.lt.s32.totalorder %v349, 100
        %v1907 = vsel %vm1906, %v1903, %v1905
        %v1908 = vsel %vm1906, %v1901, %v1903
        %v1909 = vsel %vm1906, %v1899, %v1901
        %v1910 = vsel %vm1906, %v1905, %v1899
        %v1911 = vmax.f32 %v1909, 0.0
        %v1912 = vmax.f32 %v1908, 0.0
        %v1913 = vmax.f32 %v1907, 0.0
        %v1914 = vmax.f32 %v1910, 0.0
        %s1915 = scalar_lea.vmem [#allocation6], 2944
        %v1916 = vld [vmem:[%s1915] sm:$0xff]
        %v1917 = vld [vmem:[%s1915 + $0x8] sm:$0xff]
        %v1918 = vld [vmem:[%s1915 + $0x10] sm:$0xff]
        %v1919 = vld [vmem:[%s1915 + $0x18] sm:$0xff]
        %v1920 = vmul.f32 %v1916, %v1911
        %v1921 = vmul.f32 %v1917, %v1912
        %v1922 = vmul.f32 %v1918, %v1913
        %v1923 = vmul.f32 %v1919, %v1914
        %v1924 = vadd.f32 %v1894, %v1920
        %v1925 = vadd.f32 %v1895, %v1921
        %v1926 = vadd.f32 %v1896, %v1922
        %v1927 = vadd.f32 %v1897, %v1923
        %1928 = vrot.lane.b32.xlu0 %v336, 92
        %v1929 = vpop.permute.xlu0 %1928
        %1930 = vrot.lane.b32.xlu0 %v337, 92
        %v1931 = vpop.permute.xlu0 %1930
        %1932 = vrot.lane.b32.xlu0 %v338, 92
        %v1933 = vpop.permute.xlu0 %1932
        %1934 = vrot.lane.b32.xlu0 %v339, 92
        %v1935 = vpop.permute.xlu0 %1934
        %vm1936 = vcmp.lt.s32.totalorder %v349, 92
        %v1937 = vsel %vm1936, %v1933, %v1935
        %v1938 = vsel %vm1936, %v1931, %v1933
        %v1939 = vsel %vm1936, %v1929, %v1931
        %v1940 = vsel %vm1936, %v1935, %v1929
        %v1941 = vmax.f32 %v1939, 0.0
        %v1942 = vmax.f32 %v1938, 0.0
        %v1943 = vmax.f32 %v1937, 0.0
        %v1944 = vmax.f32 %v1940, 0.0
        %s1945 = scalar_lea.vmem [#allocation6], 3072
        %v1946 = vld [vmem:[%s1945] sm:$0xff]
        %v1947 = vld [vmem:[%s1945 + $0x8] sm:$0xff]
        %v1948 = vld [vmem:[%s1945 + $0x10] sm:$0xff]
        %v1949 = vld [vmem:[%s1945 + $0x18] sm:$0xff]
        %v1950 = vmul.f32 %v1946, %v1941
        %v1951 = vmul.f32 %v1947, %v1942
        %v1952 = vmul.f32 %v1948, %v1943
        %v1953 = vmul.f32 %v1949, %v1944
        %v1954 = vadd.f32 %v1924, %v1950
        %v1955 = vadd.f32 %v1925, %v1951
        %v1956 = vadd.f32 %v1926, %v1952
        %v1957 = vadd.f32 %v1927, %v1953
        %s1958 = scalar_lea.vmem [#allocation6], 3104
        %v1959 = vld [vmem:[%s1958] sm:$0xff]
        %v1960 = vld [vmem:[%s1958 + $0x8] sm:$0xff]
        %v1961 = vld [vmem:[%s1958 + $0x10] sm:$0xff]
        %v1962 = vld [vmem:[%s1958 + $0x18] sm:$0xff]
        %v1963 = vmul.f32 %v1959, %v1642
        %v1964 = vmul.f32 %v1960, %v1643
        %v1965 = vmul.f32 %v1961, %v1644
        %v1966 = vmul.f32 %v1962, %v1641
        %v1967 = vadd.f32 %v1954, %v1963
        %v1968 = vadd.f32 %v1955, %v1964
        %v1969 = vadd.f32 %v1956, %v1965
        %v1970 = vadd.f32 %v1957, %v1966
        %s1971 = scalar_lea.vmem [#allocation6], 3136
        %v1972 = vld [vmem:[%s1971] sm:$0xff]
        %v1973 = vld [vmem:[%s1971 + $0x8] sm:$0xff]
        %v1974 = vld [vmem:[%s1971 + $0x10] sm:$0xff]
        %v1975 = vld [vmem:[%s1971 + $0x18] sm:$0xff]
        %v1976 = vmul.f32 %v1972, %v1672
        %v1977 = vmul.f32 %v1973, %v1673
        %v1978 = vmul.f32 %v1974, %v1674
        %v1979 = vmul.f32 %v1975, %v1671
        %v1980 = vadd.f32 %v1967, %v1976
        %v1981 = vadd.f32 %v1968, %v1977
        %v1982 = vadd.f32 %v1969, %v1978
        %v1983 = vadd.f32 %v1970, %v1979
        %s1984 = scalar_lea.vmem [#allocation6], 3168
        %v1985 = vld [vmem:[%s1984] sm:$0xff]
        %v1986 = vld [vmem:[%s1984 + $0x8] sm:$0xff]
        %v1987 = vld [vmem:[%s1984 + $0x10] sm:$0xff]
        %v1988 = vld [vmem:[%s1984 + $0x18] sm:$0xff]
        %v1989 = vmul.f32 %v1985, %v1702
        %v1990 = vmul.f32 %v1986, %v1703
        %v1991 = vmul.f32 %v1987, %v1704
        %v1992 = vmul.f32 %v1988, %v1701
        %v1993 = vadd.f32 %v1980, %v1989
        %v1994 = vadd.f32 %v1981, %v1990
        %v1995 = vadd.f32 %v1982, %v1991
        %v1996 = vadd.f32 %v1983, %v1992
        %s1997 = scalar_lea.vmem [#allocation6], 3200
        %v1998 = vld [vmem:[%s1997] sm:$0xff]
        %v1999 = vld [vmem:[%s1997 + $0x8] sm:$0xff]
        %v2000 = vld [vmem:[%s1997 + $0x10] sm:$0xff]
        %v2001 = vld [vmem:[%s1997 + $0x18] sm:$0xff]
        %v2002 = vmul.f32 %v1998, %v1732
        %v2003 = vmul.f32 %v1999, %v1733
        %v2004 = vmul.f32 %v2000, %v1734
        %v2005 = vmul.f32 %v2001, %v1731
        %v2006 = vadd.f32 %v1993, %v2002
        %v2007 = vadd.f32 %v1994, %v2003
        %v2008 = vadd.f32 %v1995, %v2004
        %v2009 = vadd.f32 %v1996, %v2005
        %s2010 = scalar_lea.vmem [#allocation6], 3232
        %v2011 = vld [vmem:[%s2010] sm:$0xff]
        %v2012 = vld [vmem:[%s2010 + $0x8] sm:$0xff]
        %v2013 = vld [vmem:[%s2010 + $0x10] sm:$0xff]
        %v2014 = vld [vmem:[%s2010 + $0x18] sm:$0xff]
        %v2015 = vmul.f32 %v2011, %v1762
        %v2016 = vmul.f32 %v2012, %v1763
        %v2017 = vmul.f32 %v2013, %v1764
        %v2018 = vmul.f32 %v2014, %v1761
        %v2019 = vadd.f32 %v2006, %v2015
        %v2020 = vadd.f32 %v2007, %v2016
        %v2021 = vadd.f32 %v2008, %v2017
        %v2022 = vadd.f32 %v2009, %v2018
        %v2023 = vld [vmem:[#allocation7] sm:$0xff]
        %vm2024 = vcmask 64512
        %v2026 = vsel %vm2024, %v2023, 0
        %2028 = vmatprep.subr.mxu0 0.0
        %2029 = vmatpush1.msra.mxu0 0.0
        %2030 = vmatprep.subr.mxu0 0.0
        %2031 = vmatpush1.msra.mxu0 0.0
        %2032 = vmatprep.subr.mxu0 0.0
        %2033 = vmatpush1.msra.mxu0 0.0
        %2034 = vmatprep.subr.mxu0 0.0
        %2035 = vmatpush1.msra.mxu0 0.0
        %2036 = vmatprep.subr.mxu0 0.0
        %2037 = vmatpush1.msra.mxu0 0.0
        %2038 = vmatprep.subr.mxu0 0.0
        %2039 = vmatpush1.msra.mxu0 0.0
        %2040 = vmatprep.subr.mxu0 0.0
        %2041 = vmatpush1.msra.mxu0 0.0
        %2042 = vmatprep.subr.mxu0 0.0
        %2043 = vmatpush1.msra.mxu0 0.0
        %2044 = vmatprep.subr.mxu0 0.0
        %2045 = vmatpush1.msra.mxu0 0.0
        %2046 = vmatprep.subr.mxu0 0.0
        %2047 = vmatpush1.msra.mxu0 0.0
        %2048 = vmatprep.subr.mxu0 0.0
        %2049 = vmatpush1.msra.mxu0 0.0
        %2050 = vmatprep.subr.mxu0 0.0
        %2051 = vmatpush1.msra.mxu0 0.0
        %2052 = vmatprep.subr.mxu0 0.0
        %2053 = vmatpush1.msra.mxu0 0.0
        %2054 = vmatprep.subr.mxu0 0.0
        %2055 = vmatpush1.msra.mxu0 0.0
        %2056 = vmatprep.subr.mxu0 0.0
        %2057 = vmatpush1.msra.mxu0 0.0
        %2058 = vmatprep.subr.mxu0 %v1354
        %2059 = vmatpush1.msra.mxu0 %v1353
        %2060 = vmatprep.subr.mxu0 0.0
        %2061 = vmatpush2.msra.mxu0 0.0
        %2062 = vmatprep.subr.mxu0 0.0
        %2063 = vmatpush2.msra.mxu0 0.0
        %2064 = vmatprep.subr.mxu0 0.0
        %2065 = vmatpush2.msra.mxu0 0.0
        %2066 = vmatprep.subr.mxu0 0.0
        %2067 = vmatpush2.msra.mxu0 0.0
        %2068 = vmatprep.subr.mxu0 0.0
        %2069 = vmatpush2.msra.mxu0 0.0
        %2070 = vmatprep.subr.mxu0 0.0
        %2071 = vmatpush2.msra.mxu0 0.0
        %2072 = vmatprep.subr.mxu0 0.0
        %2073 = vmatpush2.msra.mxu0 0.0
        %2074 = vmatprep.subr.mxu0 0.0
        %2075 = vmatpush2.msra.mxu0 0.0
        %2076 = vmatprep.subr.mxu0 0.0
        %2077 = vmatpush2.msra.mxu0 0.0
        %2078 = vmatprep.subr.mxu0 0.0
        %2079 = vmatpush2.msra.mxu0 0.0
        %2080 = vmatprep.subr.mxu0 0.0
        %2081 = vmatpush2.msra.mxu0 0.0
        %2082 = vmatprep.subr.mxu0 0.0
        %2083 = vmatpush2.msra.mxu0 0.0
        %2084 = vmatprep.subr.mxu0 0.0
        %2085 = vmatpush2.msra.mxu0 0.0
        %2086 = vmatprep.subr.mxu0 0.0
        %2087 = vmatpush2.msra.mxu0 0.0
        %2088 = vmatprep.subr.mxu0 0.0
        %2089 = vmatpush2.msra.mxu0 0.0
        %2090 = vmatprep.subr.mxu0 0.0
        %2091 = vmatpush2.msra.mxu0 0.0
        %2092 = vmatprep.mubr.f32.mxu0 0.0
        %2093 = vmatmul.mubr.f32.gmra.mxu0 %v2026
        %v2094 = vpop.f32.mrf.mxu0
        %v2095 = vadd.f32 0.0, %v2094
        %v2096 = vpop.f32.mrf.mxu0
        %v2097 = vadd.f32 0.0, %v2096
        %2098 = vdwg.mxu0
        %2099 = vmatprep.subr.mxu0 0.0
        %2100 = vmatpush1.msra.mxu0 0.0
        %2101 = vmatprep.subr.mxu0 0.0
        %2102 = vmatpush1.msra.mxu0 0.0
        %2103 = vmatprep.subr.mxu0 0.0
        %2104 = vmatpush1.msra.mxu0 0.0
        %2105 = vmatprep.subr.mxu0 0.0
        %2106 = vmatpush1.msra.mxu0 0.0
        %2107 = vmatprep.subr.mxu0 0.0
        %2108 = vmatpush1.msra.mxu0 0.0
        %2109 = vmatprep.subr.mxu0 0.0
        %2110 = vmatpush1.msra.mxu0 0.0
        %2111 = vmatprep.subr.mxu0 0.0
        %2112 = vmatpush1.msra.mxu0 0.0
        %2113 = vmatprep.subr.mxu0 0.0
        %2114 = vmatpush1.msra.mxu0 0.0
        %2115 = vmatprep.subr.mxu0 0.0
        %2116 = vmatpush1.msra.mxu0 0.0
        %2117 = vmatprep.subr.mxu0 0.0
        %2118 = vmatpush1.msra.mxu0 0.0
        %2119 = vmatprep.subr.mxu0 0.0
        %2120 = vmatpush1.msra.mxu0 0.0
        %2121 = vmatprep.subr.mxu0 0.0
        %2122 = vmatpush1.msra.mxu0 0.0
        %2123 = vmatprep.subr.mxu0 0.0
        %2124 = vmatpush1.msra.mxu0 0.0
        %2125 = vmatprep.subr.mxu0 0.0
        %2126 = vmatpush1.msra.mxu0 0.0
        %2127 = vmatprep.subr.mxu0 0.0
        %2128 = vmatpush1.msra.mxu0 0.0
        %2129 = vmatprep.subr.mxu0 %v1356
        %2130 = vmatpush1.msra.mxu0 %v1355
        %2131 = vmatprep.subr.mxu0 0.0
        %2132 = vmatpush2.msra.mxu0 0.0
        %2133 = vmatprep.subr.mxu0 0.0
        %2134 = vmatpush2.msra.mxu0 0.0
        %2135 = vmatprep.subr.mxu0 0.0
        %2136 = vmatpush2.msra.mxu0 0.0
        %2137 = vmatprep.subr.mxu0 0.0
        %2138 = vmatpush2.msra.mxu0 0.0
        %2139 = vmatprep.subr.mxu0 0.0
        %2140 = vmatpush2.msra.mxu0 0.0
        %2141 = vmatprep.subr.mxu0 0.0
        %2142 = vmatpush2.msra.mxu0 0.0
        %2143 = vmatprep.subr.mxu0 0.0
        %2144 = vmatpush2.msra.mxu0 0.0
        %2145 = vmatprep.subr.mxu0 0.0
        %2146 = vmatpush2.msra.mxu0 0.0
        %2147 = vmatprep.subr.mxu0 0.0
        %2148 = vmatpush2.msra.mxu0 0.0
        %2149 = vmatprep.subr.mxu0 0.0
        %2150 = vmatpush2.msra.mxu0 0.0
        %2151 = vmatprep.subr.mxu0 0.0
        %2152 = vmatpush2.msra.mxu0 0.0
        %2153 = vmatprep.subr.mxu0 0.0
        %2154 = vmatpush2.msra.mxu0 0.0
        %2155 = vmatprep.subr.mxu0 0.0
        %2156 = vmatpush2.msra.mxu0 0.0
        %2157 = vmatprep.subr.mxu0 0.0
        %2158 = vmatpush2.msra.mxu0 0.0
        %2159 = vmatprep.subr.mxu0 0.0
        %2160 = vmatpush2.msra.mxu0 0.0
        %2161 = vmatprep.subr.mxu0 0.0
        %2162 = vmatpush2.msra.mxu0 0.0
        %2163 = vmatprep.mubr.f32.mxu0 0.0
        %2164 = vmatmul.mubr.f32.gmra.mxu0 %v2026
        %v2165 = vpop.f32.mrf.mxu0
        %v2166 = vadd.f32 0.0, %v2165
        %v2167 = vpop.f32.mrf.mxu0
        %v2168 = vadd.f32 0.0, %v2167
        %2169 = vdwg.mxu0
        %v2170 = vmax.f32 %v2095, 0.0
        %v2171 = vmax.f32 %v2097, 0.0
        %v2172 = vmax.f32 %v2166, 0.0
        %v2173 = vmax.f32 %v2168, 0.0
        %s2174 = scalar_lea.vmem [#allocation7], 16
        %v2175 = vld [vmem:[%s2174] sm:$0xff]
        %v2177 = vsel %vm2024, %v2175, 0
        %2179 = vmatprep.subr.mxu0 0.0
        %2180 = vmatpush1.msra.mxu0 0.0
        %2181 = vmatprep.subr.mxu0 0.0
        %2182 = vmatpush1.msra.mxu0 0.0
        %2183 = vmatprep.subr.mxu0 0.0
        %2184 = vmatpush1.msra.mxu0 0.0
        %2185 = vmatprep.subr.mxu0 0.0
        %2186 = vmatpush1.msra.mxu0 0.0
        %2187 = vmatprep.subr.mxu0 0.0
        %2188 = vmatpush1.msra.mxu0 0.0
        %2189 = vmatprep.subr.mxu0 0.0
        %2190 = vmatpush1.msra.mxu0 0.0
        %2191 = vmatprep.subr.mxu0 0.0
        %2192 = vmatpush1.msra.mxu0 0.0
        %2193 = vmatprep.subr.mxu0 0.0
        %2194 = vmatpush1.msra.mxu0 0.0
        %2195 = vmatprep.subr.mxu0 0.0
        %2196 = vmatpush1.msra.mxu0 0.0
        %2197 = vmatprep.subr.mxu0 0.0
        %2198 = vmatpush1.msra.mxu0 0.0
        %2199 = vmatprep.subr.mxu0 0.0
        %2200 = vmatpush1.msra.mxu0 0.0
        %2201 = vmatprep.subr.mxu0 0.0
        %2202 = vmatpush1.msra.mxu0 0.0
        %2203 = vmatprep.subr.mxu0 0.0
        %2204 = vmatpush1.msra.mxu0 0.0
        %2205 = vmatprep.subr.mxu0 0.0
        %2206 = vmatpush1.msra.mxu0 0.0
        %2207 = vmatprep.subr.mxu0 0.0
        %2208 = vmatpush1.msra.mxu0 0.0
        %2209 = vmatprep.subr.mxu0 %v1599
        %2210 = vmatpush1.msra.mxu0 %v1598
        %2211 = vmatprep.subr.mxu0 0.0
        %2212 = vmatpush2.msra.mxu0 0.0
        %2213 = vmatprep.subr.mxu0 0.0
        %2214 = vmatpush2.msra.mxu0 0.0
        %2215 = vmatprep.subr.mxu0 0.0
        %2216 = vmatpush2.msra.mxu0 0.0
        %2217 = vmatprep.subr.mxu0 0.0
        %2218 = vmatpush2.msra.mxu0 0.0
        %2219 = vmatprep.subr.mxu0 0.0
        %2220 = vmatpush2.msra.mxu0 0.0
        %2221 = vmatprep.subr.mxu0 0.0
        %2222 = vmatpush2.msra.mxu0 0.0
        %2223 = vmatprep.subr.mxu0 0.0
        %2224 = vmatpush2.msra.mxu0 0.0
        %2225 = vmatprep.subr.mxu0 0.0
        %2226 = vmatpush2.msra.mxu0 0.0
        %2227 = vmatprep.subr.mxu0 0.0
        %2228 = vmatpush2.msra.mxu0 0.0
        %2229 = vmatprep.subr.mxu0 0.0
        %2230 = vmatpush2.msra.mxu0 0.0
        %2231 = vmatprep.subr.mxu0 0.0
        %2232 = vmatpush2.msra.mxu0 0.0
        %2233 = vmatprep.subr.mxu0 0.0
        %2234 = vmatpush2.msra.mxu0 0.0
        %2235 = vmatprep.subr.mxu0 0.0
        %2236 = vmatpush2.msra.mxu0 0.0
        %2237 = vmatprep.subr.mxu0 0.0
        %2238 = vmatpush2.msra.mxu0 0.0
        %2239 = vmatprep.subr.mxu0 0.0
        %2240 = vmatpush2.msra.mxu0 0.0
        %2241 = vmatprep.subr.mxu0 0.0
        %2242 = vmatpush2.msra.mxu0 0.0
        %2243 = vmatprep.mubr.f32.mxu0 0.0
        %2244 = vmatmul.mubr.f32.gmra.mxu0 %v2177
        %v2245 = vpop.f32.mrf.mxu0
        %v2246 = vadd.f32 0.0, %v2245
        %v2247 = vpop.f32.mrf.mxu0
        %v2248 = vadd.f32 0.0, %v2247
        %2249 = vdwg.mxu0
        %2250 = vmatprep.subr.mxu0 0.0
        %2251 = vmatpush1.msra.mxu0 0.0
        %2252 = vmatprep.subr.mxu0 0.0
        %2253 = vmatpush1.msra.mxu0 0.0
        %2254 = vmatprep.subr.mxu0 0.0
        %2255 = vmatpush1.msra.mxu0 0.0
        %2256 = vmatprep.subr.mxu0 0.0
        %2257 = vmatpush1.msra.mxu0 0.0
        %2258 = vmatprep.subr.mxu0 0.0
        %2259 = vmatpush1.msra.mxu0 0.0
        %2260 = vmatprep.subr.mxu0 0.0
        %2261 = vmatpush1.msra.mxu0 0.0
        %2262 = vmatprep.subr.mxu0 0.0
        %2263 = vmatpush1.msra.mxu0 0.0
        %2264 = vmatprep.subr.mxu0 0.0
        %2265 = vmatpush1.msra.mxu0 0.0
        %2266 = vmatprep.subr.mxu0 0.0
        %2267 = vmatpush1.msra.mxu0 0.0
        %2268 = vmatprep.subr.mxu0 0.0
        %2269 = vmatpush1.msra.mxu0 0.0
        %2270 = vmatprep.subr.mxu0 0.0
        %2271 = vmatpush1.msra.mxu0 0.0
        %2272 = vmatprep.subr.mxu0 0.0
        %2273 = vmatpush1.msra.mxu0 0.0
        %2274 = vmatprep.subr.mxu0 0.0
        %2275 = vmatpush1.msra.mxu0 0.0
        %2276 = vmatprep.subr.mxu0 0.0
        %2277 = vmatpush1.msra.mxu0 0.0
        %2278 = vmatprep.subr.mxu0 0.0
        %2279 = vmatpush1.msra.mxu0 0.0
        %2280 = vmatprep.subr.mxu0 %v1601
        %2281 = vmatpush1.msra.mxu0 %v1600
        %2282 = vmatprep.subr.mxu0 0.0
        %2283 = vmatpush2.msra.mxu0 0.0
        %2284 = vmatprep.subr.mxu0 0.0
        %2285 = vmatpush2.msra.mxu0 0.0
        %2286 = vmatprep.subr.mxu0 0.0
        %2287 = vmatpush2.msra.mxu0 0.0
        %2288 = vmatprep.subr.mxu0 0.0
        %2289 = vmatpush2.msra.mxu0 0.0
        %2290 = vmatprep.subr.mxu0 0.0
        %2291 = vmatpush2.msra.mxu0 0.0
        %2292 = vmatprep.subr.mxu0 0.0
        %2293 = vmatpush2.msra.mxu0 0.0
        %2294 = vmatprep.subr.mxu0 0.0
        %2295 = vmatpush2.msra.mxu0 0.0
        %2296 = vmatprep.subr.mxu0 0.0
        %2297 = vmatpush2.msra.mxu0 0.0
        %2298 = vmatprep.subr.mxu0 0.0
        %2299 = vmatpush2.msra.mxu0 0.0
        %2300 = vmatprep.subr.mxu0 0.0
        %2301 = vmatpush2.msra.mxu0 0.0
        %2302 = vmatprep.subr.mxu0 0.0
        %2303 = vmatpush2.msra.mxu0 0.0
        %2304 = vmatprep.subr.mxu0 0.0
        %2305 = vmatpush2.msra.mxu0 0.0
        %2306 = vmatprep.subr.mxu0 0.0
        %2307 = vmatpush2.msra.mxu0 0.0
        %2308 = vmatprep.subr.mxu0 0.0
        %2309 = vmatpush2.msra.mxu0 0.0
        %2310 = vmatprep.subr.mxu0 0.0
        %2311 = vmatpush2.msra.mxu0 0.0
        %2312 = vmatprep.subr.mxu0 0.0
        %2313 = vmatpush2.msra.mxu0 0.0
        %2314 = vmatprep.mubr.f32.mxu0 0.0
        %2315 = vmatmul.mubr.f32.gmra.mxu0 %v2177
        %v2316 = vpop.f32.mrf.mxu0
        %v2317 = vadd.f32 0.0, %v2316
        %v2318 = vpop.f32.mrf.mxu0
        %v2319 = vadd.f32 0.0, %v2318
        %2320 = vdwg.mxu0
        %v2321 = vmax.f32 %v2246, 0.0
        %v2322 = vmax.f32 %v2248, 0.0
        %v2323 = vmax.f32 %v2317, 0.0
        %v2324 = vmax.f32 %v2319, 0.0
        %2325 = vrot.lane.b32.xlu0 %v2170, 17
        %v2326 = vpop.permute.xlu0 %2325
        %2327 = vrot.lane.b32.xlu0 %v2171, 17
        %v2328 = vpop.permute.xlu0 %2327
        %2329 = vrot.lane.b32.xlu0 %v2172, 17
        %v2330 = vpop.permute.xlu0 %2329
        %2331 = vrot.lane.b32.xlu0 %v2173, 17
        %v2332 = vpop.permute.xlu0 %2331
        %v2333 = vsel %vm596, %v2330, %v2332
        %v2334 = vsel %vm596, %v2328, %v2330
        %v2335 = vsel %vm596, %v2326, %v2328
        %v2336 = vsel %vm596, %v2332, %v2326
        %s2337 = scalar_lea.vmem [#allocation6], 288
        %v2338 = vld [vmem:[%s2337] sm:$0xff]
        %v2339 = vld [vmem:[%s2337 + $0x8] sm:$0xff]
        %v2340 = vld [vmem:[%s2337 + $0x10] sm:$0xff]
        %v2341 = vld [vmem:[%s2337 + $0x18] sm:$0xff]
        %v2342 = vmul.f32 %v2338, %v2336
        %v2343 = vmul.f32 %v2339, %v2335
        %v2344 = vmul.f32 %v2340, %v2334
        %v2345 = vmul.f32 %v2341, %v2333
        %2346 = vrot.lane.b32.xlu0 %v2170, 16
        %v2347 = vpop.permute.xlu0 %2346
        %2348 = vrot.lane.b32.xlu0 %v2171, 16
        %v2349 = vpop.permute.xlu0 %2348
        %2350 = vrot.lane.b32.xlu0 %v2172, 16
        %v2351 = vpop.permute.xlu0 %2350
        %2352 = vrot.lane.b32.xlu0 %v2173, 16
        %v2353 = vpop.permute.xlu0 %2352
        %v2354 = vsel %vm650, %v2351, %v2353
        %v2355 = vsel %vm650, %v2349, %v2351
        %v2356 = vsel %vm650, %v2347, %v2349
        %v2357 = vsel %vm650, %v2353, %v2347
        %s2358 = scalar_lea.vmem [#allocation6], 320
        %v2359 = vld [vmem:[%s2358] sm:$0xff]
        %v2360 = vld [vmem:[%s2358 + $0x8] sm:$0xff]
        %v2361 = vld [vmem:[%s2358 + $0x10] sm:$0xff]
        %v2362 = vld [vmem:[%s2358 + $0x18] sm:$0xff]
        %v2363 = vmul.f32 %v2359, %v2357
        %v2364 = vmul.f32 %v2360, %v2356
        %v2365 = vmul.f32 %v2361, %v2355
        %v2366 = vmul.f32 %v2362, %v2354
        %v2367 = vadd.f32 %v2342, %v2363
        %v2368 = vadd.f32 %v2343, %v2364
        %v2369 = vadd.f32 %v2344, %v2365
        %v2370 = vadd.f32 %v2345, %v2366
        %2371 = vrot.lane.b32.xlu0 %v2170, 15
        %v2372 = vpop.permute.xlu0 %2371
        %2373 = vrot.lane.b32.xlu0 %v2171, 15
        %v2374 = vpop.permute.xlu0 %2373
        %2375 = vrot.lane.b32.xlu0 %v2172, 15
        %v2376 = vpop.permute.xlu0 %2375
        %2377 = vrot.lane.b32.xlu0 %v2173, 15
        %v2378 = vpop.permute.xlu0 %2377
        %v2379 = vsel %vm719, %v2376, %v2378
        %v2380 = vsel %vm719, %v2374, %v2376
        %v2381 = vsel %vm719, %v2372, %v2374
        %v2382 = vsel %vm719, %v2378, %v2372
        %s2383 = scalar_lea.vmem [#allocation6], 352
        %v2384 = vld [vmem:[%s2383] sm:$0xff]
        %v2385 = vld [vmem:[%s2383 + $0x8] sm:$0xff]
        %v2386 = vld [vmem:[%s2383 + $0x10] sm:$0xff]
        %v2387 = vld [vmem:[%s2383 + $0x18] sm:$0xff]
        %v2388 = vmul.f32 %v2384, %v2382
        %v2389 = vmul.f32 %v2385, %v2381
        %v2390 = vmul.f32 %v2386, %v2380
        %v2391 = vmul.f32 %v2387, %v2379
        %v2392 = vadd.f32 %v2367, %v2388
        %v2393 = vadd.f32 %v2368, %v2389
        %v2394 = vadd.f32 %v2369, %v2390
        %v2395 = vadd.f32 %v2370, %v2391
        %2396 = vrot.lane.b32.xlu0 %v2170, 1
        %v2397 = vpop.permute.xlu0 %2396
        %2398 = vrot.lane.b32.xlu0 %v2171, 1
        %v2399 = vpop.permute.xlu0 %2398
        %2400 = vrot.lane.b32.xlu0 %v2172, 1
        %v2401 = vpop.permute.xlu0 %2400
        %2402 = vrot.lane.b32.xlu0 %v2173, 1
        %v2403 = vpop.permute.xlu0 %2402
        %v2404 = vsel %vm874, %v2401, %v2403
        %v2405 = vsel %vm874, %v2399, %v2401
        %v2406 = vsel %vm874, %v2397, %v2399
        %v2407 = vsel %vm874, %v2403, %v2397
        %s2408 = scalar_lea.vmem [#allocation6], 384
        %v2409 = vld [vmem:[%s2408] sm:$0xff]
        %v2410 = vld [vmem:[%s2408 + $0x8] sm:$0xff]
        %v2411 = vld [vmem:[%s2408 + $0x10] sm:$0xff]
        %v2412 = vld [vmem:[%s2408 + $0x18] sm:$0xff]
        %v2413 = vmul.f32 %v2409, %v2407
        %v2414 = vmul.f32 %v2410, %v2406
        %v2415 = vmul.f32 %v2411, %v2405
        %v2416 = vmul.f32 %v2412, %v2404
        %v2417 = vadd.f32 %v2392, %v2413
        %v2418 = vadd.f32 %v2393, %v2414
        %v2419 = vadd.f32 %v2394, %v2415
        %v2420 = vadd.f32 %v2395, %v2416
        %s2421 = scalar_lea.vmem [#allocation6], 416
        %v2422 = vld [vmem:[%s2421] sm:$0xff]
        %v2423 = vld [vmem:[%s2421 + $0x8] sm:$0xff]
        %v2424 = vld [vmem:[%s2421 + $0x10] sm:$0xff]
        %v2425 = vld [vmem:[%s2421 + $0x18] sm:$0xff]
        %v2426 = vmul.f32 %v2422, %v2170
        %v2427 = vmul.f32 %v2423, %v2171
        %v2428 = vmul.f32 %v2424, %v2172
        %v2429 = vmul.f32 %v2425, %v2173
        %v2430 = vadd.f32 %v2417, %v2426
        %v2431 = vadd.f32 %v2418, %v2427
        %v2432 = vadd.f32 %v2419, %v2428
        %v2433 = vadd.f32 %v2420, %v2429
        %2434 = vrot.lane.b32.xlu0 %v2170, 127
        %v2435 = vpop.permute.xlu0 %2434
        %2436 = vrot.lane.b32.xlu0 %v2171, 127
        %v2437 = vpop.permute.xlu0 %2436
        %2438 = vrot.lane.b32.xlu0 %v2172, 127
        %v2439 = vpop.permute.xlu0 %2438
        %2440 = vrot.lane.b32.xlu0 %v2173, 127
        %v2441 = vpop.permute.xlu0 %2440
        %v2442 = vsel %vm1016, %v2439, %v2441
        %v2443 = vsel %vm1016, %v2437, %v2439
        %v2444 = vsel %vm1016, %v2435, %v2437
        %v2445 = vsel %vm1016, %v2441, %v2435
        %s2446 = scalar_lea.vmem [#allocation6], 448
        %v2447 = vld [vmem:[%s2446] sm:$0xff]
        %v2448 = vld [vmem:[%s2446 + $0x8] sm:$0xff]
        %v2449 = vld [vmem:[%s2446 + $0x10] sm:$0xff]
        %v2450 = vld [vmem:[%s2446 + $0x18] sm:$0xff]
        %v2451 = vmul.f32 %v2447, %v2444
        %v2452 = vmul.f32 %v2448, %v2443
        %v2453 = vmul.f32 %v2449, %v2442
        %v2454 = vmul.f32 %v2450, %v2445
        %v2455 = vadd.f32 %v2430, %v2451
        %v2456 = vadd.f32 %v2431, %v2452
        %v2457 = vadd.f32 %v2432, %v2453
        %v2458 = vadd.f32 %v2433, %v2454
        %2459 = vrot.lane.b32.xlu0 %v2170, 113
        %v2460 = vpop.permute.xlu0 %2459
        %2461 = vrot.lane.b32.xlu0 %v2171, 113
        %v2462 = vpop.permute.xlu0 %2461
        %2463 = vrot.lane.b32.xlu0 %v2172, 113
        %v2464 = vpop.permute.xlu0 %2463
        %2465 = vrot.lane.b32.xlu0 %v2173, 113
        %v2466 = vpop.permute.xlu0 %2465
        %v2467 = vsel %vm1171, %v2464, %v2466
        %v2468 = vsel %vm1171, %v2462, %v2464
        %v2469 = vsel %vm1171, %v2460, %v2462
        %v2470 = vsel %vm1171, %v2466, %v2460
        %s2471 = scalar_lea.vmem [#allocation6], 480
        %v2472 = vld [vmem:[%s2471] sm:$0xff]
        %v2473 = vld [vmem:[%s2471 + $0x8] sm:$0xff]
        %v2474 = vld [vmem:[%s2471 + $0x10] sm:$0xff]
        %v2475 = vld [vmem:[%s2471 + $0x18] sm:$0xff]
        %v2476 = vmul.f32 %v2472, %v2469
        %v2477 = vmul.f32 %v2473, %v2468
        %v2478 = vmul.f32 %v2474, %v2467
        %v2479 = vmul.f32 %v2475, %v2470
        %v2480 = vadd.f32 %v2455, %v2476
        %v2481 = vadd.f32 %v2456, %v2477
        %v2482 = vadd.f32 %v2457, %v2478
        %v2483 = vadd.f32 %v2458, %v2479
        %2484 = vrot.lane.b32.xlu0 %v2170, 112
        %v2485 = vpop.permute.xlu0 %2484
        %2486 = vrot.lane.b32.xlu0 %v2171, 112
        %v2487 = vpop.permute.xlu0 %2486
        %2488 = vrot.lane.b32.xlu0 %v2172, 112
        %v2489 = vpop.permute.xlu0 %2488
        %2490 = vrot.lane.b32.xlu0 %v2173, 112
        %v2491 = vpop.permute.xlu0 %2490
        %v2492 = vsel %vm1240, %v2489, %v2491
        %v2493 = vsel %vm1240, %v2487, %v2489
        %v2494 = vsel %vm1240, %v2485, %v2487
        %v2495 = vsel %vm1240, %v2491, %v2485
        %s2496 = scalar_lea.vmem [#allocation6], 512
        %v2497 = vld [vmem:[%s2496] sm:$0xff]
        %v2498 = vld [vmem:[%s2496 + $0x8] sm:$0xff]
        %v2499 = vld [vmem:[%s2496 + $0x10] sm:$0xff]
        %v2500 = vld [vmem:[%s2496 + $0x18] sm:$0xff]
        %v2501 = vmul.f32 %v2497, %v2494
        %v2502 = vmul.f32 %v2498, %v2493
        %v2503 = vmul.f32 %v2499, %v2492
        %v2504 = vmul.f32 %v2500, %v2495
        %v2505 = vadd.f32 %v2480, %v2501
        %v2506 = vadd.f32 %v2481, %v2502
        %v2507 = vadd.f32 %v2482, %v2503
        %v2508 = vadd.f32 %v2483, %v2504
        %2509 = vrot.lane.b32.xlu0 %v2170, 111
        %v2510 = vpop.permute.xlu0 %2509
        %2511 = vrot.lane.b32.xlu0 %v2171, 111
        %v2512 = vpop.permute.xlu0 %2511
        %2513 = vrot.lane.b32.xlu0 %v2172, 111
        %v2514 = vpop.permute.xlu0 %2513
        %2515 = vrot.lane.b32.xlu0 %v2173, 111
        %v2516 = vpop.permute.xlu0 %2515
        %v2517 = vsel %vm1309, %v2514, %v2516
        %v2518 = vsel %vm1309, %v2512, %v2514
        %v2519 = vsel %vm1309, %v2510, %v2512
        %v2520 = vsel %vm1309, %v2516, %v2510
        %s2521 = scalar_lea.vmem [#allocation6], 544
        %v2522 = vld [vmem:[%s2521] sm:$0xff]
        %v2523 = vld [vmem:[%s2521 + $0x8] sm:$0xff]
        %v2524 = vld [vmem:[%s2521 + $0x10] sm:$0xff]
        %v2525 = vld [vmem:[%s2521 + $0x18] sm:$0xff]
        %v2526 = vmul.f32 %v2522, %v2519
        %v2527 = vmul.f32 %v2523, %v2518
        %v2528 = vmul.f32 %v2524, %v2517
        %v2529 = vmul.f32 %v2525, %v2520
        %v2530 = vadd.f32 %v2505, %v2526
        %v2531 = vadd.f32 %v2506, %v2527
        %v2532 = vadd.f32 %v2507, %v2528
        %v2533 = vadd.f32 %v2508, %v2529
        %2534 = vrot.lane.b32.xlu0 %v2321, 34
        %v2535 = vpop.permute.xlu0 %2534
        %2536 = vrot.lane.b32.xlu0 %v2322, 34
        %v2537 = vpop.permute.xlu0 %2536
        %2538 = vrot.lane.b32.xlu0 %v2323, 34
        %v2539 = vpop.permute.xlu0 %2538
        %2540 = vrot.lane.b32.xlu0 %v2324, 34
        %v2541 = vpop.permute.xlu0 %2540
        %v2542 = vsel %vm350, %v2539, %v2541
        %v2543 = vsel %vm350, %v2537, %v2539
        %v2544 = vsel %vm350, %v2535, %v2537
        %v2545 = vsel %vm350, %v2541, %v2535
        %s2546 = scalar_lea.vmem [#allocation6], 1376
        %v2547 = vld [vmem:[%s2546] sm:$0xff]
        %v2548 = vld [vmem:[%s2546 + $0x8] sm:$0xff]
        %v2549 = vld [vmem:[%s2546 + $0x10] sm:$0xff]
        %v2550 = vld [vmem:[%s2546 + $0x18] sm:$0xff]
        %v2551 = vmul.f32 %v2547, %v2545
        %v2552 = vmul.f32 %v2548, %v2544
        %v2553 = vmul.f32 %v2549, %v2543
        %v2554 = vmul.f32 %v2550, %v2542
        %2555 = vrot.lane.b32.xlu0 %v2321, 33
        %v2556 = vpop.permute.xlu0 %2555
        %2557 = vrot.lane.b32.xlu0 %v2322, 33
        %v2558 = vpop.permute.xlu0 %2557
        %2559 = vrot.lane.b32.xlu0 %v2323, 33
        %v2560 = vpop.permute.xlu0 %2559
        %2561 = vrot.lane.b32.xlu0 %v2324, 33
        %v2562 = vpop.permute.xlu0 %2561
        %v2563 = vsel %vm394, %v2560, %v2562
        %v2564 = vsel %vm394, %v2558, %v2560
        %v2565 = vsel %vm394, %v2556, %v2558
        %v2566 = vsel %vm394, %v2562, %v2556
        %s2567 = scalar_lea.vmem [#allocation6], 1408
        %v2568 = vld [vmem:[%s2567] sm:$0xff]
        %v2569 = vld [vmem:[%s2567 + $0x8] sm:$0xff]
        %v2570 = vld [vmem:[%s2567 + $0x10] sm:$0xff]
        %v2571 = vld [vmem:[%s2567 + $0x18] sm:$0xff]
        %v2572 = vmul.f32 %v2568, %v2566
        %v2573 = vmul.f32 %v2569, %v2565
        %v2574 = vmul.f32 %v2570, %v2564
        %v2575 = vmul.f32 %v2571, %v2563
        %v2576 = vadd.f32 %v2551, %v2572
        %v2577 = vadd.f32 %v2552, %v2573
        %v2578 = vadd.f32 %v2553, %v2574
        %v2579 = vadd.f32 %v2554, %v2575
        %2580 = vrot.lane.b32.xlu0 %v2321, 32
        %v2581 = vpop.permute.xlu0 %2580
        %2582 = vrot.lane.b32.xlu0 %v2322, 32
        %v2583 = vpop.permute.xlu0 %2582
        %2584 = vrot.lane.b32.xlu0 %v2323, 32
        %v2585 = vpop.permute.xlu0 %2584
        %2586 = vrot.lane.b32.xlu0 %v2324, 32
        %v2587 = vpop.permute.xlu0 %2586
        %v2588 = vsel %vm424, %v2585, %v2587
        %v2589 = vsel %vm424, %v2583, %v2585
        %v2590 = vsel %vm424, %v2581, %v2583
        %v2591 = vsel %vm424, %v2587, %v2581
        %s2592 = scalar_lea.vmem [#allocation6], 1440
        %v2593 = vld [vmem:[%s2592] sm:$0xff]
        %v2594 = vld [vmem:[%s2592 + $0x8] sm:$0xff]
        %v2595 = vld [vmem:[%s2592 + $0x10] sm:$0xff]
        %v2596 = vld [vmem:[%s2592 + $0x18] sm:$0xff]
        %v2597 = vmul.f32 %v2593, %v2591
        %v2598 = vmul.f32 %v2594, %v2590
        %v2599 = vmul.f32 %v2595, %v2589
        %v2600 = vmul.f32 %v2596, %v2588
        %v2601 = vadd.f32 %v2576, %v2597
        %v2602 = vadd.f32 %v2577, %v2598
        %v2603 = vadd.f32 %v2578, %v2599
        %v2604 = vadd.f32 %v2579, %v2600
        %2605 = vrot.lane.b32.xlu0 %v2321, 31
        %v2606 = vpop.permute.xlu0 %2605
        %2607 = vrot.lane.b32.xlu0 %v2322, 31
        %v2608 = vpop.permute.xlu0 %2607
        %2609 = vrot.lane.b32.xlu0 %v2323, 31
        %v2610 = vpop.permute.xlu0 %2609
        %2611 = vrot.lane.b32.xlu0 %v2324, 31
        %v2612 = vpop.permute.xlu0 %2611
        %v2613 = vsel %vm480, %v2610, %v2612
        %v2614 = vsel %vm480, %v2608, %v2610
        %v2615 = vsel %vm480, %v2606, %v2608
        %v2616 = vsel %vm480, %v2612, %v2606
        %s2617 = scalar_lea.vmem [#allocation6], 1472
        %v2618 = vld [vmem:[%s2617] sm:$0xff]
        %v2619 = vld [vmem:[%s2617 + $0x8] sm:$0xff]
        %v2620 = vld [vmem:[%s2617 + $0x10] sm:$0xff]
        %v2621 = vld [vmem:[%s2617 + $0x18] sm:$0xff]
        %v2622 = vmul.f32 %v2618, %v2616
        %v2623 = vmul.f32 %v2619, %v2615
        %v2624 = vmul.f32 %v2620, %v2614
        %v2625 = vmul.f32 %v2621, %v2613
        %v2626 = vadd.f32 %v2601, %v2622
        %v2627 = vadd.f32 %v2602, %v2623
        %v2628 = vadd.f32 %v2603, %v2624
        %v2629 = vadd.f32 %v2604, %v2625
        %2630 = vrot.lane.b32.xlu0 %v2321, 30
        %v2631 = vpop.permute.xlu0 %2630
        %2632 = vrot.lane.b32.xlu0 %v2322, 30
        %v2633 = vpop.permute.xlu0 %2632
        %2634 = vrot.lane.b32.xlu0 %v2323, 30
        %v2635 = vpop.permute.xlu0 %2634
        %2636 = vrot.lane.b32.xlu0 %v2324, 30
        %v2637 = vpop.permute.xlu0 %2636
        %v2638 = vsel %vm510, %v2635, %v2637
        %v2639 = vsel %vm510, %v2633, %v2635
        %v2640 = vsel %vm510, %v2631, %v2633
        %v2641 = vsel %vm510, %v2637, %v2631
        %s2642 = scalar_lea.vmem [#allocation6], 1504
        %v2643 = vld [vmem:[%s2642] sm:$0xff]
        %v2644 = vld [vmem:[%s2642 + $0x8] sm:$0xff]
        %v2645 = vld [vmem:[%s2642 + $0x10] sm:$0xff]
        %v2646 = vld [vmem:[%s2642 + $0x18] sm:$0xff]
        %v2647 = vmul.f32 %v2643, %v2641
        %v2648 = vmul.f32 %v2644, %v2640
        %v2649 = vmul.f32 %v2645, %v2639
        %v2650 = vmul.f32 %v2646, %v2638
        %v2651 = vadd.f32 %v2626, %v2647
        %v2652 = vadd.f32 %v2627, %v2648
        %v2653 = vadd.f32 %v2628, %v2649
        %v2654 = vadd.f32 %v2629, %v2650
        %2655 = vrot.lane.b32.xlu0 %v2321, 18
        %v2656 = vpop.permute.xlu0 %2655
        %2657 = vrot.lane.b32.xlu0 %v2322, 18
        %v2658 = vpop.permute.xlu0 %2657
        %2659 = vrot.lane.b32.xlu0 %v2323, 18
        %v2660 = vpop.permute.xlu0 %2659
        %2661 = vrot.lane.b32.xlu0 %v2324, 18
        %v2662 = vpop.permute.xlu0 %2661
        %v2663 = vsel %vm566, %v2660, %v2662
        %v2664 = vsel %vm566, %v2658, %v2660
        %v2665 = vsel %vm566, %v2656, %v2658
        %v2666 = vsel %vm566, %v2662, %v2656
        %s2667 = scalar_lea.vmem [#allocation6], 1536
        %v2668 = vld [vmem:[%s2667] sm:$0xff]
        %v2669 = vld [vmem:[%s2667 + $0x8] sm:$0xff]
        %v2670 = vld [vmem:[%s2667 + $0x10] sm:$0xff]
        %v2671 = vld [vmem:[%s2667 + $0x18] sm:$0xff]
        %v2672 = vmul.f32 %v2668, %v2666
        %v2673 = vmul.f32 %v2669, %v2665
        %v2674 = vmul.f32 %v2670, %v2664
        %v2675 = vmul.f32 %v2671, %v2663
        %v2676 = vadd.f32 %v2651, %v2672
        %v2677 = vadd.f32 %v2652, %v2673
        %v2678 = vadd.f32 %v2653, %v2674
        %v2679 = vadd.f32 %v2654, %v2675
        %2680 = vrot.lane.b32.xlu0 %v2321, 17
        %v2681 = vpop.permute.xlu0 %2680
        %2682 = vrot.lane.b32.xlu0 %v2322, 17
        %v2683 = vpop.permute.xlu0 %2682
        %2684 = vrot.lane.b32.xlu0 %v2323, 17
        %v2685 = vpop.permute.xlu0 %2684
        %2686 = vrot.lane.b32.xlu0 %v2324, 17
        %v2687 = vpop.permute.xlu0 %2686
        %v2688 = vsel %vm596, %v2685, %v2687
        %v2689 = vsel %vm596, %v2683, %v2685
        %v2690 = vsel %vm596, %v2681, %v2683
        %v2691 = vsel %vm596, %v2687, %v2681
        %s2692 = scalar_lea.vmem [#allocation6], 1568
        %v2693 = vld [vmem:[%s2692] sm:$0xff]
        %v2694 = vld [vmem:[%s2692 + $0x8] sm:$0xff]
        %v2695 = vld [vmem:[%s2692 + $0x10] sm:$0xff]
        %v2696 = vld [vmem:[%s2692 + $0x18] sm:$0xff]
        %v2697 = vmul.f32 %v2693, %v2691
        %v2698 = vmul.f32 %v2694, %v2690
        %v2699 = vmul.f32 %v2695, %v2689
        %v2700 = vmul.f32 %v2696, %v2688
        %v2701 = vadd.f32 %v2676, %v2697
        %v2702 = vadd.f32 %v2677, %v2698
        %v2703 = vadd.f32 %v2678, %v2699
        %v2704 = vadd.f32 %v2679, %v2700
        %2705 = vrot.lane.b32.xlu0 %v2321, 16
        %v2706 = vpop.permute.xlu0 %2705
        %2707 = vrot.lane.b32.xlu0 %v2322, 16
        %v2708 = vpop.permute.xlu0 %2707
        %2709 = vrot.lane.b32.xlu0 %v2323, 16
        %v2710 = vpop.permute.xlu0 %2709
        %2711 = vrot.lane.b32.xlu0 %v2324, 16
        %v2712 = vpop.permute.xlu0 %2711
        %v2713 = vsel %vm650, %v2710, %v2712
        %v2714 = vsel %vm650, %v2708, %v2710
        %v2715 = vsel %vm650, %v2706, %v2708
        %v2716 = vsel %vm650, %v2712, %v2706
        %s2717 = scalar_lea.vmem [#allocation6], 1600
        %v2718 = vld [vmem:[%s2717] sm:$0xff]
        %v2719 = vld [vmem:[%s2717 + $0x8] sm:$0xff]
        %v2720 = vld [vmem:[%s2717 + $0x10] sm:$0xff]
        %v2721 = vld [vmem:[%s2717 + $0x18] sm:$0xff]
        %v2722 = vmul.f32 %v2718, %v2716
        %v2723 = vmul.f32 %v2719, %v2715
        %v2724 = vmul.f32 %v2720, %v2714
        %v2725 = vmul.f32 %v2721, %v2713
        %v2726 = vadd.f32 %v2701, %v2722
        %v2727 = vadd.f32 %v2702, %v2723
        %v2728 = vadd.f32 %v2703, %v2724
        %v2729 = vadd.f32 %v2704, %v2725
        %2730 = vrot.lane.b32.xlu0 %v2321, 15
        %v2731 = vpop.permute.xlu0 %2730
        %2732 = vrot.lane.b32.xlu0 %v2322, 15
        %v2733 = vpop.permute.xlu0 %2732
        %2734 = vrot.lane.b32.xlu0 %v2323, 15
        %v2735 = vpop.permute.xlu0 %2734
        %2736 = vrot.lane.b32.xlu0 %v2324, 15
        %v2737 = vpop.permute.xlu0 %2736
        %v2738 = vsel %vm719, %v2735, %v2737
        %v2739 = vsel %vm719, %v2733, %v2735
        %v2740 = vsel %vm719, %v2731, %v2733
        %v2741 = vsel %vm719, %v2737, %v2731
        %s2742 = scalar_lea.vmem [#allocation6], 1632
        %v2743 = vld [vmem:[%s2742] sm:$0xff]
        %v2744 = vld [vmem:[%s2742 + $0x8] sm:$0xff]
        %v2745 = vld [vmem:[%s2742 + $0x10] sm:$0xff]
        %v2746 = vld [vmem:[%s2742 + $0x18] sm:$0xff]
        %v2747 = vmul.f32 %v2743, %v2741
        %v2748 = vmul.f32 %v2744, %v2740
        %v2749 = vmul.f32 %v2745, %v2739
        %v2750 = vmul.f32 %v2746, %v2738
        %v2751 = vadd.f32 %v2726, %v2747
        %v2752 = vadd.f32 %v2727, %v2748
        %v2753 = vadd.f32 %v2728, %v2749
        %v2754 = vadd.f32 %v2729, %v2750
        %2755 = vrot.lane.b32.xlu0 %v2321, 14
        %v2756 = vpop.permute.xlu0 %2755
        %2757 = vrot.lane.b32.xlu0 %v2322, 14
        %v2758 = vpop.permute.xlu0 %2757
        %2759 = vrot.lane.b32.xlu0 %v2323, 14
        %v2760 = vpop.permute.xlu0 %2759
        %2761 = vrot.lane.b32.xlu0 %v2324, 14
        %v2762 = vpop.permute.xlu0 %2761
        %v2763 = vsel %vm788, %v2760, %v2762
        %v2764 = vsel %vm788, %v2758, %v2760
        %v2765 = vsel %vm788, %v2756, %v2758
        %v2766 = vsel %vm788, %v2762, %v2756
        %s2767 = scalar_lea.vmem [#allocation6], 1664
        %v2768 = vld [vmem:[%s2767] sm:$0xff]
        %v2769 = vld [vmem:[%s2767 + $0x8] sm:$0xff]
        %v2770 = vld [vmem:[%s2767 + $0x10] sm:$0xff]
        %v2771 = vld [vmem:[%s2767 + $0x18] sm:$0xff]
        %v2772 = vmul.f32 %v2768, %v2766
        %v2773 = vmul.f32 %v2769, %v2765
        %v2774 = vmul.f32 %v2770, %v2764
        %v2775 = vmul.f32 %v2771, %v2763
        %v2776 = vadd.f32 %v2751, %v2772
        %v2777 = vadd.f32 %v2752, %v2773
        %v2778 = vadd.f32 %v2753, %v2774
        %v2779 = vadd.f32 %v2754, %v2775
        %2780 = vrot.lane.b32.xlu0 %v2321, 2
        %v2781 = vpop.permute.xlu0 %2780
        %2782 = vrot.lane.b32.xlu0 %v2322, 2
        %v2783 = vpop.permute.xlu0 %2782
        %2784 = vrot.lane.b32.xlu0 %v2323, 2
        %v2785 = vpop.permute.xlu0 %2784
        %2786 = vrot.lane.b32.xlu0 %v2324, 2
        %v2787 = vpop.permute.xlu0 %2786
        %v2788 = vsel %vm818, %v2785, %v2787
        %v2789 = vsel %vm818, %v2783, %v2785
        %v2790 = vsel %vm818, %v2781, %v2783
        %v2791 = vsel %vm818, %v2787, %v2781
        %s2792 = scalar_lea.vmem [#allocation6], 1696
        %v2793 = vld [vmem:[%s2792] sm:$0xff]
        %v2794 = vld [vmem:[%s2792 + $0x8] sm:$0xff]
        %v2795 = vld [vmem:[%s2792 + $0x10] sm:$0xff]
        %v2796 = vld [vmem:[%s2792 + $0x18] sm:$0xff]
        %v2797 = vmul.f32 %v2793, %v2791
        %v2798 = vmul.f32 %v2794, %v2790
        %v2799 = vmul.f32 %v2795, %v2789
        %v2800 = vmul.f32 %v2796, %v2788
        %v2801 = vadd.f32 %v2776, %v2797
        %v2802 = vadd.f32 %v2777, %v2798
        %v2803 = vadd.f32 %v2778, %v2799
        %v2804 = vadd.f32 %v2779, %v2800
        %2805 = vrot.lane.b32.xlu0 %v2321, 1
        %v2806 = vpop.permute.xlu0 %2805
        %2807 = vrot.lane.b32.xlu0 %v2322, 1
        %v2808 = vpop.permute.xlu0 %2807
        %2809 = vrot.lane.b32.xlu0 %v2323, 1
        %v2810 = vpop.permute.xlu0 %2809
        %2811 = vrot.lane.b32.xlu0 %v2324, 1
        %v2812 = vpop.permute.xlu0 %2811
        %v2813 = vsel %vm874, %v2810, %v2812
        %v2814 = vsel %vm874, %v2808, %v2810
        %v2815 = vsel %vm874, %v2806, %v2808
        %v2816 = vsel %vm874, %v2812, %v2806
        %s2817 = scalar_lea.vmem [#allocation6], 1728
        %v2818 = vld [vmem:[%s2817] sm:$0xff]
        %v2819 = vld [vmem:[%s2817 + $0x8] sm:$0xff]
        %v2820 = vld [vmem:[%s2817 + $0x10] sm:$0xff]
        %v2821 = vld [vmem:[%s2817 + $0x18] sm:$0xff]
        %v2822 = vmul.f32 %v2818, %v2816
        %v2823 = vmul.f32 %v2819, %v2815
        %v2824 = vmul.f32 %v2820, %v2814
        %v2825 = vmul.f32 %v2821, %v2813
        %v2826 = vadd.f32 %v2801, %v2822
        %v2827 = vadd.f32 %v2802, %v2823
        %v2828 = vadd.f32 %v2803, %v2824
        %v2829 = vadd.f32 %v2804, %v2825
        %s2830 = scalar_lea.vmem [#allocation6], 1760
        %v2831 = vld [vmem:[%s2830] sm:$0xff]
        %v2832 = vld [vmem:[%s2830 + $0x8] sm:$0xff]
        %v2833 = vld [vmem:[%s2830 + $0x10] sm:$0xff]
        %v2834 = vld [vmem:[%s2830 + $0x18] sm:$0xff]
        %v2835 = vmul.f32 %v2831, %v2321
        %v2836 = vmul.f32 %v2832, %v2322
        %v2837 = vmul.f32 %v2833, %v2323
        %v2838 = vmul.f32 %v2834, %v2324
        %v2839 = vadd.f32 %v2826, %v2835
        %v2840 = vadd.f32 %v2827, %v2836
        %v2841 = vadd.f32 %v2828, %v2837
        %v2842 = vadd.f32 %v2829, %v2838
        %2843 = vrot.lane.b32.xlu0 %v2321, 127
        %v2844 = vpop.permute.xlu0 %2843
        %2845 = vrot.lane.b32.xlu0 %v2322, 127
        %v2846 = vpop.permute.xlu0 %2845
        %2847 = vrot.lane.b32.xlu0 %v2323, 127
        %v2848 = vpop.permute.xlu0 %2847
        %2849 = vrot.lane.b32.xlu0 %v2324, 127
        %v2850 = vpop.permute.xlu0 %2849
        %v2851 = vsel %vm1016, %v2848, %v2850
        %v2852 = vsel %vm1016, %v2846, %v2848
        %v2853 = vsel %vm1016, %v2844, %v2846
        %v2854 = vsel %vm1016, %v2850, %v2844
        %s2855 = scalar_lea.vmem [#allocation6], 1792
        %v2856 = vld [vmem:[%s2855] sm:$0xff]
        %v2857 = vld [vmem:[%s2855 + $0x8] sm:$0xff]
        %v2858 = vld [vmem:[%s2855 + $0x10] sm:$0xff]
        %v2859 = vld [vmem:[%s2855 + $0x18] sm:$0xff]
        %v2860 = vmul.f32 %v2856, %v2853
        %v2861 = vmul.f32 %v2857, %v2852
        %v2862 = vmul.f32 %v2858, %v2851
        %v2863 = vmul.f32 %v2859, %v2854
        %v2864 = vadd.f32 %v2839, %v2860
        %v2865 = vadd.f32 %v2840, %v2861
        %v2866 = vadd.f32 %v2841, %v2862
        %v2867 = vadd.f32 %v2842, %v2863
        %2868 = vrot.lane.b32.xlu0 %v2321, 126
        %v2869 = vpop.permute.xlu0 %2868
        %2870 = vrot.lane.b32.xlu0 %v2322, 126
        %v2871 = vpop.permute.xlu0 %2870
        %2872 = vrot.lane.b32.xlu0 %v2323, 126
        %v2873 = vpop.permute.xlu0 %2872
        %2874 = vrot.lane.b32.xlu0 %v2324, 126
        %v2875 = vpop.permute.xlu0 %2874
        %v2876 = vsel %vm1085, %v2873, %v2875
        %v2877 = vsel %vm1085, %v2871, %v2873
        %v2878 = vsel %vm1085, %v2869, %v2871
        %v2879 = vsel %vm1085, %v2875, %v2869
        %s2880 = scalar_lea.vmem [#allocation6], 1824
        %v2881 = vld [vmem:[%s2880] sm:$0xff]
        %v2882 = vld [vmem:[%s2880 + $0x8] sm:$0xff]
        %v2883 = vld [vmem:[%s2880 + $0x10] sm:$0xff]
        %v2884 = vld [vmem:[%s2880 + $0x18] sm:$0xff]
        %v2885 = vmul.f32 %v2881, %v2878
        %v2886 = vmul.f32 %v2882, %v2877
        %v2887 = vmul.f32 %v2883, %v2876
        %v2888 = vmul.f32 %v2884, %v2879
        %v2889 = vadd.f32 %v2864, %v2885
        %v2890 = vadd.f32 %v2865, %v2886
        %v2891 = vadd.f32 %v2866, %v2887
        %v2892 = vadd.f32 %v2867, %v2888
        %2893 = vrot.lane.b32.xlu0 %v2321, 114
        %v2894 = vpop.permute.xlu0 %2893
        %2895 = vrot.lane.b32.xlu0 %v2322, 114
        %v2896 = vpop.permute.xlu0 %2895
        %2897 = vrot.lane.b32.xlu0 %v2323, 114
        %v2898 = vpop.permute.xlu0 %2897
        %2899 = vrot.lane.b32.xlu0 %v2324, 114
        %v2900 = vpop.permute.xlu0 %2899
        %v2901 = vsel %vm1141, %v2898, %v2900
        %v2902 = vsel %vm1141, %v2896, %v2898
        %v2903 = vsel %vm1141, %v2894, %v2896
        %v2904 = vsel %vm1141, %v2900, %v2894
        %s2905 = scalar_lea.vmem [#allocation6], 1856
        %v2906 = vld [vmem:[%s2905] sm:$0xff]
        %v2907 = vld [vmem:[%s2905 + $0x8] sm:$0xff]
        %v2908 = vld [vmem:[%s2905 + $0x10] sm:$0xff]
        %v2909 = vld [vmem:[%s2905 + $0x18] sm:$0xff]
        %v2910 = vmul.f32 %v2906, %v2903
        %v2911 = vmul.f32 %v2907, %v2902
        %v2912 = vmul.f32 %v2908, %v2901
        %v2913 = vmul.f32 %v2909, %v2904
        %v2914 = vadd.f32 %v2889, %v2910
        %v2915 = vadd.f32 %v2890, %v2911
        %v2916 = vadd.f32 %v2891, %v2912
        %v2917 = vadd.f32 %v2892, %v2913
        %2918 = vrot.lane.b32.xlu0 %v2321, 113
        %v2919 = vpop.permute.xlu0 %2918
        %2920 = vrot.lane.b32.xlu0 %v2322, 113
        %v2921 = vpop.permute.xlu0 %2920
        %2922 = vrot.lane.b32.xlu0 %v2323, 113
        %v2923 = vpop.permute.xlu0 %2922
        %2924 = vrot.lane.b32.xlu0 %v2324, 113
        %v2925 = vpop.permute.xlu0 %2924
        %v2926 = vsel %vm1171, %v2923, %v2925
        %v2927 = vsel %vm1171, %v2921, %v2923
        %v2928 = vsel %vm1171, %v2919, %v2921
        %v2929 = vsel %vm1171, %v2925, %v2919
        %s2930 = scalar_lea.vmem [#allocation6], 1888
        %v2931 = vld [vmem:[%s2930] sm:$0xff]
        %v2932 = vld [vmem:[%s2930 + $0x8] sm:$0xff]
        %v2933 = vld [vmem:[%s2930 + $0x10] sm:$0xff]
        %v2934 = vld [vmem:[%s2930 + $0x18] sm:$0xff]
        %v2935 = vmul.f32 %v2931, %v2928
        %v2936 = vmul.f32 %v2932, %v2927
        %v2937 = vmul.f32 %v2933, %v2926
        %v2938 = vmul.f32 %v2934, %v2929
        %v2939 = vadd.f32 %v2914, %v2935
        %v2940 = vadd.f32 %v2915, %v2936
        %v2941 = vadd.f32 %v2916, %v2937
        %v2942 = vadd.f32 %v2917, %v2938
        %2943 = vrot.lane.b32.xlu0 %v2321, 112
        %v2944 = vpop.permute.xlu0 %2943
        %2945 = vrot.lane.b32.xlu0 %v2322, 112
        %v2946 = vpop.permute.xlu0 %2945
        %2947 = vrot.lane.b32.xlu0 %v2323, 112
        %v2948 = vpop.permute.xlu0 %2947
        %2949 = vrot.lane.b32.xlu0 %v2324, 112
        %v2950 = vpop.permute.xlu0 %2949
        %v2951 = vsel %vm1240, %v2948, %v2950
        %v2952 = vsel %vm1240, %v2946, %v2948
        %v2953 = vsel %vm1240, %v2944, %v2946
        %v2954 = vsel %vm1240, %v2950, %v2944
        %s2955 = scalar_lea.vmem [#allocation6], 1920
        %v2956 = vld [vmem:[%s2955] sm:$0xff]
        %v2957 = vld [vmem:[%s2955 + $0x8] sm:$0xff]
        %v2958 = vld [vmem:[%s2955 + $0x10] sm:$0xff]
        %v2959 = vld [vmem:[%s2955 + $0x18] sm:$0xff]
        %v2960 = vmul.f32 %v2956, %v2953
        %v2961 = vmul.f32 %v2957, %v2952
        %v2962 = vmul.f32 %v2958, %v2951
        %v2963 = vmul.f32 %v2959, %v2954
        %v2964 = vadd.f32 %v2939, %v2960
        %v2965 = vadd.f32 %v2940, %v2961
        %v2966 = vadd.f32 %v2941, %v2962
        %v2967 = vadd.f32 %v2942, %v2963
        %2968 = vrot.lane.b32.xlu0 %v2321, 111
        %v2969 = vpop.permute.xlu0 %2968
        %2970 = vrot.lane.b32.xlu0 %v2322, 111
        %v2971 = vpop.permute.xlu0 %2970
        %2972 = vrot.lane.b32.xlu0 %v2323, 111
        %v2973 = vpop.permute.xlu0 %2972
        %2974 = vrot.lane.b32.xlu0 %v2324, 111
        %v2975 = vpop.permute.xlu0 %2974
        %v2976 = vsel %vm1309, %v2973, %v2975
        %v2977 = vsel %vm1309, %v2971, %v2973
        %v2978 = vsel %vm1309, %v2969, %v2971
        %v2979 = vsel %vm1309, %v2975, %v2969
        %s2980 = scalar_lea.vmem [#allocation6], 1952
        %v2981 = vld [vmem:[%s2980] sm:$0xff]
        %v2982 = vld [vmem:[%s2980 + $0x8] sm:$0xff]
        %v2983 = vld [vmem:[%s2980 + $0x10] sm:$0xff]
        %v2984 = vld [vmem:[%s2980 + $0x18] sm:$0xff]
        %v2985 = vmul.f32 %v2981, %v2978
        %v2986 = vmul.f32 %v2982, %v2977
        %v2987 = vmul.f32 %v2983, %v2976
        %v2988 = vmul.f32 %v2984, %v2979
        %v2989 = vadd.f32 %v2964, %v2985
        %v2990 = vadd.f32 %v2965, %v2986
        %v2991 = vadd.f32 %v2966, %v2987
        %v2992 = vadd.f32 %v2967, %v2988
        %2993 = vrot.lane.b32.xlu0 %v2321, 110
        %v2994 = vpop.permute.xlu0 %2993
        %2995 = vrot.lane.b32.xlu0 %v2322, 110
        %v2996 = vpop.permute.xlu0 %2995
        %2997 = vrot.lane.b32.xlu0 %v2323, 110
        %v2998 = vpop.permute.xlu0 %2997
        %2999 = vrot.lane.b32.xlu0 %v2324, 110
        %v3000 = vpop.permute.xlu0 %2999
        %v3001 = vsel %vm1378, %v2998, %v3000
        %v3002 = vsel %vm1378, %v2996, %v2998
        %v3003 = vsel %vm1378, %v2994, %v2996
        %v3004 = vsel %vm1378, %v3000, %v2994
        %s3005 = scalar_lea.vmem [#allocation6], 1984
        %v3006 = vld [vmem:[%s3005] sm:$0xff]
        %v3007 = vld [vmem:[%s3005 + $0x8] sm:$0xff]
        %v3008 = vld [vmem:[%s3005 + $0x10] sm:$0xff]
        %v3009 = vld [vmem:[%s3005 + $0x18] sm:$0xff]
        %v3010 = vmul.f32 %v3006, %v3003
        %v3011 = vmul.f32 %v3007, %v3002
        %v3012 = vmul.f32 %v3008, %v3001
        %v3013 = vmul.f32 %v3009, %v3004
        %v3014 = vadd.f32 %v2989, %v3010
        %v3015 = vadd.f32 %v2990, %v3011
        %v3016 = vadd.f32 %v2991, %v3012
        %v3017 = vadd.f32 %v2992, %v3013
        %3018 = vrot.lane.b32.xlu0 %v2321, 98
        %v3019 = vpop.permute.xlu0 %3018
        %3020 = vrot.lane.b32.xlu0 %v2322, 98
        %v3021 = vpop.permute.xlu0 %3020
        %3022 = vrot.lane.b32.xlu0 %v2323, 98
        %v3023 = vpop.permute.xlu0 %3022
        %3024 = vrot.lane.b32.xlu0 %v2324, 98
        %v3025 = vpop.permute.xlu0 %3024
        %v3026 = vsel %vm1408, %v3023, %v3025
        %v3027 = vsel %vm1408, %v3021, %v3023
        %v3028 = vsel %vm1408, %v3019, %v3021
        %v3029 = vsel %vm1408, %v3025, %v3019
        %s3030 = scalar_lea.vmem [#allocation6], 2016
        %v3031 = vld [vmem:[%s3030] sm:$0xff]
        %v3032 = vld [vmem:[%s3030 + $0x8] sm:$0xff]
        %v3033 = vld [vmem:[%s3030 + $0x10] sm:$0xff]
        %v3034 = vld [vmem:[%s3030 + $0x18] sm:$0xff]
        %v3035 = vmul.f32 %v3031, %v3028
        %v3036 = vmul.f32 %v3032, %v3027
        %v3037 = vmul.f32 %v3033, %v3026
        %v3038 = vmul.f32 %v3034, %v3029
        %v3039 = vadd.f32 %v3014, %v3035
        %v3040 = vadd.f32 %v3015, %v3036
        %v3041 = vadd.f32 %v3016, %v3037
        %v3042 = vadd.f32 %v3017, %v3038
        %3043 = vrot.lane.b32.xlu0 %v2321, 97
        %v3044 = vpop.permute.xlu0 %3043
        %3045 = vrot.lane.b32.xlu0 %v2322, 97
        %v3046 = vpop.permute.xlu0 %3045
        %3047 = vrot.lane.b32.xlu0 %v2323, 97
        %v3048 = vpop.permute.xlu0 %3047
        %3049 = vrot.lane.b32.xlu0 %v2324, 97
        %v3050 = vpop.permute.xlu0 %3049
        %v3051 = vsel %vm1464, %v3048, %v3050
        %v3052 = vsel %vm1464, %v3046, %v3048
        %v3053 = vsel %vm1464, %v3044, %v3046
        %v3054 = vsel %vm1464, %v3050, %v3044
        %s3055 = scalar_lea.vmem [#allocation6], 2048
        %v3056 = vld [vmem:[%s3055] sm:$0xff]
        %v3057 = vld [vmem:[%s3055 + $0x8] sm:$0xff]
        %v3058 = vld [vmem:[%s3055 + $0x10] sm:$0xff]
        %v3059 = vld [vmem:[%s3055 + $0x18] sm:$0xff]
        %v3060 = vmul.f32 %v3056, %v3053
        %v3061 = vmul.f32 %v3057, %v3052
        %v3062 = vmul.f32 %v3058, %v3051
        %v3063 = vmul.f32 %v3059, %v3054
        %v3064 = vadd.f32 %v3039, %v3060
        %v3065 = vadd.f32 %v3040, %v3061
        %v3066 = vadd.f32 %v3041, %v3062
        %v3067 = vadd.f32 %v3042, %v3063
        %3068 = vrot.lane.b32.xlu0 %v2321, 96
        %v3069 = vpop.permute.xlu0 %3068
        %3070 = vrot.lane.b32.xlu0 %v2322, 96
        %v3071 = vpop.permute.xlu0 %3070
        %3072 = vrot.lane.b32.xlu0 %v2323, 96
        %v3073 = vpop.permute.xlu0 %3072
        %3074 = vrot.lane.b32.xlu0 %v2324, 96
        %v3075 = vpop.permute.xlu0 %3074
        %v3076 = vsel %vm1494, %v3073, %v3075
        %v3077 = vsel %vm1494, %v3071, %v3073
        %v3078 = vsel %vm1494, %v3069, %v3071
        %v3079 = vsel %vm1494, %v3075, %v3069
        %s3080 = scalar_lea.vmem [#allocation6], 2080
        %v3081 = vld [vmem:[%s3080] sm:$0xff]
        %v3082 = vld [vmem:[%s3080 + $0x8] sm:$0xff]
        %v3083 = vld [vmem:[%s3080 + $0x10] sm:$0xff]
        %v3084 = vld [vmem:[%s3080 + $0x18] sm:$0xff]
        %v3085 = vmul.f32 %v3081, %v3078
        %v3086 = vmul.f32 %v3082, %v3077
        %v3087 = vmul.f32 %v3083, %v3076
        %v3088 = vmul.f32 %v3084, %v3079
        %v3089 = vadd.f32 %v3064, %v3085
        %v3090 = vadd.f32 %v3065, %v3086
        %v3091 = vadd.f32 %v3066, %v3087
        %v3092 = vadd.f32 %v3067, %v3088
        %3093 = vrot.lane.b32.xlu0 %v2321, 95
        %v3094 = vpop.permute.xlu0 %3093
        %3095 = vrot.lane.b32.xlu0 %v2322, 95
        %v3096 = vpop.permute.xlu0 %3095
        %3097 = vrot.lane.b32.xlu0 %v2323, 95
        %v3098 = vpop.permute.xlu0 %3097
        %3099 = vrot.lane.b32.xlu0 %v2324, 95
        %v3100 = vpop.permute.xlu0 %3099
        %v3101 = vsel %vm1550, %v3098, %v3100
        %v3102 = vsel %vm1550, %v3096, %v3098
        %v3103 = vsel %vm1550, %v3094, %v3096
        %v3104 = vsel %vm1550, %v3100, %v3094
        %s3105 = scalar_lea.vmem [#allocation6], 2112
        %v3106 = vld [vmem:[%s3105] sm:$0xff]
        %v3107 = vld [vmem:[%s3105 + $0x8] sm:$0xff]
        %v3108 = vld [vmem:[%s3105 + $0x10] sm:$0xff]
        %v3109 = vld [vmem:[%s3105 + $0x18] sm:$0xff]
        %v3110 = vmul.f32 %v3106, %v3103
        %v3111 = vmul.f32 %v3107, %v3102
        %v3112 = vmul.f32 %v3108, %v3101
        %v3113 = vmul.f32 %v3109, %v3104
        %v3114 = vadd.f32 %v3089, %v3110
        %v3115 = vadd.f32 %v3090, %v3111
        %v3116 = vadd.f32 %v3091, %v3112
        %v3117 = vadd.f32 %v3092, %v3113
        %3118 = vrot.lane.b32.xlu0 %v2321, 94
        %v3119 = vpop.permute.xlu0 %3118
        %3120 = vrot.lane.b32.xlu0 %v2322, 94
        %v3121 = vpop.permute.xlu0 %3120
        %3122 = vrot.lane.b32.xlu0 %v2323, 94
        %v3123 = vpop.permute.xlu0 %3122
        %3124 = vrot.lane.b32.xlu0 %v2324, 94
        %v3125 = vpop.permute.xlu0 %3124
        %v3126 = vsel %vm1580, %v3123, %v3125
        %v3127 = vsel %vm1580, %v3121, %v3123
        %v3128 = vsel %vm1580, %v3119, %v3121
        %v3129 = vsel %vm1580, %v3125, %v3119
        %s3130 = scalar_lea.vmem [#allocation6], 2144
        %v3131 = vld [vmem:[%s3130] sm:$0xff]
        %v3132 = vld [vmem:[%s3130 + $0x8] sm:$0xff]
        %v3133 = vld [vmem:[%s3130 + $0x10] sm:$0xff]
        %v3134 = vld [vmem:[%s3130 + $0x18] sm:$0xff]
        %v3135 = vmul.f32 %v3131, %v3128
        %v3136 = vmul.f32 %v3132, %v3127
        %v3137 = vmul.f32 %v3133, %v3126
        %v3138 = vmul.f32 %v3134, %v3129
        %v3139 = vadd.f32 %v3114, %v3135
        %v3140 = vadd.f32 %v3115, %v3136
        %v3141 = vadd.f32 %v3116, %v3137
        %v3142 = vadd.f32 %v3117, %v3138
        %s3143 = sld [smem:[#allocation2 + $0x3]]
        %v3144 = vstv %s3143
        %v3145 = vmul.f32 %v3144, %v336
        %v3146 = vmul.f32 %v3144, %v337
        %v3147 = vmul.f32 %v3144, %v338
        %v3148 = vmul.f32 %v3144, %v339
        %s3149 = sld [smem:[#allocation2 + $0x1]]
        %v3150 = vstv %s3149
        %v3151 = vmul.f32 %v3150, %v1336
        %v3152 = vmul.f32 %v3150, %v1337
        %v3153 = vmul.f32 %v3150, %v1338
        %v3154 = vmul.f32 %v3150, %v1339
        %v3155 = vadd.f32 %v3145, %v3151
        %v3156 = vadd.f32 %v3146, %v3152
        %v3157 = vadd.f32 %v3147, %v3153
        %v3158 = vadd.f32 %v3148, %v3154
        %v3159 = vadd.f32 %v3155, %v1323
        %v3160 = vadd.f32 %v3156, %v1324
        %v3161 = vadd.f32 %v3157, %v1325
        %v3162 = vadd.f32 %v3158, %v1326
        %s3163 = scalar_lea.vmem [#allocation7], 8
        %v3164 = vld [vmem:[%s3163] sm:$0xff]
        %v3166 = vsel %vm2024, %v3164, 0
        %3168 = vmatprep.subr.mxu0 0.0
        %3169 = vmatpush1.msra.mxu0 0.0
        %3170 = vmatprep.subr.mxu0 0.0
        %3171 = vmatpush1.msra.mxu0 0.0
        %3172 = vmatprep.subr.mxu0 0.0
        %3173 = vmatpush1.msra.mxu0 0.0
        %3174 = vmatprep.subr.mxu0 0.0
        %3175 = vmatpush1.msra.mxu0 0.0
        %3176 = vmatprep.subr.mxu0 0.0
        %3177 = vmatpush1.msra.mxu0 0.0
        %3178 = vmatprep.subr.mxu0 0.0
        %3179 = vmatpush1.msra.mxu0 0.0
        %3180 = vmatprep.subr.mxu0 0.0
        %3181 = vmatpush1.msra.mxu0 0.0
        %3182 = vmatprep.subr.mxu0 0.0
        %3183 = vmatpush1.msra.mxu0 0.0
        %3184 = vmatprep.subr.mxu0 0.0
        %3185 = vmatpush1.msra.mxu0 0.0
        %3186 = vmatprep.subr.mxu0 0.0
        %3187 = vmatpush1.msra.mxu0 0.0
        %3188 = vmatprep.subr.mxu0 0.0
        %3189 = vmatpush1.msra.mxu0 0.0
        %3190 = vmatprep.subr.mxu0 0.0
        %3191 = vmatpush1.msra.mxu0 0.0
        %3192 = vmatprep.subr.mxu0 0.0
        %3193 = vmatpush1.msra.mxu0 0.0
        %3194 = vmatprep.subr.mxu0 0.0
        %3195 = vmatpush1.msra.mxu0 0.0
        %3196 = vmatprep.subr.mxu0 0.0
        %3197 = vmatpush1.msra.mxu0 0.0
        %3198 = vmatprep.subr.mxu0 %v2531
        %3199 = vmatpush1.msra.mxu0 %v2530
        %3200 = vmatprep.subr.mxu0 0.0
        %3201 = vmatpush2.msra.mxu0 0.0
        %3202 = vmatprep.subr.mxu0 0.0
        %3203 = vmatpush2.msra.mxu0 0.0
        %3204 = vmatprep.subr.mxu0 0.0
        %3205 = vmatpush2.msra.mxu0 0.0
        %3206 = vmatprep.subr.mxu0 0.0
        %3207 = vmatpush2.msra.mxu0 0.0
        %3208 = vmatprep.subr.mxu0 0.0
        %3209 = vmatpush2.msra.mxu0 0.0
        %3210 = vmatprep.subr.mxu0 0.0
        %3211 = vmatpush2.msra.mxu0 0.0
        %3212 = vmatprep.subr.mxu0 0.0
        %3213 = vmatpush2.msra.mxu0 0.0
        %3214 = vmatprep.subr.mxu0 0.0
        %3215 = vmatpush2.msra.mxu0 0.0
        %3216 = vmatprep.subr.mxu0 0.0
        %3217 = vmatpush2.msra.mxu0 0.0
        %3218 = vmatprep.subr.mxu0 0.0
        %3219 = vmatpush2.msra.mxu0 0.0
        %3220 = vmatprep.subr.mxu0 0.0
        %3221 = vmatpush2.msra.mxu0 0.0
        %3222 = vmatprep.subr.mxu0 0.0
        %3223 = vmatpush2.msra.mxu0 0.0
        %3224 = vmatprep.subr.mxu0 0.0
        %3225 = vmatpush2.msra.mxu0 0.0
        %3226 = vmatprep.subr.mxu0 0.0
        %3227 = vmatpush2.msra.mxu0 0.0
        %3228 = vmatprep.subr.mxu0 0.0
        %3229 = vmatpush2.msra.mxu0 0.0
        %3230 = vmatprep.subr.mxu0 0.0
        %3231 = vmatpush2.msra.mxu0 0.0
        %3232 = vmatprep.mubr.f32.mxu0 0.0
        %3233 = vmatmul.mubr.f32.gmra.mxu0 %v3166
        %v3234 = vpop.f32.mrf.mxu0
        %v3235 = vadd.f32 0.0, %v3234
        %v3236 = vpop.f32.mrf.mxu0
        %v3237 = vadd.f32 0.0, %v3236
        %3238 = vdwg.mxu0
        %3239 = vmatprep.subr.mxu0 0.0
        %3240 = vmatpush1.msra.mxu0 0.0
        %3241 = vmatprep.subr.mxu0 0.0
        %3242 = vmatpush1.msra.mxu0 0.0
        %3243 = vmatprep.subr.mxu0 0.0
        %3244 = vmatpush1.msra.mxu0 0.0
        %3245 = vmatprep.subr.mxu0 0.0
        %3246 = vmatpush1.msra.mxu0 0.0
        %3247 = vmatprep.subr.mxu0 0.0
        %3248 = vmatpush1.msra.mxu0 0.0
        %3249 = vmatprep.subr.mxu0 0.0
        %3250 = vmatpush1.msra.mxu0 0.0
        %3251 = vmatprep.subr.mxu0 0.0
        %3252 = vmatpush1.msra.mxu0 0.0
        %3253 = vmatprep.subr.mxu0 0.0
        %3254 = vmatpush1.msra.mxu0 0.0
        %3255 = vmatprep.subr.mxu0 0.0
        %3256 = vmatpush1.msra.mxu0 0.0
        %3257 = vmatprep.subr.mxu0 0.0
        %3258 = vmatpush1.msra.mxu0 0.0
        %3259 = vmatprep.subr.mxu0 0.0
        %3260 = vmatpush1.msra.mxu0 0.0
        %3261 = vmatprep.subr.mxu0 0.0
        %3262 = vmatpush1.msra.mxu0 0.0
        %3263 = vmatprep.subr.mxu0 0.0
        %3264 = vmatpush1.msra.mxu0 0.0
        %3265 = vmatprep.subr.mxu0 0.0
        %3266 = vmatpush1.msra.mxu0 0.0
        %3267 = vmatprep.subr.mxu0 0.0
        %3268 = vmatpush1.msra.mxu0 0.0
        %3269 = vmatprep.subr.mxu0 %v2533
        %3270 = vmatpush1.msra.mxu0 %v2532
        %3271 = vmatprep.subr.mxu0 0.0
        %3272 = vmatpush2.msra.mxu0 0.0
        %3273 = vmatprep.subr.mxu0 0.0
        %3274 = vmatpush2.msra.mxu0 0.0
        %3275 = vmatprep.subr.mxu0 0.0
        %3276 = vmatpush2.msra.mxu0 0.0
        %3277 = vmatprep.subr.mxu0 0.0
        %3278 = vmatpush2.msra.mxu0 0.0
        %3279 = vmatprep.subr.mxu0 0.0
        %3280 = vmatpush2.msra.mxu0 0.0
        %3281 = vmatprep.subr.mxu0 0.0
        %3282 = vmatpush2.msra.mxu0 0.0
        %3283 = vmatprep.subr.mxu0 0.0
        %3284 = vmatpush2.msra.mxu0 0.0
        %3285 = vmatprep.subr.mxu0 0.0
        %3286 = vmatpush2.msra.mxu0 0.0
        %3287 = vmatprep.subr.mxu0 0.0
        %3288 = vmatpush2.msra.mxu0 0.0
        %3289 = vmatprep.subr.mxu0 0.0
        %3290 = vmatpush2.msra.mxu0 0.0
        %3291 = vmatprep.subr.mxu0 0.0
        %3292 = vmatpush2.msra.mxu0 0.0
        %3293 = vmatprep.subr.mxu0 0.0
        %3294 = vmatpush2.msra.mxu0 0.0
        %3295 = vmatprep.subr.mxu0 0.0
        %3296 = vmatpush2.msra.mxu0 0.0
        %3297 = vmatprep.subr.mxu0 0.0
        %3298 = vmatpush2.msra.mxu0 0.0
        %3299 = vmatprep.subr.mxu0 0.0
        %3300 = vmatpush2.msra.mxu0 0.0
        %3301 = vmatprep.subr.mxu0 0.0
        %3302 = vmatpush2.msra.mxu0 0.0
        %3303 = vmatprep.mubr.f32.mxu0 0.0
        %3304 = vmatmul.mubr.f32.gmra.mxu0 %v3166
        %v3305 = vpop.f32.mrf.mxu0
        %v3306 = vadd.f32 0.0, %v3305
        %v3307 = vpop.f32.mrf.mxu0
        %v3308 = vadd.f32 0.0, %v3307
        %3309 = vdwg.mxu0
        %v3310 = vadd.f32 %v3159, %v3235
        %v3311 = vadd.f32 %v3160, %v3237
        %v3312 = vadd.f32 %v3161, %v3306
        %v3313 = vadd.f32 %v3162, %v3308
        %s3314 = scalar_lea.vmem [#allocation7], 24
        %v3315 = vld [vmem:[%s3314] sm:$0xff]
        %v3317 = vsel %vm2024, %v3315, 0
        %3319 = vmatprep.subr.mxu0 0.0
        %3320 = vmatpush1.msra.mxu0 0.0
        %3321 = vmatprep.subr.mxu0 0.0
        %3322 = vmatpush1.msra.mxu0 0.0
        %3323 = vmatprep.subr.mxu0 0.0
        %3324 = vmatpush1.msra.mxu0 0.0
        %3325 = vmatprep.subr.mxu0 0.0
        %3326 = vmatpush1.msra.mxu0 0.0
        %3327 = vmatprep.subr.mxu0 0.0
        %3328 = vmatpush1.msra.mxu0 0.0
        %3329 = vmatprep.subr.mxu0 0.0
        %3330 = vmatpush1.msra.mxu0 0.0
        %3331 = vmatprep.subr.mxu0 0.0
        %3332 = vmatpush1.msra.mxu0 0.0
        %3333 = vmatprep.subr.mxu0 0.0
        %3334 = vmatpush1.msra.mxu0 0.0
        %3335 = vmatprep.subr.mxu0 0.0
        %3336 = vmatpush1.msra.mxu0 0.0
        %3337 = vmatprep.subr.mxu0 0.0
        %3338 = vmatpush1.msra.mxu0 0.0
        %3339 = vmatprep.subr.mxu0 0.0
        %3340 = vmatpush1.msra.mxu0 0.0
        %3341 = vmatprep.subr.mxu0 0.0
        %3342 = vmatpush1.msra.mxu0 0.0
        %3343 = vmatprep.subr.mxu0 0.0
        %3344 = vmatpush1.msra.mxu0 0.0
        %3345 = vmatprep.subr.mxu0 0.0
        %3346 = vmatpush1.msra.mxu0 0.0
        %3347 = vmatprep.subr.mxu0 0.0
        %3348 = vmatpush1.msra.mxu0 0.0
        %3349 = vmatprep.subr.mxu0 %v3140
        %3350 = vmatpush1.msra.mxu0 %v3139
        %3351 = vmatprep.subr.mxu0 0.0
        %3352 = vmatpush2.msra.mxu0 0.0
        %3353 = vmatprep.subr.mxu0 0.0
        %3354 = vmatpush2.msra.mxu0 0.0
        %3355 = vmatprep.subr.mxu0 0.0
        %3356 = vmatpush2.msra.mxu0 0.0
        %3357 = vmatprep.subr.mxu0 0.0
        %3358 = vmatpush2.msra.mxu0 0.0
        %3359 = vmatprep.subr.mxu0 0.0
        %3360 = vmatpush2.msra.mxu0 0.0
        %3361 = vmatprep.subr.mxu0 0.0
        %3362 = vmatpush2.msra.mxu0 0.0
        %3363 = vmatprep.subr.mxu0 0.0
        %3364 = vmatpush2.msra.mxu0 0.0
        %3365 = vmatprep.subr.mxu0 0.0
        %3366 = vmatpush2.msra.mxu0 0.0
        %3367 = vmatprep.subr.mxu0 0.0
        %3368 = vmatpush2.msra.mxu0 0.0
        %3369 = vmatprep.subr.mxu0 0.0
        %3370 = vmatpush2.msra.mxu0 0.0
        %3371 = vmatprep.subr.mxu0 0.0
        %3372 = vmatpush2.msra.mxu0 0.0
        %3373 = vmatprep.subr.mxu0 0.0
        %3374 = vmatpush2.msra.mxu0 0.0
        %3375 = vmatprep.subr.mxu0 0.0
        %3376 = vmatpush2.msra.mxu0 0.0
        %3377 = vmatprep.subr.mxu0 0.0
        %3378 = vmatpush2.msra.mxu0 0.0
        %3379 = vmatprep.subr.mxu0 0.0
        %3380 = vmatpush2.msra.mxu0 0.0
        %3381 = vmatprep.subr.mxu0 0.0
        %3382 = vmatpush2.msra.mxu0 0.0
        %3383 = vmatprep.mubr.f32.mxu0 0.0
        %3384 = vmatmul.mubr.f32.gmra.mxu0 %v3317
        %v3385 = vpop.f32.mrf.mxu0
        %v3386 = vadd.f32 0.0, %v3385
        %v3387 = vpop.f32.mrf.mxu0
        %v3388 = vadd.f32 0.0, %v3387
        %3389 = vdwg.mxu0
        %3390 = vmatprep.subr.mxu0 0.0
        %3391 = vmatpush1.msra.mxu0 0.0
        %3392 = vmatprep.subr.mxu0 0.0
        %3393 = vmatpush1.msra.mxu0 0.0
        %3394 = vmatprep.subr.mxu0 0.0
        %3395 = vmatpush1.msra.mxu0 0.0
        %3396 = vmatprep.subr.mxu0 0.0
        %3397 = vmatpush1.msra.mxu0 0.0
        %3398 = vmatprep.subr.mxu0 0.0
        %3399 = vmatpush1.msra.mxu0 0.0
        %3400 = vmatprep.subr.mxu0 0.0
        %3401 = vmatpush1.msra.mxu0 0.0
        %3402 = vmatprep.subr.mxu0 0.0
        %3403 = vmatpush1.msra.mxu0 0.0
        %3404 = vmatprep.subr.mxu0 0.0
        %3405 = vmatpush1.msra.mxu0 0.0
        %3406 = vmatprep.subr.mxu0 0.0
        %3407 = vmatpush1.msra.mxu0 0.0
        %3408 = vmatprep.subr.mxu0 0.0
        %3409 = vmatpush1.msra.mxu0 0.0
        %3410 = vmatprep.subr.mxu0 0.0
        %3411 = vmatpush1.msra.mxu0 0.0
        %3412 = vmatprep.subr.mxu0 0.0
        %3413 = vmatpush1.msra.mxu0 0.0
        %3414 = vmatprep.subr.mxu0 0.0
        %3415 = vmatpush1.msra.mxu0 0.0
        %3416 = vmatprep.subr.mxu0 0.0
        %3417 = vmatpush1.msra.mxu0 0.0
        %3418 = vmatprep.subr.mxu0 0.0
        %3419 = vmatpush1.msra.mxu0 0.0
        %3420 = vmatprep.subr.mxu0 %v3142
        %3421 = vmatpush1.msra.mxu0 %v3141
        %3422 = vmatprep.subr.mxu0 0.0
        %3423 = vmatpush2.msra.mxu0 0.0
        %3424 = vmatprep.subr.mxu0 0.0
        %3425 = vmatpush2.msra.mxu0 0.0
        %3426 = vmatprep.subr.mxu0 0.0
        %3427 = vmatpush2.msra.mxu0 0.0
        %3428 = vmatprep.subr.mxu0 0.0
        %3429 = vmatpush2.msra.mxu0 0.0
        %3430 = vmatprep.subr.mxu0 0.0
        %3431 = vmatpush2.msra.mxu0 0.0
        %3432 = vmatprep.subr.mxu0 0.0
        %3433 = vmatpush2.msra.mxu0 0.0
        %3434 = vmatprep.subr.mxu0 0.0
        %3435 = vmatpush2.msra.mxu0 0.0
        %3436 = vmatprep.subr.mxu0 0.0
        %3437 = vmatpush2.msra.mxu0 0.0
        %3438 = vmatprep.subr.mxu0 0.0
        %3439 = vmatpush2.msra.mxu0 0.0
        %3440 = vmatprep.subr.mxu0 0.0
        %3441 = vmatpush2.msra.mxu0 0.0
        %3442 = vmatprep.subr.mxu0 0.0
        %3443 = vmatpush2.msra.mxu0 0.0
        %3444 = vmatprep.subr.mxu0 0.0
        %3445 = vmatpush2.msra.mxu0 0.0
        %3446 = vmatprep.subr.mxu0 0.0
        %3447 = vmatpush2.msra.mxu0 0.0
        %3448 = vmatprep.subr.mxu0 0.0
        %3449 = vmatpush2.msra.mxu0 0.0
        %3450 = vmatprep.subr.mxu0 0.0
        %3451 = vmatpush2.msra.mxu0 0.0
        %3452 = vmatprep.subr.mxu0 0.0
        %3453 = vmatpush2.msra.mxu0 0.0
        %3454 = vmatprep.mubr.f32.mxu0 0.0
        %3455 = vmatmul.mubr.f32.gmra.mxu0 %v3317
        %v3456 = vpop.f32.mrf.mxu0
        %v3457 = vadd.f32 0.0, %v3456
        %v3458 = vpop.f32.mrf.mxu0
        %v3459 = vadd.f32 0.0, %v3458
        %3460 = vdwg.mxu0
        %v3461 = vadd.f32 %v3310, %v3386
        %v3462 = vadd.f32 %v3311, %v3388
        %v3463 = vadd.f32 %v3312, %v3457
        %v3464 = vadd.f32 %v3313, %v3459
        %s3465 = scalar_lea.vmem [#allocation7], 32
        %v3466 = vld [vmem:[%s3465] sm:$0xff]
        %v3468 = vsel %vm2024, %v3466, 0
        %3470 = vmatprep.subr.mxu0 0.0
        %3471 = vmatpush1.msra.mxu0 0.0
        %3472 = vmatprep.subr.mxu0 0.0
        %3473 = vmatpush1.msra.mxu0 0.0
        %3474 = vmatprep.subr.mxu0 0.0
        %3475 = vmatpush1.msra.mxu0 0.0
        %3476 = vmatprep.subr.mxu0 0.0
        %3477 = vmatpush1.msra.mxu0 0.0
        %3478 = vmatprep.subr.mxu0 0.0
        %3479 = vmatpush1.msra.mxu0 0.0
        %3480 = vmatprep.subr.mxu0 0.0
        %3481 = vmatpush1.msra.mxu0 0.0
        %3482 = vmatprep.subr.mxu0 0.0
        %3483 = vmatpush1.msra.mxu0 0.0
        %3484 = vmatprep.subr.mxu0 0.0
        %3485 = vmatpush1.msra.mxu0 0.0
        %3486 = vmatprep.subr.mxu0 0.0
        %3487 = vmatpush1.msra.mxu0 0.0
        %3488 = vmatprep.subr.mxu0 0.0
        %3489 = vmatpush1.msra.mxu0 0.0
        %3490 = vmatprep.subr.mxu0 0.0
        %3491 = vmatpush1.msra.mxu0 0.0
        %3492 = vmatprep.subr.mxu0 0.0
        %3493 = vmatpush1.msra.mxu0 0.0
        %3494 = vmatprep.subr.mxu0 0.0
        %3495 = vmatpush1.msra.mxu0 0.0
        %3496 = vmatprep.subr.mxu0 0.0
        %3497 = vmatpush1.msra.mxu0 0.0
        %3498 = vmatprep.subr.mxu0 0.0
        %3499 = vmatpush1.msra.mxu0 0.0
        %3500 = vmatprep.subr.mxu0 %v1612
        %3501 = vmatpush1.msra.mxu0 %v1611
        %3502 = vmatprep.subr.mxu0 0.0
        %3503 = vmatpush2.msra.mxu0 0.0
        %3504 = vmatprep.subr.mxu0 0.0
        %3505 = vmatpush2.msra.mxu0 0.0
        %3506 = vmatprep.subr.mxu0 0.0
        %3507 = vmatpush2.msra.mxu0 0.0
        %3508 = vmatprep.subr.mxu0 0.0
        %3509 = vmatpush2.msra.mxu0 0.0
        %3510 = vmatprep.subr.mxu0 0.0
        %3511 = vmatpush2.msra.mxu0 0.0
        %3512 = vmatprep.subr.mxu0 0.0
        %3513 = vmatpush2.msra.mxu0 0.0
        %3514 = vmatprep.subr.mxu0 0.0
        %3515 = vmatpush2.msra.mxu0 0.0
        %3516 = vmatprep.subr.mxu0 0.0
        %3517 = vmatpush2.msra.mxu0 0.0
        %3518 = vmatprep.subr.mxu0 0.0
        %3519 = vmatpush2.msra.mxu0 0.0
        %3520 = vmatprep.subr.mxu0 0.0
        %3521 = vmatpush2.msra.mxu0 0.0
        %3522 = vmatprep.subr.mxu0 0.0
        %3523 = vmatpush2.msra.mxu0 0.0
        %3524 = vmatprep.subr.mxu0 0.0
        %3525 = vmatpush2.msra.mxu0 0.0
        %3526 = vmatprep.subr.mxu0 0.0
        %3527 = vmatpush2.msra.mxu0 0.0
        %3528 = vmatprep.subr.mxu0 0.0
        %3529 = vmatpush2.msra.mxu0 0.0
        %3530 = vmatprep.subr.mxu0 0.0
        %3531 = vmatpush2.msra.mxu0 0.0
        %3532 = vmatprep.subr.mxu0 0.0
        %3533 = vmatpush2.msra.mxu0 0.0
        %3534 = vmatprep.mubr.f32.mxu0 0.0
        %3535 = vmatmul.mubr.f32.gmra.mxu0 %v3468
        %v3536 = vpop.f32.mrf.mxu0
        %v3537 = vadd.f32 0.0, %v3536
        %v3538 = vpop.f32.mrf.mxu0
        %v3539 = vadd.f32 0.0, %v3538
        %3540 = vdwg.mxu0
        %3541 = vmatprep.subr.mxu0 0.0
        %3542 = vmatpush1.msra.mxu0 0.0
        %3543 = vmatprep.subr.mxu0 0.0
        %3544 = vmatpush1.msra.mxu0 0.0
        %3545 = vmatprep.subr.mxu0 0.0
        %3546 = vmatpush1.msra.mxu0 0.0
        %3547 = vmatprep.subr.mxu0 0.0
        %3548 = vmatpush1.msra.mxu0 0.0
        %3549 = vmatprep.subr.mxu0 0.0
        %3550 = vmatpush1.msra.mxu0 0.0
        %3551 = vmatprep.subr.mxu0 0.0
        %3552 = vmatpush1.msra.mxu0 0.0
        %3553 = vmatprep.subr.mxu0 0.0
        %3554 = vmatpush1.msra.mxu0 0.0
        %3555 = vmatprep.subr.mxu0 0.0
        %3556 = vmatpush1.msra.mxu0 0.0
        %3557 = vmatprep.subr.mxu0 0.0
        %3558 = vmatpush1.msra.mxu0 0.0
        %3559 = vmatprep.subr.mxu0 0.0
        %3560 = vmatpush1.msra.mxu0 0.0
        %3561 = vmatprep.subr.mxu0 0.0
        %3562 = vmatpush1.msra.mxu0 0.0
        %3563 = vmatprep.subr.mxu0 0.0
        %3564 = vmatpush1.msra.mxu0 0.0
        %3565 = vmatprep.subr.mxu0 0.0
        %3566 = vmatpush1.msra.mxu0 0.0
        %3567 = vmatprep.subr.mxu0 0.0
        %3568 = vmatpush1.msra.mxu0 0.0
        %3569 = vmatprep.subr.mxu0 0.0
        %3570 = vmatpush1.msra.mxu0 0.0
        %3571 = vmatprep.subr.mxu0 %v1614
        %3572 = vmatpush1.msra.mxu0 %v1613
        %3573 = vmatprep.subr.mxu0 0.0
        %3574 = vmatpush2.msra.mxu0 0.0
        %3575 = vmatprep.subr.mxu0 0.0
        %3576 = vmatpush2.msra.mxu0 0.0
        %3577 = vmatprep.subr.mxu0 0.0
        %3578 = vmatpush2.msra.mxu0 0.0
        %3579 = vmatprep.subr.mxu0 0.0
        %3580 = vmatpush2.msra.mxu0 0.0
        %3581 = vmatprep.subr.mxu0 0.0
        %3582 = vmatpush2.msra.mxu0 0.0
        %3583 = vmatprep.subr.mxu0 0.0
        %3584 = vmatpush2.msra.mxu0 0.0
        %3585 = vmatprep.subr.mxu0 0.0
        %3586 = vmatpush2.msra.mxu0 0.0
        %3587 = vmatprep.subr.mxu0 0.0
        %3588 = vmatpush2.msra.mxu0 0.0
        %3589 = vmatprep.subr.mxu0 0.0
        %3590 = vmatpush2.msra.mxu0 0.0
        %3591 = vmatprep.subr.mxu0 0.0
        %3592 = vmatpush2.msra.mxu0 0.0
        %3593 = vmatprep.subr.mxu0 0.0
        %3594 = vmatpush2.msra.mxu0 0.0
        %3595 = vmatprep.subr.mxu0 0.0
        %3596 = vmatpush2.msra.mxu0 0.0
        %3597 = vmatprep.subr.mxu0 0.0
        %3598 = vmatpush2.msra.mxu0 0.0
        %3599 = vmatprep.subr.mxu0 0.0
        %3600 = vmatpush2.msra.mxu0 0.0
        %3601 = vmatprep.subr.mxu0 0.0
        %3602 = vmatpush2.msra.mxu0 0.0
        %3603 = vmatprep.subr.mxu0 0.0
        %3604 = vmatpush2.msra.mxu0 0.0
        %3605 = vmatprep.mubr.f32.mxu0 0.0
        %3606 = vmatmul.mubr.f32.gmra.mxu0 %v3468
        %v3607 = vpop.f32.mrf.mxu0
        %v3608 = vadd.f32 0.0, %v3607
        %v3609 = vpop.f32.mrf.mxu0
        %v3610 = vadd.f32 0.0, %v3609
        %3611 = vdwg.mxu0
        %v3612 = vadd.f32 %v3461, %v3537
        %v3613 = vadd.f32 %v3462, %v3539
        %v3614 = vadd.f32 %v3463, %v3608
        %v3615 = vadd.f32 %v3464, %v3610
        %s3616 = scalar_lea.vmem [#allocation7], 40
        %v3617 = vld [vmem:[%s3616] sm:$0xff]
        %v3619 = vsel %vm2024, %v3617, 0
        %3621 = vmatprep.subr.mxu0 0.0
        %3622 = vmatpush1.msra.mxu0 0.0
        %3623 = vmatprep.subr.mxu0 0.0
        %3624 = vmatpush1.msra.mxu0 0.0
        %3625 = vmatprep.subr.mxu0 0.0
        %3626 = vmatpush1.msra.mxu0 0.0
        %3627 = vmatprep.subr.mxu0 0.0
        %3628 = vmatpush1.msra.mxu0 0.0
        %3629 = vmatprep.subr.mxu0 0.0
        %3630 = vmatpush1.msra.mxu0 0.0
        %3631 = vmatprep.subr.mxu0 0.0
        %3632 = vmatpush1.msra.mxu0 0.0
        %3633 = vmatprep.subr.mxu0 0.0
        %3634 = vmatpush1.msra.mxu0 0.0
        %3635 = vmatprep.subr.mxu0 0.0
        %3636 = vmatpush1.msra.mxu0 0.0
        %3637 = vmatprep.subr.mxu0 0.0
        %3638 = vmatpush1.msra.mxu0 0.0
        %3639 = vmatprep.subr.mxu0 0.0
        %3640 = vmatpush1.msra.mxu0 0.0
        %3641 = vmatprep.subr.mxu0 0.0
        %3642 = vmatpush1.msra.mxu0 0.0
        %3643 = vmatprep.subr.mxu0 0.0
        %3644 = vmatpush1.msra.mxu0 0.0
        %3645 = vmatprep.subr.mxu0 0.0
        %3646 = vmatpush1.msra.mxu0 0.0
        %3647 = vmatprep.subr.mxu0 0.0
        %3648 = vmatpush1.msra.mxu0 0.0
        %3649 = vmatprep.subr.mxu0 0.0
        %3650 = vmatpush1.msra.mxu0 0.0
        %3651 = vmatprep.subr.mxu0 %v2020
        %3652 = vmatpush1.msra.mxu0 %v2019
        %3653 = vmatprep.subr.mxu0 0.0
        %3654 = vmatpush2.msra.mxu0 0.0
        %3655 = vmatprep.subr.mxu0 0.0
        %3656 = vmatpush2.msra.mxu0 0.0
        %3657 = vmatprep.subr.mxu0 0.0
        %3658 = vmatpush2.msra.mxu0 0.0
        %3659 = vmatprep.subr.mxu0 0.0
        %3660 = vmatpush2.msra.mxu0 0.0
        %3661 = vmatprep.subr.mxu0 0.0
        %3662 = vmatpush2.msra.mxu0 0.0
        %3663 = vmatprep.subr.mxu0 0.0
        %3664 = vmatpush2.msra.mxu0 0.0
        %3665 = vmatprep.subr.mxu0 0.0
        %3666 = vmatpush2.msra.mxu0 0.0
        %3667 = vmatprep.subr.mxu0 0.0
        %3668 = vmatpush2.msra.mxu0 0.0
        %3669 = vmatprep.subr.mxu0 0.0
        %3670 = vmatpush2.msra.mxu0 0.0
        %3671 = vmatprep.subr.mxu0 0.0
        %3672 = vmatpush2.msra.mxu0 0.0
        %3673 = vmatprep.subr.mxu0 0.0
        %3674 = vmatpush2.msra.mxu0 0.0
        %3675 = vmatprep.subr.mxu0 0.0
        %3676 = vmatpush2.msra.mxu0 0.0
        %3677 = vmatprep.subr.mxu0 0.0
        %3678 = vmatpush2.msra.mxu0 0.0
        %3679 = vmatprep.subr.mxu0 0.0
        %3680 = vmatpush2.msra.mxu0 0.0
        %3681 = vmatprep.subr.mxu0 0.0
        %3682 = vmatpush2.msra.mxu0 0.0
        %3683 = vmatprep.subr.mxu0 0.0
        %3684 = vmatpush2.msra.mxu0 0.0
        %3685 = vmatprep.mubr.f32.mxu0 0.0
        %3686 = vmatmul.mubr.f32.gmra.mxu0 %v3619
        %v3687 = vpop.f32.mrf.mxu0
        %v3688 = vadd.f32 0.0, %v3687
        %v3689 = vpop.f32.mrf.mxu0
        %v3690 = vadd.f32 0.0, %v3689
        %3691 = vdwg.mxu0
        %3692 = vmatprep.subr.mxu0 0.0
        %3693 = vmatpush1.msra.mxu0 0.0
        %3694 = vmatprep.subr.mxu0 0.0
        %3695 = vmatpush1.msra.mxu0 0.0
        %3696 = vmatprep.subr.mxu0 0.0
        %3697 = vmatpush1.msra.mxu0 0.0
        %3698 = vmatprep.subr.mxu0 0.0
        %3699 = vmatpush1.msra.mxu0 0.0
        %3700 = vmatprep.subr.mxu0 0.0
        %3701 = vmatpush1.msra.mxu0 0.0
        %3702 = vmatprep.subr.mxu0 0.0
        %3703 = vmatpush1.msra.mxu0 0.0
        %3704 = vmatprep.subr.mxu0 0.0
        %3705 = vmatpush1.msra.mxu0 0.0
        %3706 = vmatprep.subr.mxu0 0.0
        %3707 = vmatpush1.msra.mxu0 0.0
        %3708 = vmatprep.subr.mxu0 0.0
        %3709 = vmatpush1.msra.mxu0 0.0
        %3710 = vmatprep.subr.mxu0 0.0
        %3711 = vmatpush1.msra.mxu0 0.0
        %3712 = vmatprep.subr.mxu0 0.0
        %3713 = vmatpush1.msra.mxu0 0.0
        %3714 = vmatprep.subr.mxu0 0.0
        %3715 = vmatpush1.msra.mxu0 0.0
        %3716 = vmatprep.subr.mxu0 0.0
        %3717 = vmatpush1.msra.mxu0 0.0
        %3718 = vmatprep.subr.mxu0 0.0
        %3719 = vmatpush1.msra.mxu0 0.0
        %3720 = vmatprep.subr.mxu0 0.0
        %3721 = vmatpush1.msra.mxu0 0.0
        %3722 = vmatprep.subr.mxu0 %v2022
        %3723 = vmatpush1.msra.mxu0 %v2021
        %3724 = vmatprep.subr.mxu0 0.0
        %3725 = vmatpush2.msra.mxu0 0.0
        %3726 = vmatprep.subr.mxu0 0.0
        %3727 = vmatpush2.msra.mxu0 0.0
        %3728 = vmatprep.subr.mxu0 0.0
        %3729 = vmatpush2.msra.mxu0 0.0
        %3730 = vmatprep.subr.mxu0 0.0
        %3731 = vmatpush2.msra.mxu0 0.0
        %3732 = vmatprep.subr.mxu0 0.0
        %3733 = vmatpush2.msra.mxu0 0.0
        %3734 = vmatprep.subr.mxu0 0.0
        %3735 = vmatpush2.msra.mxu0 0.0
        %3736 = vmatprep.subr.mxu0 0.0
        %3737 = vmatpush2.msra.mxu0 0.0
        %3738 = vmatprep.subr.mxu0 0.0
        %3739 = vmatpush2.msra.mxu0 0.0
        %3740 = vmatprep.subr.mxu0 0.0
        %3741 = vmatpush2.msra.mxu0 0.0
        %3742 = vmatprep.subr.mxu0 0.0
        %3743 = vmatpush2.msra.mxu0 0.0
        %3744 = vmatprep.subr.mxu0 0.0
        %3745 = vmatpush2.msra.mxu0 0.0
        %3746 = vmatprep.subr.mxu0 0.0
        %3747 = vmatpush2.msra.mxu0 0.0
        %3748 = vmatprep.subr.mxu0 0.0
        %3749 = vmatpush2.msra.mxu0 0.0
        %3750 = vmatprep.subr.mxu0 0.0
        %3751 = vmatpush2.msra.mxu0 0.0
        %3752 = vmatprep.subr.mxu0 0.0
        %3753 = vmatpush2.msra.mxu0 0.0
        %3754 = vmatprep.subr.mxu0 0.0
        %3755 = vmatpush2.msra.mxu0 0.0
        %3756 = vmatprep.mubr.f32.mxu0 0.0
        %3757 = vmatmul.mubr.f32.gmra.mxu0 %v3619
        %v3758 = vpop.f32.mrf.mxu0
        %v3759 = vadd.f32 0.0, %v3758
        %v3760 = vpop.f32.mrf.mxu0
        %v3761 = vadd.f32 0.0, %v3760
        %3762 = vdwg.mxu0
        %v3763 = vadd.f32 %v3612, %v3688
        %v3764 = vadd.f32 %v3613, %v3690
        %v3765 = vadd.f32 %v3614, %v3759
        %v3766 = vadd.f32 %v3615, %v3761
        %3767 = vst [vmem:[%s335] sm:$0xff] %v3763
        %3768 = vst [vmem:[%s335 + $0x8] sm:$0xff] %v3764
        %3769 = vst [vmem:[%s335 + $0x10] sm:$0xff] %v3765
        %3770 = vst [vmem:[%s335 + $0x18] sm:$0xff] %v3766
        %s3771 = sand.u32 %s163, 1
        %s3772 = scalar_lea.sflag [#allocation4], %s3771
        %s3773 = sand.u32 %s163, 1
        %s3774 = smul.addr %s3773, 32
        %s3775 = scalar_lea.vmem [#allocation13], %s3774
        // Predicated region
        $region69: #{tpu_custom_call.1} parent=43 // pred_check
          %p3776 = pneg %p173
        $region70: #{tpu_custom_call.1} parent=43 // pred_check_branch
          %3778 = sbr.rel (%p3776) target = $region72
        $region71: #{tpu_custom_call.1} parent=43 // pred_region
          %s3780 = ssub.s32 512, 512
          %3781 = vsyncadd %s3772, %s3780
          %s3782 = smul.addr %s24, 4
          %s3783 = smul.addr %s3782, 128
          %s3784 = scalar_lea.hbm %s6, %s3783
          %s3786 = sshll.u32 %s3775, 4
          %s3787 = int_to_ptr.vmem [resolvable:$true] %s3786
          %3789 = dma.vmem_to_hbm [thread:$0]  %s3787, 512, %s3784, %s3772
        $region72: #{tpu_custom_call.1} parent=43 // pred_fallthru
          _
      $region44: #{tpu_custom_call.1} parent=5 // pred_fallthru
        _
      %p3790 = scmp.le.s32.totalorder 2, %s19
      // Predicated region
      $region73: #{tpu_custom_call.1} parent=5 // pred_check
        %p3791 = pneg %p3790
      $region74: #{tpu_custom_call.1} parent=5 // pred_check_branch
        %3793 = sbr.rel (%p3791) target = $region76
      $region75: #{tpu_custom_call.1} parent=5 // pred_region
        %s3794 = ssub.s32 %s19, 2
        // Predicated region
        $region77: #{tpu_custom_call.1} parent=75 // pred_check
          %p3795 = pneg %p179
        $region78: #{tpu_custom_call.1} parent=75 // pred_check_branch
          %3797 = sbr.rel (%p3795) target = $region80
        $region79: #{tpu_custom_call.1} parent=75 // pred_region
          %s3798 = sand.u32 %s164, 1
          %s3799 = scalar_lea.sflag [#allocation4], %s3798
          %s3800 = sand.u32 %s164, 1
          %s3801 = smul.addr %s3800, 32
          %s3802 = scalar_lea.vmem [#allocation13], %s3801
          %3803 = dma.done %s3799, 512
        $region80: #{tpu_custom_call.1} parent=75 // pred_fallthru
          _
      $region76: #{tpu_custom_call.1} parent=5 // pred_fallthru
        _
    $region6: #{tpu_custom_call.1} parent=1 // loop_footer
      %s23 = sadd.s32 1, %s19
    $region7: #{tpu_custom_call.1} parent=1 // loop_footer_branch
      %18 = sbr.rel target = $region3
    $region8: #{tpu_custom_call.1} parent=1 // loop_exit
      _
    %3804 = vsyncpa [#allocation3], 1
    %s3805 = scalar_lea.sflag [#allocation3], 1
    %3806 = vsyncpa %s3805, 1
    %3807 = vsyncpa [#allocation8], 1
    %3808 = vsyncpa [#allocation11], 1
    %3809 = vsyncpa [#allocation4], 1
    %s3810 = scalar_lea.sflag [#allocation4], 1
    %3811 = vsyncpa %s3810, 1
    %3812 = vsyncpa [#allocation5], 1
    %s3813 = scalar_lea.sflag [#allocation5], 1
    %3814 = vsyncpa %s3813, 1

</llo_original>
